<compile_context>
chip_gen: v7x
topology: tpu7x:2x2x1
jax: 0.10.0
libtpu: 0.0.40
codegen_flags: <defaults>
</compile_context>

<pallas_src>
import functools

import numpy as np

import jax
import jax.numpy as jnp
from jax.experimental import pallas as pl
from jax.experimental.pallas import tpu as pltpu


_HEADS = (("hm", 3), ("center", 2), ("center_z", 1), ("dim", 3), ("rot", 2))
_HM_CH = 3                                   # heatmap channels (sigmoided)
_TOT_OUT = sum(oc for _, oc in _HEADS)       # 11
_OUT_PAD = 16                                # padded fused-output channels

# Weight-slab layout: name -> (row_offset, rows, cols).  Row offsets / counts are
# multiples of 16 so bf16 sublane tiles stay aligned when sliced in the kernel.
_SLAB = {
    "b0c0":   (0,   16, 144),
    "b0c1":   (16,  16, 144),
    "de0":    (32,  16,  16),
    "b1c0":   (48,  16, 144),
    "b1c1":   (64,  16, 144),
    "de1":    (80,  64,  16),
    "shared": (144, 16, 288),
    "hc0":    (160, 80, 144),
    "hc1":    (240, 16,  80),
}
_SLAB_R, _SLAB_C = 256, 288


# ---------------------------------------------------------------------------
# In-kernel helpers (traced inside the fused Pallas kernel body)
# ---------------------------------------------------------------------------
def _wslice(w_ref, name):
    r0, rows, cols = _SLAB[name]
    return w_ref[r0:r0 + rows, 0:cols]                 # bf16 (rows, cols)


def _bslice(b_ref, name, rows=None):
    r0, r, _ = _SLAB[name]
    rows = r if rows is None else rows
    return b_ref[r0:r0 + rows, 0:1]                    # f32 (rows, 1)


def _mxu(a_bf16, b_bf16):
    return jax.lax.dot_general(
        a_bf16, b_bf16,
        dimension_numbers=(((1,), (0,)), ((), ())),
        preferred_element_type=jnp.float32)


def _boundary_masks(img_h, img_w, npix):
    """Per-tap validity masks for roll-based 'same' padding (powers of two)."""
    log_w = img_w.bit_length() - 1
    p = jax.lax.broadcasted_iota(jnp.int32, (1, npix), 1)
    w = p & (img_w - 1)
    h = (p >> log_w) & (img_h - 1)
    hmask = {-1: h > 0, 0: None, 1: h < img_h - 1}
    wmask = {-1: w > 0, 0: None, 1: w < img_w - 1}
    masks = {}
    for dy in (-1, 0, 1):
        for dx in (-1, 0, 1):
            conds = [m for m in (hmask[dy], wmask[dx]) if m is not None]
            if not conds:
                masks[(dy, dx)] = None
            else:
                c = conds[0]
                for extra in conds[1:]:
                    c = jnp.logical_and(c, extra)
                masks[(dy, dx)] = c.astype(jnp.float32)
    return masks


def _conv3x3(x, w_ref, b_ref, name, img_w, masks, relu=True, bias=True):
    """3x3 'same' conv in channel-major layout.

    x: (Cin_pad, NPIX) f32.  Shifted copies are built with pltpu.roll along the
    lane-dense pixel axis + boundary masks (no padded scratch), cast to bf16,
    concatenated along sublanes (16-row aligned) and fed to one MXU matmul.
    """
    npix = x.shape[1]
    taps = []
    for dy in (-1, 0, 1):
        for dx in (-1, 0, 1):
            off = dy * img_w + dx
            s = x if off == 0 else pltpu.roll(x, (-off) % npix, axis=1)
            m = masks[(dy, dx)]
            if m is not None:
                s = s * m
            taps.append(s.astype(jnp.bfloat16))
    patches = jnp.concatenate(taps, axis=0)            # (9*Cin_pad, NPIX) bf16
    acc = _mxu(_wslice(w_ref, name), patches)          # (Cout_pad, NPIX) f32
    if bias:
        acc = acc + _bslice(b_ref, name)
    if relu:
        acc = jnp.maximum(acc, 0.0)
    return acc


# ---------------------------------------------------------------------------
# The single fused kernel: backbone + deblocks + concat + CenterHead (to topk)
# ---------------------------------------------------------------------------
def _fused_kernel(x_ref, w_ref, b_ref, sel_ref, scat_ref, out_ref,
                  *, n_batch, img_h, img_w):
    bf16 = jnp.bfloat16
    hw = img_h * img_w
    npix = n_batch * hw
    h2, w2 = img_h // 2, img_w // 2
    npix2 = n_batch * h2 * w2

    masks_f = _boundary_masks(img_h, img_w, npix)
    masks_h = _boundary_masks(h2, w2, npix2)

    # (N, Cpad, HW) -> channel-major (Cpad, N*HW); batch folds into the
    # lane-dense pixel axis (HW is a multiple of 128 -> aligned lane concat).
    x = jnp.concatenate([x_ref[n] for n in range(n_batch)], axis=1)

    # ---- backbone level 0 (stride 1) ----
    x0 = _conv3x3(x,  w_ref, b_ref, "b0c0", img_w, masks_f)
    x0 = _conv3x3(x0, w_ref, b_ref, "b0c1", img_w, masks_f)          # (16, npix)

    # deblock 0: lateral 1x1 + ReLU
    up0 = _mxu(_wslice(w_ref, "de0"), x0.astype(bf16)) + _bslice(b_ref, "de0")
    up0 = jnp.maximum(up0, 0.0)                                      # (16, npix)

    # ---- backbone level 1 (stride 2) ----
    # stride-2 conv == stride-1 conv followed by an even-pixel selection matmul
    # (single MXU op with a 0/1 constant; everything stays in VMEM).
    y = _conv3x3(x0, w_ref, b_ref, "b1c0", img_w, masks_f,
                 relu=False, bias=False)                             # (16, npix)
    x1 = _mxu(y.astype(bf16), sel_ref[...])                          # (16, npix2)
    x1 = jnp.maximum(x1 + _bslice(b_ref, "b1c0"), 0.0)
    x1 = _conv3x3(x1, w_ref, b_ref, "b1c1", w2, masks_h)             # (16, npix2)

    # deblock 1: ConvTranspose2d(k=2, s=2) == zero-upsample (scatter matmul) +
    # four per-sub-pixel 1x1 kernels; the 2x2 interleave is three lane rolls.
    x1_up = _mxu(x1.astype(bf16), scat_ref[...])                     # (16, npix)
    ycat = _mxu(_wslice(w_ref, "de1"), x1_up.astype(bf16))           # (64, npix)
    up1 = (ycat[0:16]
           + pltpu.roll(ycat[16:32], 1, axis=1)
           + pltpu.roll(ycat[32:48], img_w, axis=1)
           + pltpu.roll(ycat[48:64], img_w + 1, axis=1))
    up1 = jnp.maximum(up1 + _bslice(b_ref, "de1", 16), 0.0)          # (16, npix)

    # ---- dense head: shared conv + all 5 branches fused ----
    sf = jnp.concatenate([up0, up1], axis=0)                         # (32, npix)
    feat = _conv3x3(sf,   w_ref, b_ref, "shared", img_w, masks_f)    # (16, npix)
    hf   = _conv3x3(feat, w_ref, b_ref, "hc0",    img_w, masks_f)    # (80, npix)
    out = _mxu(_wslice(w_ref, "hc1"), hf.astype(bf16)) + _bslice(b_ref, "hc1")

    # sigmoid on the heatmap rows only (rows >= _TOT_OUT are zero padding)
    row = jax.lax.broadcasted_iota(jnp.int32, out.shape, 0)
    out = jnp.where(row < _HM_CH, jax.nn.sigmoid(out), out)          # (16, npix)

    for n in range(n_batch):
        out_ref[n] = out[:, n * hw:(n + 1) * hw].astype(out_ref.dtype)


# ---------------------------------------------------------------------------
# Host-side constants: even-pixel selection (stride-2) and its transpose
# (zero-upsample scatter for the k=2/s=2 deconv).
# ---------------------------------------------------------------------------
def _make_resample_mats(n_batch, img_h, img_w):
    hw = img_h * img_w
    h2, w2 = img_h // 2, img_w // 2
    hw2 = h2 * w2
    sel = np.zeros((n_batch * hw, n_batch * hw2), np.float32)
    for n in range(n_batch):
        for ho in range(h2):
            for wo in range(w2):
                sel[n * hw + 2 * ho * img_w + 2 * wo,
                    n * hw2 + ho * w2 + wo] = 1.0
    return (jnp.asarray(sel, jnp.bfloat16),
            jnp.asarray(sel.T, jnp.bfloat16))


# ---------------------------------------------------------------------------
# Parameters (same structure/shapes as before) + kernel-ready slab packing
# ---------------------------------------------------------------------------
def make_params(key):
    def nrm(k, shape, scale=0.1):
        return (scale * jax.random.normal(k, shape)).astype(jnp.float32)

    keys = iter(jax.random.split(key, 64))
    p = {}
    p["b0c0_w"] = nrm(next(keys), (3, 3, 4, 8));   p["b0c0_b"] = nrm(next(keys), (8,))
    p["b0c1_w"] = nrm(next(keys), (3, 3, 8, 8));   p["b0c1_b"] = nrm(next(keys), (8,))
    p["b1c0_w"] = nrm(next(keys), (3, 3, 8, 16));  p["b1c0_b"] = nrm(next(keys), (16,))
    p["b1c1_w"] = nrm(next(keys), (3, 3, 16, 16)); p["b1c1_b"] = nrm(next(keys), (16,))
    p["de0_w"] = nrm(next(keys), (8, 16));         p["de0_b"] = nrm(next(keys), (16,))
    p["de1_w"] = nrm(next(keys), (16, 2, 2, 16));  p["de1_b"] = nrm(next(keys), (16,))
    p["shared_w"] = nrm(next(keys), (3, 3, 32, 16)); p["shared_b"] = nrm(next(keys), (16,))
    for name, oc in _HEADS:
        p[f"{name}_c0_w"] = nrm(next(keys), (3, 3, 16, 16))
        p[f"{name}_c0_b"] = nrm(next(keys), (16,))
        p[f"{name}_c1_w"] = nrm(next(keys), (16, oc))
        p[f"{name}_c1_b"] = nrm(next(keys), (oc,))
    return p


def prepare_weights(p):
    """Pack all (BN-folded) conv weights into one bf16 slab + one f32 bias slab,
    channel-major, with input/output channel groups zero-padded to 16."""
    w_slab = jnp.zeros((_SLAB_R, _SLAB_C), jnp.float32)
    b_slab = jnp.zeros((_SLAB_R, 1), jnp.float32)

    def put(name, w_cm, b_vec):
        nonlocal w_slab, b_slab
        r0 = _SLAB[name][0]
        w_slab = w_slab.at[r0:r0 + w_cm.shape[0], 0:w_cm.shape[1]].set(w_cm)
        if b_vec is not None:
            b_slab = b_slab.at[r0:r0 + b_vec.shape[0], 0].set(b_vec)

    def cm3x3(w, ci_pad=None, co_pad=None):
        # HWIO (3,3,ci,co) -> channel-major (co_pad, 9*ci_pad); tap order
        # (ky,kx) row-major, matching the kernel's roll order.
        kh, kw, ci, co = w.shape
        ci_pad = ci if ci_pad is None else ci_pad
        co_pad = co if co_pad is None else co_pad
        full = jnp.zeros((co_pad, kh, kw, ci_pad), jnp.float32)
        full = full.at[:co, :, :, :ci].set(jnp.transpose(w, (3, 0, 1, 2)))
        return full.reshape(co_pad, kh * kw * ci_pad)

    put("b0c0", cm3x3(p["b0c0_w"], 16, 16), p["b0c0_b"])
    put("b0c1", cm3x3(p["b0c1_w"], 16, 16), p["b0c1_b"])
    de0 = jnp.zeros((16, 16), jnp.float32).at[:, 0:8].set(p["de0_w"].T)
    put("de0", de0, p["de0_b"])
    put("b1c0", cm3x3(p["b1c0_w"], 16, 16), p["b1c0_b"])
    put("b1c1", cm3x3(p["b1c1_w"]), p["b1c1_b"])
    # ConvTranspose2d(k=2,s=2): stack the four per-sub-pixel (Cout,Cin) kernels
    # in (a,b) = (0,0),(0,1),(1,0),(1,1) order (matches the kernel's rolls).
    de1 = jnp.concatenate([p["de1_w"][:, a, b, :].T
                           for a in (0, 1) for b in (0, 1)], axis=0)   # (64, 16)
    put("de1", de1, p["de1_b"])
    put("shared", cm3x3(p["shared_w"]), p["shared_b"])
    put("hc0",
        jnp.concatenate([cm3x3(p[f"{n}_c0_w"]) for n, _ in _HEADS], axis=0),
        jnp.concatenate([p[f"{n}_c0_b"] for n, _ in _HEADS], axis=0))
    hc1 = jnp.zeros((_OUT_PAD, 16 * len(_HEADS)), jnp.float32)
    off = 0
    for hd, (n, oc) in enumerate(_HEADS):
        hc1 = hc1.at[off:off + oc, 16 * hd:16 * (hd + 1)].set(p[f"{n}_c1_w"].T)
        off += oc
    put("hc1", hc1,
        jnp.concatenate([p[f"{n}_c1_b"] for n, _ in _HEADS], axis=0))
    return {"w_slab": w_slab.astype(jnp.bfloat16), "b_slab": b_slab}


# ---------------------------------------------------------------------------
# Forward pass (== DenseConvsPipeline.forward)
# ---------------------------------------------------------------------------
def dense_convs_pipeline(spatial_features_nchw, wp):
    n, cin, img_h, img_w = spatial_features_nchw.shape
    assert img_h & (img_h - 1) == 0 and img_w & (img_w - 1) == 0
    hw = img_h * img_w
    cin_pad = -(-cin // 16) * 16

    x = spatial_features_nchw.reshape(n, cin, hw)        # free (contiguous)
    if cin_pad != cin:
        x = jnp.pad(x, ((0, 0), (0, cin_pad - cin), (0, 0)))
    sel, scat = _make_resample_mats(n, img_h, img_w)
    wsl, bsl = wp["w_slab"], wp["b_slab"]

    kernel = functools.partial(_fused_kernel, n_batch=n, img_h=img_h, img_w=img_w)
    out = pl.pallas_call(
        kernel,
        grid=(1,),
        in_specs=[
            pl.BlockSpec((n, cin_pad, hw), lambda i: (0, 0, 0)),
            pl.BlockSpec(wsl.shape, lambda i: (0, 0)),
            pl.BlockSpec(bsl.shape, lambda i: (0, 0)),
            pl.BlockSpec(sel.shape, lambda i: (0, 0)),
            pl.BlockSpec(scat.shape, lambda i: (0, 0)),
        ],
        out_specs=pl.BlockSpec((n, _OUT_PAD, hw), lambda i: (0, 0, 0)),
        out_shape=jax.ShapeDtypeStruct((n, _OUT_PAD, hw), jnp.float32),
        compiler_params=pltpu.CompilerParams(
            dimension_semantics=("arbitrary",)),
    )(x, wsl, bsl, sel, scat)

    # Output is already NCHW channel-major: just reshape + split per head.
    out = out.reshape(n, _OUT_PAD, img_h, img_w)
    results, off = [], 0
    for _, oc in _HEADS:
        results.append(out[:, off:off + oc])
        off += oc
    # TODO(synk): top-k / box post-processing happens after forward_up_to_topk
    # in the reference detector, so it is intentionally not implemented here.
    return results


if __name__ == "__main__":
    key = jax.random.PRNGKey(0)
    k_in, k_par = jax.random.split(key)
    spatial_features = jax.random.normal(k_in, (2, 4, 16, 16), dtype=jnp.float32)
    params = prepare_weights(make_params(k_par))

    outputs = jax.jit(dense_convs_pipeline)(spatial_features, params)
    outputs = jax.block_until_ready(outputs)

    expected = [(2, 3, 16, 16), (2, 2, 16, 16), (2, 1, 16, 16),
                (2, 3, 16, 16), (2, 2, 16, 16)]
    assert [tuple(o.shape) for o in outputs] == expected
    assert all(bool(jnp.all(jnp.isfinite(o))) for o in outputs)
    # heatmap branch went through the sigmoid
    assert bool(jnp.all((outputs[0] >= -1e-6) & (outputs[0] <= 1.0 + 1e-6)))
    print("KERNEL_OK")
</pallas_src>

<mosaic_0001>
module attributes {stable_mosaic.version = 11 : i64} {
  func.func @_fused_kernel(%arg0: i32, %arg1: memref<2x16x256xf32, #tpu.memory_space<vmem>>, %arg2: memref<256x288xbf16, #tpu.memory_space<vmem>>, %arg3: memref<256x1xf32, #tpu.memory_space<vmem>>, %arg4: memref<512x128xbf16, #tpu.memory_space<vmem>>, %arg5: memref<128x512xbf16, #tpu.memory_space<vmem>>, %arg6: memref<2x16x256xf32, #tpu.memory_space<vmem>>) attributes {dimension_semantics = [#tpu.dimension_semantics<arbitrary>], iteration_bounds = array<i64: 1>, scalar_prefetch = 0 : i64, scratch_operands = 0 : i64, tpu.core_type = #tpu.core_type<tc>, window_params = [{pipeline_mode = #tpu.pipeline_mode<synchronous>, transform_indices = @transform_0, window_bounds = array<i64: 2, 16, 256>}, {pipeline_mode = #tpu.pipeline_mode<synchronous>, transform_indices = @transform_1, window_bounds = array<i64: 256, 288>}, {pipeline_mode = #tpu.pipeline_mode<synchronous>, transform_indices = @transform_2, window_bounds = array<i64: 256, 1>}, {pipeline_mode = #tpu.pipeline_mode<synchronous>, transform_indices = @transform_3, window_bounds = array<i64: 512, 128>}, {pipeline_mode = #tpu.pipeline_mode<synchronous>, transform_indices = @transform_4, window_bounds = array<i64: 128, 512>}, {pipeline_mode = #tpu.pipeline_mode<synchronous>, transform_indices = @transform_5, window_bounds = array<i64: 2, 16, 256>}]} {
    %0 = tpu.iota {dimensions = array<i32: 1>} : vector<1x512xi32>
    %c15_i32 = arith.constant 15 : i32
    %1 = vector.broadcast %c15_i32 : i32 to vector<1x512xi32>
    %2 = arith.andi %0, %1 : vector<1x512xi32>
    %c4_i32 = arith.constant 4 : i32
    %3 = vector.broadcast %c4_i32 : i32 to vector<1x512xi32>
    %4 = arith.shrsi %0, %3 : vector<1x512xi32>
    %c15_i32_0 = arith.constant 15 : i32
    %5 = vector.broadcast %c15_i32_0 : i32 to vector<1x512xi32>
    %6 = arith.andi %4, %5 : vector<1x512xi32>
    %c0_i32 = arith.constant 0 : i32
    %7 = vector.broadcast %c0_i32 : i32 to vector<1x512xi32>
    %8 = arith.cmpi sgt, %6, %7 : vector<1x512xi32>
    %c15_i32_1 = arith.constant 15 : i32
    %9 = vector.broadcast %c15_i32_1 : i32 to vector<1x512xi32>
    %10 = arith.cmpi slt, %6, %9 : vector<1x512xi32>
    %c0_i32_2 = arith.constant 0 : i32
    %11 = vector.broadcast %c0_i32_2 : i32 to vector<1x512xi32>
    %12 = arith.cmpi sgt, %2, %11 : vector<1x512xi32>
    %c15_i32_3 = arith.constant 15 : i32
    %13 = vector.broadcast %c15_i32_3 : i32 to vector<1x512xi32>
    %14 = arith.cmpi slt, %2, %13 : vector<1x512xi32>
    %15 = arith.andi %8, %12 : vector<1x512xi1>
    %16 = arith.extui %15 : vector<1x512xi1> to vector<1x512xi32>
    %17 = arith.sitofp %16 : vector<1x512xi32> to vector<1x512xf32>
    %18 = arith.extui %8 : vector<1x512xi1> to vector<1x512xi32>
    %19 = arith.sitofp %18 : vector<1x512xi32> to vector<1x512xf32>
    %20 = arith.andi %8, %14 : vector<1x512xi1>
    %21 = arith.extui %20 : vector<1x512xi1> to vector<1x512xi32>
    %22 = arith.sitofp %21 : vector<1x512xi32> to vector<1x512xf32>
    %23 = arith.extui %12 : vector<1x512xi1> to vector<1x512xi32>
    %24 = arith.sitofp %23 : vector<1x512xi32> to vector<1x512xf32>
    %25 = arith.extui %14 : vector<1x512xi1> to vector<1x512xi32>
    %26 = arith.sitofp %25 : vector<1x512xi32> to vector<1x512xf32>
    %27 = arith.andi %10, %12 : vector<1x512xi1>
    %28 = arith.extui %27 : vector<1x512xi1> to vector<1x512xi32>
    %29 = arith.sitofp %28 : vector<1x512xi32> to vector<1x512xf32>
    %30 = arith.extui %10 : vector<1x512xi1> to vector<1x512xi32>
    %31 = arith.sitofp %30 : vector<1x512xi32> to vector<1x512xf32>
    %32 = arith.andi %10, %14 : vector<1x512xi1>
    %33 = arith.extui %32 : vector<1x512xi1> to vector<1x512xi32>
    %34 = arith.sitofp %33 : vector<1x512xi32> to vector<1x512xf32>
    %35 = tpu.iota {dimensions = array<i32: 1>} : vector<1x128xi32>
    %c7_i32 = arith.constant 7 : i32
    %36 = vector.broadcast %c7_i32 : i32 to vector<1x128xi32>
    %37 = arith.andi %35, %36 : vector<1x128xi32>
    %c3_i32 = arith.constant 3 : i32
    %38 = vector.broadcast %c3_i32 : i32 to vector<1x128xi32>
    %39 = arith.shrsi %35, %38 : vector<1x128xi32>
    %c7_i32_4 = arith.constant 7 : i32
    %40 = vector.broadcast %c7_i32_4 : i32 to vector<1x128xi32>
    %41 = arith.andi %39, %40 : vector<1x128xi32>
    %c0_i32_5 = arith.constant 0 : i32
    %42 = vector.broadcast %c0_i32_5 : i32 to vector<1x128xi32>
    %43 = arith.cmpi sgt, %41, %42 : vector<1x128xi32>
    %c7_i32_6 = arith.constant 7 : i32
    %44 = vector.broadcast %c7_i32_6 : i32 to vector<1x128xi32>
    %45 = arith.cmpi slt, %41, %44 : vector<1x128xi32>
    %c0_i32_7 = arith.constant 0 : i32
    %46 = vector.broadcast %c0_i32_7 : i32 to vector<1x128xi32>
    %47 = arith.cmpi sgt, %37, %46 : vector<1x128xi32>
    %c7_i32_8 = arith.constant 7 : i32
    %48 = vector.broadcast %c7_i32_8 : i32 to vector<1x128xi32>
    %49 = arith.cmpi slt, %37, %48 : vector<1x128xi32>
    %50 = arith.andi %43, %47 : vector<1x128xi1>
    %51 = arith.extui %50 : vector<1x128xi1> to vector<1x128xi32>
    %52 = arith.sitofp %51 : vector<1x128xi32> to vector<1x128xf32>
    %53 = arith.extui %43 : vector<1x128xi1> to vector<1x128xi32>
    %54 = arith.sitofp %53 : vector<1x128xi32> to vector<1x128xf32>
    %55 = arith.andi %43, %49 : vector<1x128xi1>
    %56 = arith.extui %55 : vector<1x128xi1> to vector<1x128xi32>
    %57 = arith.sitofp %56 : vector<1x128xi32> to vector<1x128xf32>
    %58 = arith.extui %47 : vector<1x128xi1> to vector<1x128xi32>
    %59 = arith.sitofp %58 : vector<1x128xi32> to vector<1x128xf32>
    %60 = arith.extui %49 : vector<1x128xi1> to vector<1x128xi32>
    %61 = arith.sitofp %60 : vector<1x128xi32> to vector<1x128xf32>
    %62 = arith.andi %45, %47 : vector<1x128xi1>
    %63 = arith.extui %62 : vector<1x128xi1> to vector<1x128xi32>
    %64 = arith.sitofp %63 : vector<1x128xi32> to vector<1x128xf32>
    %65 = arith.extui %45 : vector<1x128xi1> to vector<1x128xi32>
    %66 = arith.sitofp %65 : vector<1x128xi32> to vector<1x128xf32>
    %67 = arith.andi %45, %49 : vector<1x128xi1>
    %68 = arith.extui %67 : vector<1x128xi1> to vector<1x128xi32>
    %69 = arith.sitofp %68 : vector<1x128xi32> to vector<1x128xf32>
    %c0 = arith.constant 0 : index
    %c0_9 = arith.constant 0 : index
    %c0_10 = arith.constant 0 : index
    %70 = vector.load %arg1[%c0, %c0_9, %c0_10] : memref<2x16x256xf32, #tpu.memory_space<vmem>>, vector<1x16x256xf32>
    %71 = vector.shape_cast %70 : vector<1x16x256xf32> to vector<16x256xf32>
    %c1 = arith.constant 1 : index
    %c0_11 = arith.constant 0 : index
    %c0_12 = arith.constant 0 : index
    %72 = vector.load %arg1[%c1, %c0_11, %c0_12] : memref<2x16x256xf32, #tpu.memory_space<vmem>>, vector<1x16x256xf32>
    %73 = vector.shape_cast %72 : vector<1x16x256xf32> to vector<16x256xf32>
    %74 = tpu.concatenate %71, %73 in 1 : vector<16x256xf32>, vector<16x256xf32> -> vector<16x512xf32>
    %c17_i32 = arith.constant 17 : i32
    %75 = tpu.dynamic_rotate %74 by %c17_i32 dim 1 : vector<16x512xf32>, i32 -> vector<16x512xf32>
    %76 = vector.broadcast %17 : vector<1x512xf32> to vector<16x512xf32>
    %77 = arith.mulf %75, %76 : vector<16x512xf32>
    %78 = arith.truncf %77 : vector<16x512xf32> to vector<16x512xbf16>
    %c16_i32 = arith.constant 16 : i32
    %79 = tpu.dynamic_rotate %74 by %c16_i32 dim 1 : vector<16x512xf32>, i32 -> vector<16x512xf32>
    %80 = vector.broadcast %19 : vector<1x512xf32> to vector<16x512xf32>
    %81 = arith.mulf %79, %80 : vector<16x512xf32>
    %82 = arith.truncf %81 : vector<16x512xf32> to vector<16x512xbf16>
    %c15_i32_13 = arith.constant 15 : i32
    %83 = tpu.dynamic_rotate %74 by %c15_i32_13 dim 1 : vector<16x512xf32>, i32 -> vector<16x512xf32>
    %84 = vector.broadcast %22 : vector<1x512xf32> to vector<16x512xf32>
    %85 = arith.mulf %83, %84 : vector<16x512xf32>
    %86 = arith.truncf %85 : vector<16x512xf32> to vector<16x512xbf16>
    %c1_i32 = arith.constant 1 : i32
    %87 = tpu.dynamic_rotate %74 by %c1_i32 dim 1 : vector<16x512xf32>, i32 -> vector<16x512xf32>
    %88 = vector.broadcast %24 : vector<1x512xf32> to vector<16x512xf32>
    %89 = arith.mulf %87, %88 : vector<16x512xf32>
    %90 = arith.truncf %89 : vector<16x512xf32> to vector<16x512xbf16>
    %91 = arith.truncf %74 : vector<16x512xf32> to vector<16x512xbf16>
    %c511_i32 = arith.constant 511 : i32
    %92 = tpu.dynamic_rotate %74 by %c511_i32 dim 1 : vector<16x512xf32>, i32 -> vector<16x512xf32>
    %93 = vector.broadcast %26 : vector<1x512xf32> to vector<16x512xf32>
    %94 = arith.mulf %92, %93 : vector<16x512xf32>
    %95 = arith.truncf %94 : vector<16x512xf32> to vector<16x512xbf16>
    %c497_i32 = arith.constant 497 : i32
    %96 = tpu.dynamic_rotate %74 by %c497_i32 dim 1 : vector<16x512xf32>, i32 -> vector<16x512xf32>
    %97 = vector.broadcast %29 : vector<1x512xf32> to vector<16x512xf32>
    %98 = arith.mulf %96, %97 : vector<16x512xf32>
    %99 = arith.truncf %98 : vector<16x512xf32> to vector<16x512xbf16>
    %c496_i32 = arith.constant 496 : i32
    %100 = tpu.dynamic_rotate %74 by %c496_i32 dim 1 : vector<16x512xf32>, i32 -> vector<16x512xf32>
    %101 = vector.broadcast %31 : vector<1x512xf32> to vector<16x512xf32>
    %102 = arith.mulf %100, %101 : vector<16x512xf32>
    %103 = arith.truncf %102 : vector<16x512xf32> to vector<16x512xbf16>
    %c495_i32 = arith.constant 495 : i32
    %104 = tpu.dynamic_rotate %74 by %c495_i32 dim 1 : vector<16x512xf32>, i32 -> vector<16x512xf32>
    %105 = vector.broadcast %34 : vector<1x512xf32> to vector<16x512xf32>
    %106 = arith.mulf %104, %105 : vector<16x512xf32>
    %107 = arith.truncf %106 : vector<16x512xf32> to vector<16x512xbf16>
    %108 = tpu.concatenate %78, %82, %86, %90, %91, %95, %99, %103, %107 in 0 : vector<16x512xbf16>, vector<16x512xbf16>, vector<16x512xbf16>, vector<16x512xbf16>, vector<16x512xbf16>, vector<16x512xbf16>, vector<16x512xbf16>, vector<16x512xbf16>, vector<16x512xbf16> -> vector<144x512xbf16>
    %c0_14 = arith.constant 0 : index
    %c0_15 = arith.constant 0 : index
    %109 = vector.load %arg2[%c0_14, %c0_15] : memref<256x288xbf16, #tpu.memory_space<vmem>>, vector<16x144xbf16>
    %cst = arith.constant dense<0.000000e+00> : vector<16x512xf32>
    %110 = tpu.matmul %109, %108, %cst {dimension_numbers = #tpu.dot_dimension_numbers<[1], [0], [0], [1], [0, 0, 1, 1], [], []>} : vector<16x144xbf16>, vector<144x512xbf16>, vector<16x512xf32> -> vector<16x512xf32>
    %c0_16 = arith.constant 0 : index
    %c0_17 = arith.constant 0 : index
    %111 = vector.load %arg3[%c0_16, %c0_17] : memref<256x1xf32, #tpu.memory_space<vmem>>, vector<16x1xf32>
    %112 = vector.broadcast %111 : vector<16x1xf32> to vector<16x512xf32>
    %113 = arith.addf %110, %112 : vector<16x512xf32>
    %cst_18 = arith.constant 0.000000e+00 : f32
    %114 = vector.broadcast %cst_18 : f32 to vector<16x512xf32>
    %115 = arith.maximumf %113, %114 : vector<16x512xf32>
    %c17_i32_19 = arith.constant 17 : i32
    %116 = tpu.dynamic_rotate %115 by %c17_i32_19 dim 1 : vector<16x512xf32>, i32 -> vector<16x512xf32>
    %117 = vector.broadcast %17 : vector<1x512xf32> to vector<16x512xf32>
    %118 = arith.mulf %116, %117 : vector<16x512xf32>
    %119 = arith.truncf %118 : vector<16x512xf32> to vector<16x512xbf16>
    %c16_i32_20 = arith.constant 16 : i32
    %120 = tpu.dynamic_rotate %115 by %c16_i32_20 dim 1 : vector<16x512xf32>, i32 -> vector<16x512xf32>
    %121 = vector.broadcast %19 : vector<1x512xf32> to vector<16x512xf32>
    %122 = arith.mulf %120, %121 : vector<16x512xf32>
    %123 = arith.truncf %122 : vector<16x512xf32> to vector<16x512xbf16>
    %c15_i32_21 = arith.constant 15 : i32
    %124 = tpu.dynamic_rotate %115 by %c15_i32_21 dim 1 : vector<16x512xf32>, i32 -> vector<16x512xf32>
    %125 = vector.broadcast %22 : vector<1x512xf32> to vector<16x512xf32>
    %126 = arith.mulf %124, %125 : vector<16x512xf32>
    %127 = arith.truncf %126 : vector<16x512xf32> to vector<16x512xbf16>
    %c1_i32_22 = arith.constant 1 : i32
    %128 = tpu.dynamic_rotate %115 by %c1_i32_22 dim 1 : vector<16x512xf32>, i32 -> vector<16x512xf32>
    %129 = vector.broadcast %24 : vector<1x512xf32> to vector<16x512xf32>
    %130 = arith.mulf %128, %129 : vector<16x512xf32>
    %131 = arith.truncf %130 : vector<16x512xf32> to vector<16x512xbf16>
    %132 = arith.truncf %115 : vector<16x512xf32> to vector<16x512xbf16>
    %c511_i32_23 = arith.constant 511 : i32
    %133 = tpu.dynamic_rotate %115 by %c511_i32_23 dim 1 : vector<16x512xf32>, i32 -> vector<16x512xf32>
    %134 = vector.broadcast %26 : vector<1x512xf32> to vector<16x512xf32>
    %135 = arith.mulf %133, %134 : vector<16x512xf32>
    %136 = arith.truncf %135 : vector<16x512xf32> to vector<16x512xbf16>
    %c497_i32_24 = arith.constant 497 : i32
    %137 = tpu.dynamic_rotate %115 by %c497_i32_24 dim 1 : vector<16x512xf32>, i32 -> vector<16x512xf32>
    %138 = vector.broadcast %29 : vector<1x512xf32> to vector<16x512xf32>
    %139 = arith.mulf %137, %138 : vector<16x512xf32>
    %140 = arith.truncf %139 : vector<16x512xf32> to vector<16x512xbf16>
    %c496_i32_25 = arith.constant 496 : i32
    %141 = tpu.dynamic_rotate %115 by %c496_i32_25 dim 1 : vector<16x512xf32>, i32 -> vector<16x512xf32>
    %142 = vector.broadcast %31 : vector<1x512xf32> to vector<16x512xf32>
    %143 = arith.mulf %141, %142 : vector<16x512xf32>
    %144 = arith.truncf %143 : vector<16x512xf32> to vector<16x512xbf16>
    %c495_i32_26 = arith.constant 495 : i32
    %145 = tpu.dynamic_rotate %115 by %c495_i32_26 dim 1 : vector<16x512xf32>, i32 -> vector<16x512xf32>
    %146 = vector.broadcast %34 : vector<1x512xf32> to vector<16x512xf32>
    %147 = arith.mulf %145, %146 : vector<16x512xf32>
    %148 = arith.truncf %147 : vector<16x512xf32> to vector<16x512xbf16>
    %149 = tpu.concatenate %119, %123, %127, %131, %132, %136, %140, %144, %148 in 0 : vector<16x512xbf16>, vector<16x512xbf16>, vector<16x512xbf16>, vector<16x512xbf16>, vector<16x512xbf16>, vector<16x512xbf16>, vector<16x512xbf16>, vector<16x512xbf16>, vector<16x512xbf16> -> vector<144x512xbf16>
    %c16 = arith.constant 16 : index
    %c0_27 = arith.constant 0 : index
    %150 = vector.load %arg2[%c16, %c0_27] : memref<256x288xbf16, #tpu.memory_space<vmem>>, vector<16x144xbf16>
    %cst_28 = arith.constant dense<0.000000e+00> : vector<16x512xf32>
    %151 = tpu.matmul %150, %149, %cst_28 {dimension_numbers = #tpu.dot_dimension_numbers<[1], [0], [0], [1], [0, 0, 1, 1], [], []>} : vector<16x144xbf16>, vector<144x512xbf16>, vector<16x512xf32> -> vector<16x512xf32>
    %c16_29 = arith.constant 16 : index
    %c0_30 = arith.constant 0 : index
    %152 = vector.load %arg3[%c16_29, %c0_30] : memref<256x1xf32, #tpu.memory_space<vmem>>, vector<16x1xf32>
    %153 = vector.broadcast %152 : vector<16x1xf32> to vector<16x512xf32>
    %154 = arith.addf %151, %153 : vector<16x512xf32>
    %cst_31 = arith.constant 0.000000e+00 : f32
    %155 = vector.broadcast %cst_31 : f32 to vector<16x512xf32>
    %156 = arith.maximumf %154, %155 : vector<16x512xf32>
    %c32 = arith.constant 32 : index
    %c0_32 = arith.constant 0 : index
    %157 = vector.load %arg2[%c32, %c0_32] : memref<256x288xbf16, #tpu.memory_space<vmem>>, vector<16x16xbf16>
    %158 = arith.truncf %156 : vector<16x512xf32> to vector<16x512xbf16>
    %cst_33 = arith.constant dense<0.000000e+00> : vector<16x512xf32>
    %159 = tpu.matmul %157, %158, %cst_33 {dimension_numbers = #tpu.dot_dimension_numbers<[1], [0], [0], [1], [0, 0, 1, 1], [], []>} : vector<16x16xbf16>, vector<16x512xbf16>, vector<16x512xf32> -> vector<16x512xf32>
    %c32_34 = arith.constant 32 : index
    %c0_35 = arith.constant 0 : index
    %160 = vector.load %arg3[%c32_34, %c0_35] : memref<256x1xf32, #tpu.memory_space<vmem>>, vector<16x1xf32>
    %161 = vector.broadcast %160 : vector<16x1xf32> to vector<16x512xf32>
    %162 = arith.addf %159, %161 : vector<16x512xf32>
    %cst_36 = arith.constant 0.000000e+00 : f32
    %163 = vector.broadcast %cst_36 : f32 to vector<16x512xf32>
    %164 = arith.maximumf %162, %163 : vector<16x512xf32>
    %c17_i32_37 = arith.constant 17 : i32
    %165 = tpu.dynamic_rotate %156 by %c17_i32_37 dim 1 : vector<16x512xf32>, i32 -> vector<16x512xf32>
    %166 = vector.broadcast %17 : vector<1x512xf32> to vector<16x512xf32>
    %167 = arith.mulf %165, %166 : vector<16x512xf32>
    %168 = arith.truncf %167 : vector<16x512xf32> to vector<16x512xbf16>
    %c16_i32_38 = arith.constant 16 : i32
    %169 = tpu.dynamic_rotate %156 by %c16_i32_38 dim 1 : vector<16x512xf32>, i32 -> vector<16x512xf32>
    %170 = vector.broadcast %19 : vector<1x512xf32> to vector<16x512xf32>
    %171 = arith.mulf %169, %170 : vector<16x512xf32>
    %172 = arith.truncf %171 : vector<16x512xf32> to vector<16x512xbf16>
    %c15_i32_39 = arith.constant 15 : i32
    %173 = tpu.dynamic_rotate %156 by %c15_i32_39 dim 1 : vector<16x512xf32>, i32 -> vector<16x512xf32>
    %174 = vector.broadcast %22 : vector<1x512xf32> to vector<16x512xf32>
    %175 = arith.mulf %173, %174 : vector<16x512xf32>
    %176 = arith.truncf %175 : vector<16x512xf32> to vector<16x512xbf16>
    %c1_i32_40 = arith.constant 1 : i32
    %177 = tpu.dynamic_rotate %156 by %c1_i32_40 dim 1 : vector<16x512xf32>, i32 -> vector<16x512xf32>
    %178 = vector.broadcast %24 : vector<1x512xf32> to vector<16x512xf32>
    %179 = arith.mulf %177, %178 : vector<16x512xf32>
    %180 = arith.truncf %179 : vector<16x512xf32> to vector<16x512xbf16>
    %181 = arith.truncf %156 : vector<16x512xf32> to vector<16x512xbf16>
    %c511_i32_41 = arith.constant 511 : i32
    %182 = tpu.dynamic_rotate %156 by %c511_i32_41 dim 1 : vector<16x512xf32>, i32 -> vector<16x512xf32>
    %183 = vector.broadcast %26 : vector<1x512xf32> to vector<16x512xf32>
    %184 = arith.mulf %182, %183 : vector<16x512xf32>
    %185 = arith.truncf %184 : vector<16x512xf32> to vector<16x512xbf16>
    %c497_i32_42 = arith.constant 497 : i32
    %186 = tpu.dynamic_rotate %156 by %c497_i32_42 dim 1 : vector<16x512xf32>, i32 -> vector<16x512xf32>
    %187 = vector.broadcast %29 : vector<1x512xf32> to vector<16x512xf32>
    %188 = arith.mulf %186, %187 : vector<16x512xf32>
    %189 = arith.truncf %188 : vector<16x512xf32> to vector<16x512xbf16>
    %c496_i32_43 = arith.constant 496 : i32
    %190 = tpu.dynamic_rotate %156 by %c496_i32_43 dim 1 : vector<16x512xf32>, i32 -> vector<16x512xf32>
    %191 = vector.broadcast %31 : vector<1x512xf32> to vector<16x512xf32>
    %192 = arith.mulf %190, %191 : vector<16x512xf32>
    %193 = arith.truncf %192 : vector<16x512xf32> to vector<16x512xbf16>
    %c495_i32_44 = arith.constant 495 : i32
    %194 = tpu.dynamic_rotate %156 by %c495_i32_44 dim 1 : vector<16x512xf32>, i32 -> vector<16x512xf32>
    %195 = vector.broadcast %34 : vector<1x512xf32> to vector<16x512xf32>
    %196 = arith.mulf %194, %195 : vector<16x512xf32>
    %197 = arith.truncf %196 : vector<16x512xf32> to vector<16x512xbf16>
    %198 = tpu.concatenate %168, %172, %176, %180, %181, %185, %189, %193, %197 in 0 : vector<16x512xbf16>, vector<16x512xbf16>, vector<16x512xbf16>, vector<16x512xbf16>, vector<16x512xbf16>, vector<16x512xbf16>, vector<16x512xbf16>, vector<16x512xbf16>, vector<16x512xbf16> -> vector<144x512xbf16>
    %c48 = arith.constant 48 : index
    %c0_45 = arith.constant 0 : index
    %199 = vector.load %arg2[%c48, %c0_45] : memref<256x288xbf16, #tpu.memory_space<vmem>>, vector<16x144xbf16>
    %cst_46 = arith.constant dense<0.000000e+00> : vector<16x512xf32>
    %200 = tpu.matmul %199, %198, %cst_46 {dimension_numbers = #tpu.dot_dimension_numbers<[1], [0], [0], [1], [0, 0, 1, 1], [], []>} : vector<16x144xbf16>, vector<144x512xbf16>, vector<16x512xf32> -> vector<16x512xf32>
    %201 = arith.truncf %200 : vector<16x512xf32> to vector<16x512xbf16>
    %c0_47 = arith.constant 0 : index
    %c0_48 = arith.constant 0 : index
    %202 = vector.load %arg4[%c0_47, %c0_48] : memref<512x128xbf16, #tpu.memory_space<vmem>>, vector<512x128xbf16>
    %cst_49 = arith.constant dense<0.000000e+00> : vector<16x128xf32>
    %203 = tpu.matmul %201, %202, %cst_49 {dimension_numbers = #tpu.dot_dimension_numbers<[1], [0], [0], [1], [0, 0, 1, 1], [], []>} : vector<16x512xbf16>, vector<512x128xbf16>, vector<16x128xf32> -> vector<16x128xf32>
    %c48_50 = arith.constant 48 : index
    %c0_51 = arith.constant 0 : index
    %204 = vector.load %arg3[%c48_50, %c0_51] : memref<256x1xf32, #tpu.memory_space<vmem>>, vector<16x1xf32>
    %205 = vector.broadcast %204 : vector<16x1xf32> to vector<16x128xf32>
    %206 = arith.addf %203, %205 : vector<16x128xf32>
    %cst_52 = arith.constant 0.000000e+00 : f32
    %207 = vector.broadcast %cst_52 : f32 to vector<16x128xf32>
    %208 = arith.maximumf %206, %207 : vector<16x128xf32>
    %c9_i32 = arith.constant 9 : i32
    %209 = tpu.dynamic_rotate %208 by %c9_i32 dim 1 : vector<16x128xf32>, i32 -> vector<16x128xf32>
    %210 = vector.broadcast %52 : vector<1x128xf32> to vector<16x128xf32>
    %211 = arith.mulf %209, %210 : vector<16x128xf32>
    %212 = arith.truncf %211 : vector<16x128xf32> to vector<16x128xbf16>
    %c8_i32 = arith.constant 8 : i32
    %213 = tpu.dynamic_rotate %208 by %c8_i32 dim 1 : vector<16x128xf32>, i32 -> vector<16x128xf32>
    %214 = vector.broadcast %54 : vector<1x128xf32> to vector<16x128xf32>
    %215 = arith.mulf %213, %214 : vector<16x128xf32>
    %216 = arith.truncf %215 : vector<16x128xf32> to vector<16x128xbf16>
    %c7_i32_53 = arith.constant 7 : i32
    %217 = tpu.dynamic_rotate %208 by %c7_i32_53 dim 1 : vector<16x128xf32>, i32 -> vector<16x128xf32>
    %218 = vector.broadcast %57 : vector<1x128xf32> to vector<16x128xf32>
    %219 = arith.mulf %217, %218 : vector<16x128xf32>
    %220 = arith.truncf %219 : vector<16x128xf32> to vector<16x128xbf16>
    %c1_i32_54 = arith.constant 1 : i32
    %221 = tpu.dynamic_rotate %208 by %c1_i32_54 dim 1 : vector<16x128xf32>, i32 -> vector<16x128xf32>
    %222 = vector.broadcast %59 : vector<1x128xf32> to vector<16x128xf32>
    %223 = arith.mulf %221, %222 : vector<16x128xf32>
    %224 = arith.truncf %223 : vector<16x128xf32> to vector<16x128xbf16>
    %225 = arith.truncf %208 : vector<16x128xf32> to vector<16x128xbf16>
    %c127_i32 = arith.constant 127 : i32
    %226 = tpu.dynamic_rotate %208 by %c127_i32 dim 1 : vector<16x128xf32>, i32 -> vector<16x128xf32>
    %227 = vector.broadcast %61 : vector<1x128xf32> to vector<16x128xf32>
    %228 = arith.mulf %226, %227 : vector<16x128xf32>
    %229 = arith.truncf %228 : vector<16x128xf32> to vector<16x128xbf16>
    %c121_i32 = arith.constant 121 : i32
    %230 = tpu.dynamic_rotate %208 by %c121_i32 dim 1 : vector<16x128xf32>, i32 -> vector<16x128xf32>
    %231 = vector.broadcast %64 : vector<1x128xf32> to vector<16x128xf32>
    %232 = arith.mulf %230, %231 : vector<16x128xf32>
    %233 = arith.truncf %232 : vector<16x128xf32> to vector<16x128xbf16>
    %c120_i32 = arith.constant 120 : i32
    %234 = tpu.dynamic_rotate %208 by %c120_i32 dim 1 : vector<16x128xf32>, i32 -> vector<16x128xf32>
    %235 = vector.broadcast %66 : vector<1x128xf32> to vector<16x128xf32>
    %236 = arith.mulf %234, %235 : vector<16x128xf32>
    %237 = arith.truncf %236 : vector<16x128xf32> to vector<16x128xbf16>
    %c119_i32 = arith.constant 119 : i32
    %238 = tpu.dynamic_rotate %208 by %c119_i32 dim 1 : vector<16x128xf32>, i32 -> vector<16x128xf32>
    %239 = vector.broadcast %69 : vector<1x128xf32> to vector<16x128xf32>
    %240 = arith.mulf %238, %239 : vector<16x128xf32>
    %241 = arith.truncf %240 : vector<16x128xf32> to vector<16x128xbf16>
    %242 = tpu.concatenate %212, %216, %220, %224, %225, %229, %233, %237, %241 in 0 : vector<16x128xbf16>, vector<16x128xbf16>, vector<16x128xbf16>, vector<16x128xbf16>, vector<16x128xbf16>, vector<16x128xbf16>, vector<16x128xbf16>, vector<16x128xbf16>, vector<16x128xbf16> -> vector<144x128xbf16>
    %c64 = arith.constant 64 : index
    %c0_55 = arith.constant 0 : index
    %243 = vector.load %arg2[%c64, %c0_55] : memref<256x288xbf16, #tpu.memory_space<vmem>>, vector<16x144xbf16>
    %cst_56 = arith.constant dense<0.000000e+00> : vector<16x128xf32>
    %244 = tpu.matmul %243, %242, %cst_56 {dimension_numbers = #tpu.dot_dimension_numbers<[1], [0], [0], [1], [0, 0, 1, 1], [], []>} : vector<16x144xbf16>, vector<144x128xbf16>, vector<16x128xf32> -> vector<16x128xf32>
    %c64_57 = arith.constant 64 : index
    %c0_58 = arith.constant 0 : index
    %245 = vector.load %arg3[%c64_57, %c0_58] : memref<256x1xf32, #tpu.memory_space<vmem>>, vector<16x1xf32>
    %246 = vector.broadcast %245 : vector<16x1xf32> to vector<16x128xf32>
    %247 = arith.addf %244, %246 : vector<16x128xf32>
    %cst_59 = arith.constant 0.000000e+00 : f32
    %248 = vector.broadcast %cst_59 : f32 to vector<16x128xf32>
    %249 = arith.maximumf %247, %248 : vector<16x128xf32>
    %250 = arith.truncf %249 : vector<16x128xf32> to vector<16x128xbf16>
    %c0_60 = arith.constant 0 : index
    %c0_61 = arith.constant 0 : index
    %251 = vector.load %arg5[%c0_60, %c0_61] : memref<128x512xbf16, #tpu.memory_space<vmem>>, vector<128x512xbf16>
    %cst_62 = arith.constant dense<0.000000e+00> : vector<16x512xf32>
    %252 = tpu.matmul %250, %251, %cst_62 {dimension_numbers = #tpu.dot_dimension_numbers<[1], [0], [0], [1], [0, 0, 1, 1], [], []>} : vector<16x128xbf16>, vector<128x512xbf16>, vector<16x512xf32> -> vector<16x512xf32>
    %c80 = arith.constant 80 : index
    %c0_63 = arith.constant 0 : index
    %253 = vector.load %arg2[%c80, %c0_63] : memref<256x288xbf16, #tpu.memory_space<vmem>>, vector<64x16xbf16>
    %254 = arith.truncf %252 : vector<16x512xf32> to vector<16x512xbf16>
    %cst_64 = arith.constant dense<0.000000e+00> : vector<64x512xf32>
    %255 = tpu.matmul %253, %254, %cst_64 {dimension_numbers = #tpu.dot_dimension_numbers<[1], [0], [0], [1], [0, 0, 1, 1], [], []>} : vector<64x16xbf16>, vector<16x512xbf16>, vector<64x512xf32> -> vector<64x512xf32>
    %256 = vector.extract_strided_slice %255 {offsets = [0, 0], sizes = [16, 512], strides = [1, 1]} : vector<64x512xf32> to vector<16x512xf32>
    %257 = vector.extract_strided_slice %255 {offsets = [16, 0], sizes = [16, 512], strides = [1, 1]} : vector<64x512xf32> to vector<16x512xf32>
    %c1_i32_65 = arith.constant 1 : i32
    %258 = tpu.dynamic_rotate %257 by %c1_i32_65 dim 1 : vector<16x512xf32>, i32 -> vector<16x512xf32>
    %259 = arith.addf %256, %258 : vector<16x512xf32>
    %260 = vector.extract_strided_slice %255 {offsets = [32, 0], sizes = [16, 512], strides = [1, 1]} : vector<64x512xf32> to vector<16x512xf32>
    %c16_i32_66 = arith.constant 16 : i32
    %261 = tpu.dynamic_rotate %260 by %c16_i32_66 dim 1 : vector<16x512xf32>, i32 -> vector<16x512xf32>
    %262 = arith.addf %259, %261 : vector<16x512xf32>
    %263 = vector.extract_strided_slice %255 {offsets = [48, 0], sizes = [16, 512], strides = [1, 1]} : vector<64x512xf32> to vector<16x512xf32>
    %c17_i32_67 = arith.constant 17 : i32
    %264 = tpu.dynamic_rotate %263 by %c17_i32_67 dim 1 : vector<16x512xf32>, i32 -> vector<16x512xf32>
    %265 = arith.addf %262, %264 : vector<16x512xf32>
    %c80_68 = arith.constant 80 : index
    %c0_69 = arith.constant 0 : index
    %266 = vector.load %arg3[%c80_68, %c0_69] : memref<256x1xf32, #tpu.memory_space<vmem>>, vector<16x1xf32>
    %267 = vector.broadcast %266 : vector<16x1xf32> to vector<16x512xf32>
    %268 = arith.addf %265, %267 : vector<16x512xf32>
    %cst_70 = arith.constant 0.000000e+00 : f32
    %269 = vector.broadcast %cst_70 : f32 to vector<16x512xf32>
    %270 = arith.maximumf %268, %269 : vector<16x512xf32>
    %271 = tpu.concatenate %164, %270 in 0 : vector<16x512xf32>, vector<16x512xf32> -> vector<32x512xf32>
    %c17_i32_71 = arith.constant 17 : i32
    %272 = tpu.dynamic_rotate %271 by %c17_i32_71 dim 1 : vector<32x512xf32>, i32 -> vector<32x512xf32>
    %273 = vector.broadcast %17 : vector<1x512xf32> to vector<32x512xf32>
    %274 = arith.mulf %272, %273 : vector<32x512xf32>
    %275 = arith.truncf %274 : vector<32x512xf32> to vector<32x512xbf16>
    %c16_i32_72 = arith.constant 16 : i32
    %276 = tpu.dynamic_rotate %271 by %c16_i32_72 dim 1 : vector<32x512xf32>, i32 -> vector<32x512xf32>
    %277 = vector.broadcast %19 : vector<1x512xf32> to vector<32x512xf32>
    %278 = arith.mulf %276, %277 : vector<32x512xf32>
    %279 = arith.truncf %278 : vector<32x512xf32> to vector<32x512xbf16>
    %c15_i32_73 = arith.constant 15 : i32
    %280 = tpu.dynamic_rotate %271 by %c15_i32_73 dim 1 : vector<32x512xf32>, i32 -> vector<32x512xf32>
    %281 = vector.broadcast %22 : vector<1x512xf32> to vector<32x512xf32>
    %282 = arith.mulf %280, %281 : vector<32x512xf32>
    %283 = arith.truncf %282 : vector<32x512xf32> to vector<32x512xbf16>
    %c1_i32_74 = arith.constant 1 : i32
    %284 = tpu.dynamic_rotate %271 by %c1_i32_74 dim 1 : vector<32x512xf32>, i32 -> vector<32x512xf32>
    %285 = vector.broadcast %24 : vector<1x512xf32> to vector<32x512xf32>
    %286 = arith.mulf %284, %285 : vector<32x512xf32>
    %287 = arith.truncf %286 : vector<32x512xf32> to vector<32x512xbf16>
    %288 = arith.truncf %271 : vector<32x512xf32> to vector<32x512xbf16>
    %c511_i32_75 = arith.constant 511 : i32
    %289 = tpu.dynamic_rotate %271 by %c511_i32_75 dim 1 : vector<32x512xf32>, i32 -> vector<32x512xf32>
    %290 = vector.broadcast %26 : vector<1x512xf32> to vector<32x512xf32>
    %291 = arith.mulf %289, %290 : vector<32x512xf32>
    %292 = arith.truncf %291 : vector<32x512xf32> to vector<32x512xbf16>
    %c497_i32_76 = arith.constant 497 : i32
    %293 = tpu.dynamic_rotate %271 by %c497_i32_76 dim 1 : vector<32x512xf32>, i32 -> vector<32x512xf32>
    %294 = vector.broadcast %29 : vector<1x512xf32> to vector<32x512xf32>
    %295 = arith.mulf %293, %294 : vector<32x512xf32>
    %296 = arith.truncf %295 : vector<32x512xf32> to vector<32x512xbf16>
    %c496_i32_77 = arith.constant 496 : i32
    %297 = tpu.dynamic_rotate %271 by %c496_i32_77 dim 1 : vector<32x512xf32>, i32 -> vector<32x512xf32>
    %298 = vector.broadcast %31 : vector<1x512xf32> to vector<32x512xf32>
    %299 = arith.mulf %297, %298 : vector<32x512xf32>
    %300 = arith.truncf %299 : vector<32x512xf32> to vector<32x512xbf16>
    %c495_i32_78 = arith.constant 495 : i32
    %301 = tpu.dynamic_rotate %271 by %c495_i32_78 dim 1 : vector<32x512xf32>, i32 -> vector<32x512xf32>
    %302 = vector.broadcast %34 : vector<1x512xf32> to vector<32x512xf32>
    %303 = arith.mulf %301, %302 : vector<32x512xf32>
    %304 = arith.truncf %303 : vector<32x512xf32> to vector<32x512xbf16>
    %305 = tpu.concatenate %275, %279, %283, %287, %288, %292, %296, %300, %304 in 0 : vector<32x512xbf16>, vector<32x512xbf16>, vector<32x512xbf16>, vector<32x512xbf16>, vector<32x512xbf16>, vector<32x512xbf16>, vector<32x512xbf16>, vector<32x512xbf16>, vector<32x512xbf16> -> vector<288x512xbf16>
    %c144 = arith.constant 144 : index
    %c0_79 = arith.constant 0 : index
    %306 = vector.load %arg2[%c144, %c0_79] : memref<256x288xbf16, #tpu.memory_space<vmem>>, vector<16x288xbf16>
    %cst_80 = arith.constant dense<0.000000e+00> : vector<16x512xf32>
    %307 = tpu.matmul %306, %305, %cst_80 {dimension_numbers = #tpu.dot_dimension_numbers<[1], [0], [0], [1], [0, 0, 1, 1], [], []>} : vector<16x288xbf16>, vector<288x512xbf16>, vector<16x512xf32> -> vector<16x512xf32>
    %c144_81 = arith.constant 144 : index
    %c0_82 = arith.constant 0 : index
    %308 = vector.load %arg3[%c144_81, %c0_82] : memref<256x1xf32, #tpu.memory_space<vmem>>, vector<16x1xf32>
    %309 = vector.broadcast %308 : vector<16x1xf32> to vector<16x512xf32>
    %310 = arith.addf %307, %309 : vector<16x512xf32>
    %cst_83 = arith.constant 0.000000e+00 : f32
    %311 = vector.broadcast %cst_83 : f32 to vector<16x512xf32>
    %312 = arith.maximumf %310, %311 : vector<16x512xf32>
    %c17_i32_84 = arith.constant 17 : i32
    %313 = tpu.dynamic_rotate %312 by %c17_i32_84 dim 1 : vector<16x512xf32>, i32 -> vector<16x512xf32>
    %314 = vector.broadcast %17 : vector<1x512xf32> to vector<16x512xf32>
    %315 = arith.mulf %313, %314 : vector<16x512xf32>
    %316 = arith.truncf %315 : vector<16x512xf32> to vector<16x512xbf16>
    %c16_i32_85 = arith.constant 16 : i32
    %317 = tpu.dynamic_rotate %312 by %c16_i32_85 dim 1 : vector<16x512xf32>, i32 -> vector<16x512xf32>
    %318 = vector.broadcast %19 : vector<1x512xf32> to vector<16x512xf32>
    %319 = arith.mulf %317, %318 : vector<16x512xf32>
    %320 = arith.truncf %319 : vector<16x512xf32> to vector<16x512xbf16>
    %c15_i32_86 = arith.constant 15 : i32
    %321 = tpu.dynamic_rotate %312 by %c15_i32_86 dim 1 : vector<16x512xf32>, i32 -> vector<16x512xf32>
    %322 = vector.broadcast %22 : vector<1x512xf32> to vector<16x512xf32>
    %323 = arith.mulf %321, %322 : vector<16x512xf32>
    %324 = arith.truncf %323 : vector<16x512xf32> to vector<16x512xbf16>
    %c1_i32_87 = arith.constant 1 : i32
    %325 = tpu.dynamic_rotate %312 by %c1_i32_87 dim 1 : vector<16x512xf32>, i32 -> vector<16x512xf32>
    %326 = vector.broadcast %24 : vector<1x512xf32> to vector<16x512xf32>
    %327 = arith.mulf %325, %326 : vector<16x512xf32>
    %328 = arith.truncf %327 : vector<16x512xf32> to vector<16x512xbf16>
    %329 = arith.truncf %312 : vector<16x512xf32> to vector<16x512xbf16>
    %c511_i32_88 = arith.constant 511 : i32
    %330 = tpu.dynamic_rotate %312 by %c511_i32_88 dim 1 : vector<16x512xf32>, i32 -> vector<16x512xf32>
    %331 = vector.broadcast %26 : vector<1x512xf32> to vector<16x512xf32>
    %332 = arith.mulf %330, %331 : vector<16x512xf32>
    %333 = arith.truncf %332 : vector<16x512xf32> to vector<16x512xbf16>
    %c497_i32_89 = arith.constant 497 : i32
    %334 = tpu.dynamic_rotate %312 by %c497_i32_89 dim 1 : vector<16x512xf32>, i32 -> vector<16x512xf32>
    %335 = vector.broadcast %29 : vector<1x512xf32> to vector<16x512xf32>
    %336 = arith.mulf %334, %335 : vector<16x512xf32>
    %337 = arith.truncf %336 : vector<16x512xf32> to vector<16x512xbf16>
    %c496_i32_90 = arith.constant 496 : i32
    %338 = tpu.dynamic_rotate %312 by %c496_i32_90 dim 1 : vector<16x512xf32>, i32 -> vector<16x512xf32>
    %339 = vector.broadcast %31 : vector<1x512xf32> to vector<16x512xf32>
    %340 = arith.mulf %338, %339 : vector<16x512xf32>
    %341 = arith.truncf %340 : vector<16x512xf32> to vector<16x512xbf16>
    %c495_i32_91 = arith.constant 495 : i32
    %342 = tpu.dynamic_rotate %312 by %c495_i32_91 dim 1 : vector<16x512xf32>, i32 -> vector<16x512xf32>
    %343 = vector.broadcast %34 : vector<1x512xf32> to vector<16x512xf32>
    %344 = arith.mulf %342, %343 : vector<16x512xf32>
    %345 = arith.truncf %344 : vector<16x512xf32> to vector<16x512xbf16>
    %346 = tpu.concatenate %316, %320, %324, %328, %329, %333, %337, %341, %345 in 0 : vector<16x512xbf16>, vector<16x512xbf16>, vector<16x512xbf16>, vector<16x512xbf16>, vector<16x512xbf16>, vector<16x512xbf16>, vector<16x512xbf16>, vector<16x512xbf16>, vector<16x512xbf16> -> vector<144x512xbf16>
    %c160 = arith.constant 160 : index
    %c0_92 = arith.constant 0 : index
    %347 = vector.load %arg2[%c160, %c0_92] : memref<256x288xbf16, #tpu.memory_space<vmem>>, vector<80x144xbf16>
    %cst_93 = arith.constant dense<0.000000e+00> : vector<80x512xf32>
    %348 = tpu.matmul %347, %346, %cst_93 {dimension_numbers = #tpu.dot_dimension_numbers<[1], [0], [0], [1], [0, 0, 1, 1], [], []>} : vector<80x144xbf16>, vector<144x512xbf16>, vector<80x512xf32> -> vector<80x512xf32>
    %c160_94 = arith.constant 160 : index
    %c0_95 = arith.constant 0 : index
    %349 = vector.load %arg3[%c160_94, %c0_95] : memref<256x1xf32, #tpu.memory_space<vmem>>, vector<80x1xf32>
    %350 = vector.broadcast %349 : vector<80x1xf32> to vector<80x512xf32>
    %351 = arith.addf %348, %350 : vector<80x512xf32>
    %cst_96 = arith.constant 0.000000e+00 : f32
    %352 = vector.broadcast %cst_96 : f32 to vector<80x512xf32>
    %353 = arith.maximumf %351, %352 : vector<80x512xf32>
    %c240 = arith.constant 240 : index
    %c0_97 = arith.constant 0 : index
    %354 = vector.load %arg2[%c240, %c0_97] : memref<256x288xbf16, #tpu.memory_space<vmem>>, vector<16x80xbf16>
    %355 = arith.truncf %353 : vector<80x512xf32> to vector<80x512xbf16>
    %cst_98 = arith.constant dense<0.000000e+00> : vector<16x512xf32>
    %356 = tpu.matmul %354, %355, %cst_98 {dimension_numbers = #tpu.dot_dimension_numbers<[1], [0], [0], [1], [0, 0, 1, 1], [], []>} : vector<16x80xbf16>, vector<80x512xbf16>, vector<16x512xf32> -> vector<16x512xf32>
    %c240_99 = arith.constant 240 : index
    %c0_100 = arith.constant 0 : index
    %357 = vector.load %arg3[%c240_99, %c0_100] : memref<256x1xf32, #tpu.memory_space<vmem>>, vector<16x1xf32>
    %358 = vector.broadcast %357 : vector<16x1xf32> to vector<16x512xf32>
    %359 = arith.addf %356, %358 : vector<16x512xf32>
    %360 = tpu.iota {dimensions = array<i32: 0>} : vector<16x512xi32>
    %c3_i32_101 = arith.constant 3 : i32
    %361 = vector.broadcast %c3_i32_101 : i32 to vector<16x512xi32>
    %362 = arith.cmpi slt, %360, %361 : vector<16x512xi32>
    %363 = arith.negf %359 : vector<16x512xf32>
    %364 = math.exp %363 : vector<16x512xf32>
    %cst_102 = arith.constant 1.000000e+00 : f32
    %365 = vector.broadcast %cst_102 : f32 to vector<16x512xf32>
    %366 = arith.addf %365, %364 : vector<16x512xf32>
    %367 = arith.divf %365, %366 : vector<16x512xf32>
    %368 = arith.select %362, %367, %359 : vector<16x512xi1>, vector<16x512xf32>
    %369 = vector.extract_strided_slice %368 {offsets = [0, 0], sizes = [16, 256], strides = [1, 1]} : vector<16x512xf32> to vector<16x256xf32>
    %c0_103 = arith.constant 0 : index
    %c0_104 = arith.constant 0 : index
    %c0_105 = arith.constant 0 : index
    %370 = vector.load %arg6[%c0_103, %c0_104, %c0_105] : memref<2x16x256xf32, #tpu.memory_space<vmem>>, vector<1x16x256xf32>
    %371 = vector.shape_cast %370 : vector<1x16x256xf32> to vector<16x256xf32>
    %372 = vector.shape_cast %369 : vector<16x256xf32> to vector<1x16x256xf32>
    tpu.vector_store %arg6[%c0_103, %c0_104, %c0_105], %372 {strides = array<i32>} : memref<2x16x256xf32, #tpu.memory_space<vmem>>, vector<1x16x256xf32>,
    %373 = vector.extract_strided_slice %368 {offsets = [0, 256], sizes = [16, 256], strides = [1, 1]} : vector<16x512xf32> to vector<16x256xf32>
    %c1_106 = arith.constant 1 : index
    %c0_107 = arith.constant 0 : index
    %c0_108 = arith.constant 0 : index
    %374 = vector.load %arg6[%c1_106, %c0_107, %c0_108] : memref<2x16x256xf32, #tpu.memory_space<vmem>>, vector<1x16x256xf32>
    %375 = vector.shape_cast %374 : vector<1x16x256xf32> to vector<16x256xf32>
    %376 = vector.shape_cast %373 : vector<16x256xf32> to vector<1x16x256xf32>
    tpu.vector_store %arg6[%c1_106, %c0_107, %c0_108], %376 {strides = array<i32>} : memref<2x16x256xf32, #tpu.memory_space<vmem>>, vector<1x16x256xf32>,
    return
  }
  func.func @transform_0(%arg0: i32) -> (i32, i32, i32) {
    %c0_i32 = arith.constant 0 : i32
    %c0_i32_0 = arith.constant 0 : i32
    %c0_i32_1 = arith.constant 0 : i32
    %c0_i32_2 = arith.constant 0 : i32
    return %c0_i32, %c0_i32_0, %c0_i32_1 : i32, i32, i32
  }
  func.func @transform_1(%arg0: i32) -> (i32, i32) {
    %c0_i32 = arith.constant 0 : i32
    %c0_i32_0 = arith.constant 0 : i32
    %c0_i32_1 = arith.constant 0 : i32
    return %c0_i32, %c0_i32_0 : i32, i32
  }
  func.func @transform_2(%arg0: i32) -> (i32, i32) {
    %c0_i32 = arith.constant 0 : i32
    %c0_i32_0 = arith.constant 0 : i32
    %c0_i32_1 = arith.constant 0 : i32
    return %c0_i32, %c0_i32_0 : i32, i32
  }
  func.func @transform_3(%arg0: i32) -> (i32, i32) {
    %c0_i32 = arith.constant 0 : i32
    %c0_i32_0 = arith.constant 0 : i32
    %c0_i32_1 = arith.constant 0 : i32
    return %c0_i32, %c0_i32_0 : i32, i32
  }
  func.func @transform_4(%arg0: i32) -> (i32, i32) {
    %c0_i32 = arith.constant 0 : i32
    %c0_i32_0 = arith.constant 0 : i32
    %c0_i32_1 = arith.constant 0 : i32
    return %c0_i32, %c0_i32_0 : i32, i32
  }
  func.func @transform_5(%arg0: i32) -> (i32, i32, i32) {
    %c0_i32 = arith.constant 0 : i32
    %c0_i32_0 = arith.constant 0 : i32
    %c0_i32_1 = arith.constant 0 : i32
    %c0_i32_2 = arith.constant 0 : i32
    return %c0_i32, %c0_i32_0, %c0_i32_1 : i32, i32, i32
  }
}

</mosaic_0001>

<llo_original>
// kernel: dense_convs_pipeline.1
$region0: #{dense_convs_pipeline.1}
  #allocation0 [shape = 'u32[]', space=smem, size = 0x4, offset = 0x4, fixed_abs, tag = 'smem constant byte address 0x4 - core index']
  #allocation1 [shape = 'u32[144,128]{1,0:T(1,128)}', space=vmem, size = 0x12000, scoped, tag = 'internal scratch']
  %s0 = inlined_call_operand.vmem [shape: f32[2,16,256], index: 0, kind: input, shape index: {}]
  %s1 = inlined_call_operand.vmem [shape: bf16[256,288], index: 1, kind: input, shape index: {}]
  %s2 = inlined_call_operand.vmem [shape: f32[256,1], index: 2, kind: input, shape index: {}]
  %s3 = inlined_call_operand.vmem [shape: bf16[512,128], index: 3, kind: input, shape index: {}]
  %s4 = inlined_call_operand.vmem [shape: bf16[128,512], index: 4, kind: input, shape index: {}]
  %s5 = inlined_call_operand.vmem [shape: f32[2,16,256], index: 5, kind: output, shape index: {}]
  %s6 = sld [smem:[#allocation0]]
  $region30: #{dense_convs_pipeline.1} parent=0
    _
  %s8 = ssub.s32 1, %s6
  %s9 = scalar_select 0, %s8, %s6
  // Predicated region
  $region2: #{dense_convs_pipeline.1} parent=0 // pred_check
    _
  $region3: #{dense_convs_pipeline.1} parent=0 // pred_check_branch
    %11 = sbr.rel (0) target = $region5
  $region4: #{dense_convs_pipeline.1} parent=0 // pred_region
    _
  $region5: #{dense_convs_pipeline.1} parent=0 // pred_fallthru
    _
  // Predicated region
  $region6: #{dense_convs_pipeline.1} parent=0 // pred_check
    _
  $region7: #{dense_convs_pipeline.1} parent=0 // pred_check_branch
    %13 = sbr.rel (0) target = $region9
  $region8: #{dense_convs_pipeline.1} parent=0 // pred_region
    _
  $region9: #{dense_convs_pipeline.1} parent=0 // pred_fallthru
    _
  // Predicated region
  $region10: #{dense_convs_pipeline.1} parent=0 // pred_check
    _
  $region11: #{dense_convs_pipeline.1} parent=0 // pred_check_branch
    %15 = sbr.rel (0) target = $region13
  $region12: #{dense_convs_pipeline.1} parent=0 // pred_region
    _
  $region13: #{dense_convs_pipeline.1} parent=0 // pred_fallthru
    _
  // Predicated region
  $region14: #{dense_convs_pipeline.1} parent=0 // pred_check
    _
  $region15: #{dense_convs_pipeline.1} parent=0 // pred_check_branch
    %17 = sbr.rel (0) target = $region17
  $region16: #{dense_convs_pipeline.1} parent=0 // pred_region
    _
  $region17: #{dense_convs_pipeline.1} parent=0 // pred_fallthru
    _
  // Predicated region
  $region18: #{dense_convs_pipeline.1} parent=0 // pred_check
    _
  $region19: #{dense_convs_pipeline.1} parent=0 // pred_check_branch
    %19 = sbr.rel (0) target = $region21
  $region20: #{dense_convs_pipeline.1} parent=0 // pred_region
    _
  $region21: #{dense_convs_pipeline.1} parent=0 // pred_fallthru
    _
  %v21 = vlaneseq
  %v22 = vand.u32 %v21, 127
  %v23 = vadd.s32 %v22, 128
  %v24 = vadd.s32 %v22, 256
  %v25 = vadd.s32 %v22, 384
  %v26 = vand.u32 %v22, 15
  %v27 = vand.u32 %v23, 15
  %v28 = vand.u32 %v24, 15
  %v29 = vand.u32 %v25, 15
  %v30 = vshra.s32 %v22, 4
  %v31 = vshra.s32 %v23, 4
  %v32 = vshra.s32 %v24, 4
  %v33 = vshra.s32 %v25, 4
  %v34 = vand.u32 %v30, 15
  %v35 = vand.u32 %v31, 15
  %v36 = vand.u32 %v32, 15
  %v37 = vand.u32 %v33, 15
  %vm38 = vcmp.gt.s32.totalorder %v34, 0
  %vm39 = vcmp.gt.s32.totalorder %v35, 0
  %vm40 = vcmp.gt.s32.totalorder %v36, 0
  %vm41 = vcmp.gt.s32.totalorder %v37, 0
  %vm42 = vcmp.lt.s32.totalorder %v34, 15
  %vm43 = vcmp.lt.s32.totalorder %v35, 15
  %vm44 = vcmp.lt.s32.totalorder %v36, 15
  %vm45 = vcmp.lt.s32.totalorder %v37, 15
  %vm46 = vcmp.gt.s32.totalorder %v26, 0
  %vm47 = vcmp.gt.s32.totalorder %v27, 0
  %vm48 = vcmp.gt.s32.totalorder %v28, 0
  %vm49 = vcmp.gt.s32.totalorder %v29, 0
  %vm50 = vcmp.lt.s32.totalorder %v26, 15
  %vm51 = vcmp.lt.s32.totalorder %v27, 15
  %vm52 = vcmp.lt.s32.totalorder %v28, 15
  %vm53 = vcmp.lt.s32.totalorder %v29, 15
  %vm54 = vmand %vm38, %vm46
  %vm55 = vmand %vm39, %vm47
  %vm56 = vmand %vm40, %vm48
  %vm57 = vmand %vm41, %vm49
  %v58 = vsel %vm54, 1, 0
  %v59 = vsel %vm55, 1, 0
  %v60 = vsel %vm56, 1, 0
  %v61 = vsel %vm57, 1, 0
  %v62 = vcvt.s32.f32 %v58
  %v63 = vcvt.s32.f32 %v59
  %v64 = vcvt.s32.f32 %v60
  %v65 = vcvt.s32.f32 %v61
  %v66 = vsel %vm38, 1, 0
  %v67 = vsel %vm39, 1, 0
  %v68 = vsel %vm40, 1, 0
  %v69 = vsel %vm41, 1, 0
  %v70 = vcvt.s32.f32 %v66
  %v71 = vcvt.s32.f32 %v67
  %v72 = vcvt.s32.f32 %v68
  %v73 = vcvt.s32.f32 %v69
  %vm74 = vmand %vm38, %vm50
  %vm75 = vmand %vm39, %vm51
  %vm76 = vmand %vm40, %vm52
  %vm77 = vmand %vm41, %vm53
  %v78 = vsel %vm74, 1, 0
  %v79 = vsel %vm75, 1, 0
  %v80 = vsel %vm76, 1, 0
  %v81 = vsel %vm77, 1, 0
  %v82 = vcvt.s32.f32 %v78
  %v83 = vcvt.s32.f32 %v79
  %v84 = vcvt.s32.f32 %v80
  %v85 = vcvt.s32.f32 %v81
  %v86 = vsel %vm46, 1, 0
  %v87 = vsel %vm47, 1, 0
  %v88 = vsel %vm48, 1, 0
  %v89 = vsel %vm49, 1, 0
  %v90 = vcvt.s32.f32 %v86
  %v91 = vcvt.s32.f32 %v87
  %v92 = vcvt.s32.f32 %v88
  %v93 = vcvt.s32.f32 %v89
  %v94 = vsel %vm50, 1, 0
  %v95 = vsel %vm51, 1, 0
  %v96 = vsel %vm52, 1, 0
  %v97 = vsel %vm53, 1, 0
  %v98 = vcvt.s32.f32 %v94
  %v99 = vcvt.s32.f32 %v95
  %v100 = vcvt.s32.f32 %v96
  %v101 = vcvt.s32.f32 %v97
  %vm102 = vmand %vm42, %vm46
  %vm103 = vmand %vm43, %vm47
  %vm104 = vmand %vm44, %vm48
  %vm105 = vmand %vm45, %vm49
  %v106 = vsel %vm102, 1, 0
  %v107 = vsel %vm103, 1, 0
  %v108 = vsel %vm104, 1, 0
  %v109 = vsel %vm105, 1, 0
  %v110 = vcvt.s32.f32 %v106
  %v111 = vcvt.s32.f32 %v107
  %v112 = vcvt.s32.f32 %v108
  %v113 = vcvt.s32.f32 %v109
  %v114 = vsel %vm42, 1, 0
  %v115 = vsel %vm43, 1, 0
  %v116 = vsel %vm44, 1, 0
  %v117 = vsel %vm45, 1, 0
  %v118 = vcvt.s32.f32 %v114
  %v119 = vcvt.s32.f32 %v115
  %v120 = vcvt.s32.f32 %v116
  %v121 = vcvt.s32.f32 %v117
  %vm122 = vmand %vm42, %vm50
  %vm123 = vmand %vm43, %vm51
  %vm124 = vmand %vm44, %vm52
  %vm125 = vmand %vm45, %vm53
  %v126 = vsel %vm122, 1, 0
  %v127 = vsel %vm123, 1, 0
  %v128 = vsel %vm124, 1, 0
  %v129 = vsel %vm125, 1, 0
  %v130 = vcvt.s32.f32 %v126
  %v131 = vcvt.s32.f32 %v127
  %v132 = vcvt.s32.f32 %v128
  %v133 = vcvt.s32.f32 %v129
  %v134 = vand.u32 %v22, 7
  %v135 = vshra.s32 %v22, 3
  %v136 = vand.u32 %v135, 7
  %vm137 = vcmp.gt.s32.totalorder %v136, 0
  %vm138 = vcmp.lt.s32.totalorder %v136, 7
  %vm139 = vcmp.gt.s32.totalorder %v134, 0
  %vm140 = vcmp.lt.s32.totalorder %v134, 7
  %vm141 = vmand %vm137, %vm139
  %v142 = vsel %vm141, 1, 0
  %v143 = vcvt.s32.f32 %v142
  %v144 = vsel %vm137, 1, 0
  %v145 = vcvt.s32.f32 %v144
  %vm146 = vmand %vm137, %vm140
  %v147 = vsel %vm146, 1, 0
  %v148 = vcvt.s32.f32 %v147
  %v149 = vsel %vm139, 1, 0
  %v150 = vcvt.s32.f32 %v149
  %v151 = vsel %vm140, 1, 0
  %v152 = vcvt.s32.f32 %v151
  %vm153 = vmand %vm138, %vm139
  %v154 = vsel %vm153, 1, 0
  %v155 = vcvt.s32.f32 %v154
  %v156 = vsel %vm138, 1, 0
  %v157 = vcvt.s32.f32 %v156
  %vm158 = vmand %vm138, %vm140
  %v159 = vsel %vm158, 1, 0
  %v160 = vcvt.s32.f32 %v159
  %v161 = vld [vmem:[%s0] sm:$0xff]
  %v162 = vld [vmem:[%s0 + $0x8] sm:$0xff]
  %v163 = vld [vmem:[%s0 + $0x10] sm:$0xff]
  %v164 = vld [vmem:[%s0 + $0x18] sm:$0xff]
  %s165 = scalar_lea.vmem %s0, 32
  %v166 = vld [vmem:[%s165] sm:$0xff]
  %v167 = vld [vmem:[%s165 + $0x8] sm:$0xff]
  %v168 = vld [vmem:[%s165 + $0x10] sm:$0xff]
  %v169 = vld [vmem:[%s165 + $0x18] sm:$0xff]
  %170 = vrot.lane.b32.xlu0 %v161, 17
  %v171 = vpop.permute.xlu0 %170
  %172 = vrot.lane.b32.xlu0 %v163, 17
  %v173 = vpop.permute.xlu0 %172
  %174 = vrot.lane.b32.xlu0 %v162, 17
  %v175 = vpop.permute.xlu0 %174
  %176 = vrot.lane.b32.xlu0 %v164, 17
  %v177 = vpop.permute.xlu0 %176
  %178 = vrot.lane.b32.xlu0 %v166, 17
  %v179 = vpop.permute.xlu0 %178
  %180 = vrot.lane.b32.xlu0 %v168, 17
  %v181 = vpop.permute.xlu0 %180
  %182 = vrot.lane.b32.xlu0 %v167, 17
  %v183 = vpop.permute.xlu0 %182
  %184 = vrot.lane.b32.xlu0 %v169, 17
  %v185 = vpop.permute.xlu0 %184
  %vm186 = vcmp.lt.s32.totalorder %v22, 17
  %v187 = vsel %vm186, %v179, %v183
  %v188 = vsel %vm186, %v181, %v185
  %v189 = vsel %vm186, %v175, %v179
  %v190 = vsel %vm186, %v177, %v181
  %v191 = vsel %vm186, %v171, %v175
  %v192 = vsel %vm186, %v173, %v177
  %v193 = vsel %vm186, %v183, %v171
  %v194 = vsel %vm186, %v185, %v173
  %v195 = vmul.f32 %v193, %v62
  %v196 = vmul.f32 %v191, %v63
  %v197 = vmul.f32 %v189, %v64
  %v198 = vmul.f32 %v187, %v65
  %v199 = vmul.f32 %v194, %v62
  %v200 = vmul.f32 %v192, %v63
  %v201 = vmul.f32 %v190, %v64
  %v202 = vmul.f32 %v188, %v65
  %v203 = vpack.c.bf16 %v199, %v195
  %v204 = vpack.c.bf16 %v200, %v196
  %v205 = vpack.c.bf16 %v201, %v197
  %v206 = vpack.c.bf16 %v202, %v198
  %207 = vrot.lane.b32.xlu0 %v161, 16
  %v208 = vpop.permute.xlu0 %207
  %209 = vrot.lane.b32.xlu0 %v163, 16
  %v210 = vpop.permute.xlu0 %209
  %211 = vrot.lane.b32.xlu0 %v162, 16
  %v212 = vpop.permute.xlu0 %211
  %213 = vrot.lane.b32.xlu0 %v164, 16
  %v214 = vpop.permute.xlu0 %213
  %215 = vrot.lane.b32.xlu0 %v166, 16
  %v216 = vpop.permute.xlu0 %215
  %217 = vrot.lane.b32.xlu0 %v168, 16
  %v218 = vpop.permute.xlu0 %217
  %219 = vrot.lane.b32.xlu0 %v167, 16
  %v220 = vpop.permute.xlu0 %219
  %221 = vrot.lane.b32.xlu0 %v169, 16
  %v222 = vpop.permute.xlu0 %221
  %vm223 = vcmp.lt.s32.totalorder %v22, 16
  %v224 = vsel %vm223, %v216, %v220
  %v225 = vsel %vm223, %v218, %v222
  %v226 = vsel %vm223, %v212, %v216
  %v227 = vsel %vm223, %v214, %v218
  %v228 = vsel %vm223, %v208, %v212
  %v229 = vsel %vm223, %v210, %v214
  %v230 = vsel %vm223, %v220, %v208
  %v231 = vsel %vm223, %v222, %v210
  %v232 = vmul.f32 %v230, %v70
  %v233 = vmul.f32 %v228, %v71
  %v234 = vmul.f32 %v226, %v72
  %v235 = vmul.f32 %v224, %v73
  %v236 = vmul.f32 %v231, %v70
  %v237 = vmul.f32 %v229, %v71
  %v238 = vmul.f32 %v227, %v72
  %v239 = vmul.f32 %v225, %v73
  %v240 = vpack.c.bf16 %v236, %v232
  %v241 = vpack.c.bf16 %v237, %v233
  %v242 = vpack.c.bf16 %v238, %v234
  %v243 = vpack.c.bf16 %v239, %v235
  %244 = vrot.lane.b32.xlu0 %v161, 15
  %v245 = vpop.permute.xlu0 %244
  %246 = vrot.lane.b32.xlu0 %v163, 15
  %v247 = vpop.permute.xlu0 %246
  %248 = vrot.lane.b32.xlu0 %v162, 15
  %v249 = vpop.permute.xlu0 %248
  %250 = vrot.lane.b32.xlu0 %v164, 15
  %v251 = vpop.permute.xlu0 %250
  %252 = vrot.lane.b32.xlu0 %v166, 15
  %v253 = vpop.permute.xlu0 %252
  %254 = vrot.lane.b32.xlu0 %v168, 15
  %v255 = vpop.permute.xlu0 %254
  %256 = vrot.lane.b32.xlu0 %v167, 15
  %v257 = vpop.permute.xlu0 %256
  %258 = vrot.lane.b32.xlu0 %v169, 15
  %v259 = vpop.permute.xlu0 %258
  %vm260 = vcmp.lt.s32.totalorder %v22, 15
  %v261 = vsel %vm260, %v253, %v257
  %v262 = vsel %vm260, %v255, %v259
  %v263 = vsel %vm260, %v249, %v253
  %v264 = vsel %vm260, %v251, %v255
  %v265 = vsel %vm260, %v245, %v249
  %v266 = vsel %vm260, %v247, %v251
  %v267 = vsel %vm260, %v257, %v245
  %v268 = vsel %vm260, %v259, %v247
  %v269 = vmul.f32 %v267, %v82
  %v270 = vmul.f32 %v265, %v83
  %v271 = vmul.f32 %v263, %v84
  %v272 = vmul.f32 %v261, %v85
  %v273 = vmul.f32 %v268, %v82
  %v274 = vmul.f32 %v266, %v83
  %v275 = vmul.f32 %v264, %v84
  %v276 = vmul.f32 %v262, %v85
  %v277 = vpack.c.bf16 %v273, %v269
  %v278 = vpack.c.bf16 %v274, %v270
  %v279 = vpack.c.bf16 %v275, %v271
  %v280 = vpack.c.bf16 %v276, %v272
  %281 = vrot.lane.b32.xlu0 %v161, 1
  %v282 = vpop.permute.xlu0 %281
  %283 = vrot.lane.b32.xlu0 %v163, 1
  %v284 = vpop.permute.xlu0 %283
  %285 = vrot.lane.b32.xlu0 %v162, 1
  %v286 = vpop.permute.xlu0 %285
  %287 = vrot.lane.b32.xlu0 %v164, 1
  %v288 = vpop.permute.xlu0 %287
  %289 = vrot.lane.b32.xlu0 %v166, 1
  %v290 = vpop.permute.xlu0 %289
  %291 = vrot.lane.b32.xlu0 %v168, 1
  %v292 = vpop.permute.xlu0 %291
  %293 = vrot.lane.b32.xlu0 %v167, 1
  %v294 = vpop.permute.xlu0 %293
  %295 = vrot.lane.b32.xlu0 %v169, 1
  %v296 = vpop.permute.xlu0 %295
  %vm297 = vcmp.lt.s32.totalorder %v22, 1
  %v298 = vsel %vm297, %v290, %v294
  %v299 = vsel %vm297, %v292, %v296
  %v300 = vsel %vm297, %v286, %v290
  %v301 = vsel %vm297, %v288, %v292
  %v302 = vsel %vm297, %v282, %v286
  %v303 = vsel %vm297, %v284, %v288
  %v304 = vsel %vm297, %v294, %v282
  %v305 = vsel %vm297, %v296, %v284
  %v306 = vmul.f32 %v304, %v90
  %v307 = vmul.f32 %v302, %v91
  %v308 = vmul.f32 %v300, %v92
  %v309 = vmul.f32 %v298, %v93
  %v310 = vmul.f32 %v305, %v90
  %v311 = vmul.f32 %v303, %v91
  %v312 = vmul.f32 %v301, %v92
  %v313 = vmul.f32 %v299, %v93
  %v314 = vpack.c.bf16 %v310, %v306
  %v315 = vpack.c.bf16 %v311, %v307
  %v316 = vpack.c.bf16 %v312, %v308
  %v317 = vpack.c.bf16 %v313, %v309
  %v318 = vpack.c.bf16 %v163, %v161
  %v319 = vpack.c.bf16 %v164, %v162
  %v320 = vpack.c.bf16 %v168, %v166
  %v321 = vpack.c.bf16 %v169, %v167
  %322 = vrot.lane.b32.xlu0 %v161, 127
  %v323 = vpop.permute.xlu0 %322
  %324 = vrot.lane.b32.xlu0 %v163, 127
  %v325 = vpop.permute.xlu0 %324
  %326 = vrot.lane.b32.xlu0 %v162, 127
  %v327 = vpop.permute.xlu0 %326
  %328 = vrot.lane.b32.xlu0 %v164, 127
  %v329 = vpop.permute.xlu0 %328
  %330 = vrot.lane.b32.xlu0 %v166, 127
  %v331 = vpop.permute.xlu0 %330
  %332 = vrot.lane.b32.xlu0 %v168, 127
  %v333 = vpop.permute.xlu0 %332
  %334 = vrot.lane.b32.xlu0 %v167, 127
  %v335 = vpop.permute.xlu0 %334
  %336 = vrot.lane.b32.xlu0 %v169, 127
  %v337 = vpop.permute.xlu0 %336
  %vm338 = vcmp.lt.s32.totalorder %v22, 127
  %v339 = vsel %vm338, %v331, %v335
  %v340 = vsel %vm338, %v333, %v337
  %v341 = vsel %vm338, %v327, %v331
  %v342 = vsel %vm338, %v329, %v333
  %v343 = vsel %vm338, %v323, %v327
  %v344 = vsel %vm338, %v325, %v329
  %v345 = vsel %vm338, %v335, %v323
  %v346 = vsel %vm338, %v337, %v325
  %v347 = vmul.f32 %v343, %v98
  %v348 = vmul.f32 %v341, %v99
  %v349 = vmul.f32 %v339, %v100
  %v350 = vmul.f32 %v345, %v101
  %v351 = vmul.f32 %v344, %v98
  %v352 = vmul.f32 %v342, %v99
  %v353 = vmul.f32 %v340, %v100
  %v354 = vmul.f32 %v346, %v101
  %v355 = vpack.c.bf16 %v351, %v347
  %v356 = vpack.c.bf16 %v352, %v348
  %v357 = vpack.c.bf16 %v353, %v349
  %v358 = vpack.c.bf16 %v354, %v350
  %359 = vrot.lane.b32.xlu0 %v161, 113
  %v360 = vpop.permute.xlu0 %359
  %361 = vrot.lane.b32.xlu0 %v163, 113
  %v362 = vpop.permute.xlu0 %361
  %363 = vrot.lane.b32.xlu0 %v162, 113
  %v364 = vpop.permute.xlu0 %363
  %365 = vrot.lane.b32.xlu0 %v164, 113
  %v366 = vpop.permute.xlu0 %365
  %367 = vrot.lane.b32.xlu0 %v166, 113
  %v368 = vpop.permute.xlu0 %367
  %369 = vrot.lane.b32.xlu0 %v168, 113
  %v370 = vpop.permute.xlu0 %369
  %371 = vrot.lane.b32.xlu0 %v167, 113
  %v372 = vpop.permute.xlu0 %371
  %373 = vrot.lane.b32.xlu0 %v169, 113
  %v374 = vpop.permute.xlu0 %373
  %vm375 = vcmp.lt.s32.totalorder %v22, 113
  %v376 = vsel %vm375, %v368, %v372
  %v377 = vsel %vm375, %v370, %v374
  %v378 = vsel %vm375, %v364, %v368
  %v379 = vsel %vm375, %v366, %v370
  %v380 = vsel %vm375, %v360, %v364
  %v381 = vsel %vm375, %v362, %v366
  %v382 = vsel %vm375, %v372, %v360
  %v383 = vsel %vm375, %v374, %v362
  %v384 = vmul.f32 %v380, %v110
  %v385 = vmul.f32 %v378, %v111
  %v386 = vmul.f32 %v376, %v112
  %v387 = vmul.f32 %v382, %v113
  %v388 = vmul.f32 %v381, %v110
  %v389 = vmul.f32 %v379, %v111
  %v390 = vmul.f32 %v377, %v112
  %v391 = vmul.f32 %v383, %v113
  %v392 = vpack.c.bf16 %v388, %v384
  %v393 = vpack.c.bf16 %v389, %v385
  %v394 = vpack.c.bf16 %v390, %v386
  %v395 = vpack.c.bf16 %v391, %v387
  %396 = vrot.lane.b32.xlu0 %v161, 112
  %v397 = vpop.permute.xlu0 %396
  %398 = vrot.lane.b32.xlu0 %v163, 112
  %v399 = vpop.permute.xlu0 %398
  %400 = vrot.lane.b32.xlu0 %v162, 112
  %v401 = vpop.permute.xlu0 %400
  %402 = vrot.lane.b32.xlu0 %v164, 112
  %v403 = vpop.permute.xlu0 %402
  %404 = vrot.lane.b32.xlu0 %v166, 112
  %v405 = vpop.permute.xlu0 %404
  %406 = vrot.lane.b32.xlu0 %v168, 112
  %v407 = vpop.permute.xlu0 %406
  %408 = vrot.lane.b32.xlu0 %v167, 112
  %v409 = vpop.permute.xlu0 %408
  %410 = vrot.lane.b32.xlu0 %v169, 112
  %v411 = vpop.permute.xlu0 %410
  %vm412 = vcmp.lt.s32.totalorder %v22, 112
  %v413 = vsel %vm412, %v405, %v409
  %v414 = vsel %vm412, %v407, %v411
  %v415 = vsel %vm412, %v401, %v405
  %v416 = vsel %vm412, %v403, %v407
  %v417 = vsel %vm412, %v397, %v401
  %v418 = vsel %vm412, %v399, %v403
  %v419 = vsel %vm412, %v409, %v397
  %v420 = vsel %vm412, %v411, %v399
  %v421 = vmul.f32 %v417, %v118
  %v422 = vmul.f32 %v415, %v119
  %v423 = vmul.f32 %v413, %v120
  %v424 = vmul.f32 %v419, %v121
  %v425 = vmul.f32 %v418, %v118
  %v426 = vmul.f32 %v416, %v119
  %v427 = vmul.f32 %v414, %v120
  %v428 = vmul.f32 %v420, %v121
  %v429 = vpack.c.bf16 %v425, %v421
  %v430 = vpack.c.bf16 %v426, %v422
  %v431 = vpack.c.bf16 %v427, %v423
  %v432 = vpack.c.bf16 %v428, %v424
  %433 = vrot.lane.b32.xlu0 %v161, 111
  %v434 = vpop.permute.xlu0 %433
  %435 = vrot.lane.b32.xlu0 %v163, 111
  %v436 = vpop.permute.xlu0 %435
  %437 = vrot.lane.b32.xlu0 %v162, 111
  %v438 = vpop.permute.xlu0 %437
  %439 = vrot.lane.b32.xlu0 %v164, 111
  %v440 = vpop.permute.xlu0 %439
  %441 = vrot.lane.b32.xlu0 %v166, 111
  %v442 = vpop.permute.xlu0 %441
  %443 = vrot.lane.b32.xlu0 %v168, 111
  %v444 = vpop.permute.xlu0 %443
  %445 = vrot.lane.b32.xlu0 %v167, 111
  %v446 = vpop.permute.xlu0 %445
  %447 = vrot.lane.b32.xlu0 %v169, 111
  %v448 = vpop.permute.xlu0 %447
  %vm449 = vcmp.lt.s32.totalorder %v22, 111
  %v450 = vsel %vm449, %v442, %v446
  %v451 = vsel %vm449, %v444, %v448
  %v452 = vsel %vm449, %v438, %v442
  %v453 = vsel %vm449, %v440, %v444
  %v454 = vsel %vm449, %v434, %v438
  %v455 = vsel %vm449, %v436, %v440
  %v456 = vsel %vm449, %v446, %v434
  %v457 = vsel %vm449, %v448, %v436
  %v458 = vmul.f32 %v454, %v130
  %v459 = vmul.f32 %v452, %v131
  %v460 = vmul.f32 %v450, %v132
  %v461 = vmul.f32 %v456, %v133
  %v462 = vmul.f32 %v455, %v130
  %v463 = vmul.f32 %v453, %v131
  %v464 = vmul.f32 %v451, %v132
  %v465 = vmul.f32 %v457, %v133
  %v466 = vpack.c.bf16 %v462, %v458
  %v467 = vpack.c.bf16 %v463, %v459
  %v468 = vpack.c.bf16 %v464, %v460
  %v469 = vpack.c.bf16 %v465, %v461
  %v470 = vld [vmem:[%s1] sm:$0xff]
  %v471 = vld [vmem:[%s1 + $0xc] sm:$0xff]
  %v472 = vld [vmem:[%s2] sm:$0xff]
  %v473 = vld [vmem:[%s2 + $0x8] sm:$0xff]
  %475 = vset.pattern.permute.xlu0 0
  %476 = vperm.xlu0 %475, %v472
  %v477 = vpop.permute.xlu0 %476
  %480 = vset.pattern.permute.xlu0 0
  %481 = vperm.xlu0 %480, %v473
  %v482 = vpop.permute.xlu0 %481
  %v486 = vunpack.c.l.b16 %v470
  %v487 = vunpack.c.h.b16 %v470
  %v488 = vunpack.c.l.b16 %v471
  %v489 = vunpack.c.h.b16 %v471
  %v490 = vpack.c.b16 %v488, %v486
  %v491 = vpack.c.b16 %v489, %v487
  %vm493 = vcmask 130048
  %v495 = vsel %vm493, %v491, 0
  %497 = vmatprep.subr.bf16.mxu0 %v204
  %498 = vmatpush1.bf16.msra.mxu0 %v203
  %499 = vmatprep.subr.bf16.mxu0 %v241
  %500 = vmatpush1.bf16.msra.mxu0 %v240
  %501 = vmatprep.subr.bf16.mxu0 %v278
  %502 = vmatpush1.bf16.msra.mxu0 %v277
  %503 = vmatprep.subr.bf16.mxu0 %v315
  %504 = vmatpush1.bf16.msra.mxu0 %v314
  %505 = vmatprep.subr.bf16.mxu0 %v319
  %506 = vmatpush1.bf16.msra.mxu0 %v318
  %507 = vmatprep.subr.bf16.mxu0 %v356
  %508 = vmatpush1.bf16.msra.mxu0 %v355
  %509 = vmatprep.subr.bf16.mxu0 %v393
  %510 = vmatpush1.bf16.msra.mxu0 %v392
  %511 = vmatprep.subr.bf16.mxu0 %v430
  %512 = vmatpush1.bf16.msra.mxu0 %v429
  %513 = vmatprep.subr.bf16.mxu0 %v467
  %514 = vmatpush1.bf16.msra.mxu0 %v466
  %515 = vmatprep.subr.bf16.mxu0 0
  %516 = vmatpush1.bf16.msra.mxu0 0
  %517 = vmatprep.subr.bf16.mxu0 0
  %518 = vmatpush1.bf16.msra.mxu0 0
  %519 = vmatprep.subr.bf16.mxu0 0
  %520 = vmatpush1.bf16.msra.mxu0 0
  %521 = vmatprep.subr.bf16.mxu0 0
  %522 = vmatpush1.bf16.msra.mxu0 0
  %523 = vmatprep.subr.bf16.mxu0 0
  %524 = vmatpush1.bf16.msra.mxu0 0
  %525 = vmatprep.subr.bf16.mxu0 0
  %526 = vmatpush1.bf16.msra.mxu0 0
  %527 = vmatprep.subr.bf16.mxu0 0
  %528 = vmatpush1.bf16.msra.mxu0 0
  %529 = vmatprep.mubr.bf16.mxu0 %v495
  %530 = vmatmul.mubr.bf16.gmra.mrb[0].mxu0 %v490
  %v531 = vpop.f32.mrb[0].mxu0
  %v532 = vadd.f32 %v477, %v531
  %v533 = vpop.f32.mrb[0].mxu0
  %v534 = vadd.f32 %v477, %v533
  %v535 = vpop.f32.mrb[0].mxu0
  %v536 = vadd.f32 %v482, %v535
  %v537 = vpop.f32.mrb[0].mxu0
  %v538 = vadd.f32 %v482, %v537
  %539 = vdwg.mxu0
  %540 = vmatprep.subr.bf16.mxu0 %v206
  %541 = vmatpush1.bf16.msra.mxu0 %v205
  %542 = vmatprep.subr.bf16.mxu0 %v243
  %543 = vmatpush1.bf16.msra.mxu0 %v242
  %544 = vmatprep.subr.bf16.mxu0 %v280
  %545 = vmatpush1.bf16.msra.mxu0 %v279
  %546 = vmatprep.subr.bf16.mxu0 %v317
  %547 = vmatpush1.bf16.msra.mxu0 %v316
  %548 = vmatprep.subr.bf16.mxu0 %v321
  %549 = vmatpush1.bf16.msra.mxu0 %v320
  %550 = vmatprep.subr.bf16.mxu0 %v358
  %551 = vmatpush1.bf16.msra.mxu0 %v357
  %552 = vmatprep.subr.bf16.mxu0 %v395
  %553 = vmatpush1.bf16.msra.mxu0 %v394
  %554 = vmatprep.subr.bf16.mxu0 %v432
  %555 = vmatpush1.bf16.msra.mxu0 %v431
  %556 = vmatprep.subr.bf16.mxu0 %v469
  %557 = vmatpush1.bf16.msra.mxu0 %v468
  %558 = vmatprep.subr.bf16.mxu0 0
  %559 = vmatpush1.bf16.msra.mxu0 0
  %560 = vmatprep.subr.bf16.mxu0 0
  %561 = vmatpush1.bf16.msra.mxu0 0
  %562 = vmatprep.subr.bf16.mxu0 0
  %563 = vmatpush1.bf16.msra.mxu0 0
  %564 = vmatprep.subr.bf16.mxu0 0
  %565 = vmatpush1.bf16.msra.mxu0 0
  %566 = vmatprep.subr.bf16.mxu0 0
  %567 = vmatpush1.bf16.msra.mxu0 0
  %568 = vmatprep.subr.bf16.mxu0 0
  %569 = vmatpush1.bf16.msra.mxu0 0
  %570 = vmatprep.subr.bf16.mxu0 0
  %571 = vmatpush1.bf16.msra.mxu0 0
  %572 = vmatprep.mubr.bf16.mxu0 %v495
  %573 = vmatmul.mubr.bf16.gmra.mrb[0].mxu0 %v490
  %v574 = vpop.f32.mrb[0].mxu0
  %v575 = vadd.f32 %v477, %v574
  %v576 = vpop.f32.mrb[0].mxu0
  %v577 = vadd.f32 %v477, %v576
  %v578 = vpop.f32.mrb[0].mxu0
  %v579 = vadd.f32 %v482, %v578
  %v580 = vpop.f32.mrb[0].mxu0
  %v581 = vadd.f32 %v482, %v580
  %582 = vdwg.mxu0
  %v583 = vmax.f32 %v532, 0.0
  %v584 = vmax.f32 %v534, 0.0
  %v585 = vmax.f32 %v575, 0.0
  %v586 = vmax.f32 %v577, 0.0
  %v587 = vmax.f32 %v536, 0.0
  %v588 = vmax.f32 %v538, 0.0
  %v589 = vmax.f32 %v579, 0.0
  %v590 = vmax.f32 %v581, 0.0
  %591 = vrot.lane.b32.xlu0 %v583, 17
  %v592 = vpop.permute.xlu0 %591
  %593 = vrot.lane.b32.xlu0 %v587, 17
  %v594 = vpop.permute.xlu0 %593
  %595 = vrot.lane.b32.xlu0 %v584, 17
  %v596 = vpop.permute.xlu0 %595
  %597 = vrot.lane.b32.xlu0 %v588, 17
  %v598 = vpop.permute.xlu0 %597
  %599 = vrot.lane.b32.xlu0 %v585, 17
  %v600 = vpop.permute.xlu0 %599
  %601 = vrot.lane.b32.xlu0 %v589, 17
  %v602 = vpop.permute.xlu0 %601
  %603 = vrot.lane.b32.xlu0 %v586, 17
  %v604 = vpop.permute.xlu0 %603
  %605 = vrot.lane.b32.xlu0 %v590, 17
  %v606 = vpop.permute.xlu0 %605
  %v607 = vsel %vm186, %v600, %v604
  %v608 = vsel %vm186, %v602, %v606
  %v609 = vsel %vm186, %v596, %v600
  %v610 = vsel %vm186, %v598, %v602
  %v611 = vsel %vm186, %v592, %v596
  %v612 = vsel %vm186, %v594, %v598
  %v613 = vsel %vm186, %v604, %v592
  %v614 = vsel %vm186, %v606, %v594
  %v615 = vmul.f32 %v613, %v62
  %v616 = vmul.f32 %v611, %v63
  %v617 = vmul.f32 %v609, %v64
  %v618 = vmul.f32 %v607, %v65
  %v619 = vmul.f32 %v614, %v62
  %v620 = vmul.f32 %v612, %v63
  %v621 = vmul.f32 %v610, %v64
  %v622 = vmul.f32 %v608, %v65
  %v623 = vpack.c.bf16 %v619, %v615
  %v624 = vpack.c.bf16 %v620, %v616
  %v625 = vpack.c.bf16 %v621, %v617
  %v626 = vpack.c.bf16 %v622, %v618
  %627 = vrot.lane.b32.xlu0 %v583, 16
  %v628 = vpop.permute.xlu0 %627
  %629 = vrot.lane.b32.xlu0 %v587, 16
  %v630 = vpop.permute.xlu0 %629
  %631 = vrot.lane.b32.xlu0 %v584, 16
  %v632 = vpop.permute.xlu0 %631
  %633 = vrot.lane.b32.xlu0 %v588, 16
  %v634 = vpop.permute.xlu0 %633
  %635 = vrot.lane.b32.xlu0 %v585, 16
  %v636 = vpop.permute.xlu0 %635
  %637 = vrot.lane.b32.xlu0 %v589, 16
  %v638 = vpop.permute.xlu0 %637
  %639 = vrot.lane.b32.xlu0 %v586, 16
  %v640 = vpop.permute.xlu0 %639
  %641 = vrot.lane.b32.xlu0 %v590, 16
  %v642 = vpop.permute.xlu0 %641
  %v643 = vsel %vm223, %v636, %v640
  %v644 = vsel %vm223, %v638, %v642
  %v645 = vsel %vm223, %v632, %v636
  %v646 = vsel %vm223, %v634, %v638
  %v647 = vsel %vm223, %v628, %v632
  %v648 = vsel %vm223, %v630, %v634
  %v649 = vsel %vm223, %v640, %v628
  %v650 = vsel %vm223, %v642, %v630
  %v651 = vmul.f32 %v649, %v70
  %v652 = vmul.f32 %v647, %v71
  %v653 = vmul.f32 %v645, %v72
  %v654 = vmul.f32 %v643, %v73
  %v655 = vmul.f32 %v650, %v70
  %v656 = vmul.f32 %v648, %v71
  %v657 = vmul.f32 %v646, %v72
  %v658 = vmul.f32 %v644, %v73
  %v659 = vpack.c.bf16 %v655, %v651
  %v660 = vpack.c.bf16 %v656, %v652
  %v661 = vpack.c.bf16 %v657, %v653
  %v662 = vpack.c.bf16 %v658, %v654
  %663 = vrot.lane.b32.xlu0 %v583, 15
  %v664 = vpop.permute.xlu0 %663
  %665 = vrot.lane.b32.xlu0 %v587, 15
  %v666 = vpop.permute.xlu0 %665
  %667 = vrot.lane.b32.xlu0 %v584, 15
  %v668 = vpop.permute.xlu0 %667
  %669 = vrot.lane.b32.xlu0 %v588, 15
  %v670 = vpop.permute.xlu0 %669
  %671 = vrot.lane.b32.xlu0 %v585, 15
  %v672 = vpop.permute.xlu0 %671
  %673 = vrot.lane.b32.xlu0 %v589, 15
  %v674 = vpop.permute.xlu0 %673
  %675 = vrot.lane.b32.xlu0 %v586, 15
  %v676 = vpop.permute.xlu0 %675
  %677 = vrot.lane.b32.xlu0 %v590, 15
  %v678 = vpop.permute.xlu0 %677
  %v679 = vsel %vm260, %v672, %v676
  %v680 = vsel %vm260, %v674, %v678
  %v681 = vsel %vm260, %v668, %v672
  %v682 = vsel %vm260, %v670, %v674
  %v683 = vsel %vm260, %v664, %v668
  %v684 = vsel %vm260, %v666, %v670
  %v685 = vsel %vm260, %v676, %v664
  %v686 = vsel %vm260, %v678, %v666
  %v687 = vmul.f32 %v685, %v82
  %v688 = vmul.f32 %v683, %v83
  %v689 = vmul.f32 %v681, %v84
  %v690 = vmul.f32 %v679, %v85
  %v691 = vmul.f32 %v686, %v82
  %v692 = vmul.f32 %v684, %v83
  %v693 = vmul.f32 %v682, %v84
  %v694 = vmul.f32 %v680, %v85
  %v695 = vpack.c.bf16 %v691, %v687
  %v696 = vpack.c.bf16 %v692, %v688
  %v697 = vpack.c.bf16 %v693, %v689
  %v698 = vpack.c.bf16 %v694, %v690
  %699 = vrot.lane.b32.xlu0 %v583, 1
  %v700 = vpop.permute.xlu0 %699
  %701 = vrot.lane.b32.xlu0 %v587, 1
  %v702 = vpop.permute.xlu0 %701
  %703 = vrot.lane.b32.xlu0 %v584, 1
  %v704 = vpop.permute.xlu0 %703
  %705 = vrot.lane.b32.xlu0 %v588, 1
  %v706 = vpop.permute.xlu0 %705
  %707 = vrot.lane.b32.xlu0 %v585, 1
  %v708 = vpop.permute.xlu0 %707
  %709 = vrot.lane.b32.xlu0 %v589, 1
  %v710 = vpop.permute.xlu0 %709
  %711 = vrot.lane.b32.xlu0 %v586, 1
  %v712 = vpop.permute.xlu0 %711
  %713 = vrot.lane.b32.xlu0 %v590, 1
  %v714 = vpop.permute.xlu0 %713
  %v715 = vsel %vm297, %v708, %v712
  %v716 = vsel %vm297, %v710, %v714
  %v717 = vsel %vm297, %v704, %v708
  %v718 = vsel %vm297, %v706, %v710
  %v719 = vsel %vm297, %v700, %v704
  %v720 = vsel %vm297, %v702, %v706
  %v721 = vsel %vm297, %v712, %v700
  %v722 = vsel %vm297, %v714, %v702
  %v723 = vmul.f32 %v721, %v90
  %v724 = vmul.f32 %v719, %v91
  %v725 = vmul.f32 %v717, %v92
  %v726 = vmul.f32 %v715, %v93
  %v727 = vmul.f32 %v722, %v90
  %v728 = vmul.f32 %v720, %v91
  %v729 = vmul.f32 %v718, %v92
  %v730 = vmul.f32 %v716, %v93
  %v731 = vpack.c.bf16 %v727, %v723
  %v732 = vpack.c.bf16 %v728, %v724
  %v733 = vpack.c.bf16 %v729, %v725
  %v734 = vpack.c.bf16 %v730, %v726
  %v735 = vpack.c.bf16 %v587, %v583
  %v736 = vpack.c.bf16 %v588, %v584
  %v737 = vpack.c.bf16 %v589, %v585
  %v738 = vpack.c.bf16 %v590, %v586
  %739 = vrot.lane.b32.xlu0 %v583, 127
  %v740 = vpop.permute.xlu0 %739
  %741 = vrot.lane.b32.xlu0 %v587, 127
  %v742 = vpop.permute.xlu0 %741
  %743 = vrot.lane.b32.xlu0 %v584, 127
  %v744 = vpop.permute.xlu0 %743
  %745 = vrot.lane.b32.xlu0 %v588, 127
  %v746 = vpop.permute.xlu0 %745
  %747 = vrot.lane.b32.xlu0 %v585, 127
  %v748 = vpop.permute.xlu0 %747
  %749 = vrot.lane.b32.xlu0 %v589, 127
  %v750 = vpop.permute.xlu0 %749
  %751 = vrot.lane.b32.xlu0 %v586, 127
  %v752 = vpop.permute.xlu0 %751
  %753 = vrot.lane.b32.xlu0 %v590, 127
  %v754 = vpop.permute.xlu0 %753
  %v755 = vsel %vm338, %v748, %v752
  %v756 = vsel %vm338, %v750, %v754
  %v757 = vsel %vm338, %v744, %v748
  %v758 = vsel %vm338, %v746, %v750
  %v759 = vsel %vm338, %v740, %v744
  %v760 = vsel %vm338, %v742, %v746
  %v761 = vsel %vm338, %v752, %v740
  %v762 = vsel %vm338, %v754, %v742
  %v763 = vmul.f32 %v759, %v98
  %v764 = vmul.f32 %v757, %v99
  %v765 = vmul.f32 %v755, %v100
  %v766 = vmul.f32 %v761, %v101
  %v767 = vmul.f32 %v760, %v98
  %v768 = vmul.f32 %v758, %v99
  %v769 = vmul.f32 %v756, %v100
  %v770 = vmul.f32 %v762, %v101
  %v771 = vpack.c.bf16 %v767, %v763
  %v772 = vpack.c.bf16 %v768, %v764
  %v773 = vpack.c.bf16 %v769, %v765
  %v774 = vpack.c.bf16 %v770, %v766
  %775 = vrot.lane.b32.xlu0 %v583, 113
  %v776 = vpop.permute.xlu0 %775
  %777 = vrot.lane.b32.xlu0 %v587, 113
  %v778 = vpop.permute.xlu0 %777
  %779 = vrot.lane.b32.xlu0 %v584, 113
  %v780 = vpop.permute.xlu0 %779
  %781 = vrot.lane.b32.xlu0 %v588, 113
  %v782 = vpop.permute.xlu0 %781
  %783 = vrot.lane.b32.xlu0 %v585, 113
  %v784 = vpop.permute.xlu0 %783
  %785 = vrot.lane.b32.xlu0 %v589, 113
  %v786 = vpop.permute.xlu0 %785
  %787 = vrot.lane.b32.xlu0 %v586, 113
  %v788 = vpop.permute.xlu0 %787
  %789 = vrot.lane.b32.xlu0 %v590, 113
  %v790 = vpop.permute.xlu0 %789
  %v791 = vsel %vm375, %v784, %v788
  %v792 = vsel %vm375, %v786, %v790
  %v793 = vsel %vm375, %v780, %v784
  %v794 = vsel %vm375, %v782, %v786
  %v795 = vsel %vm375, %v776, %v780
  %v796 = vsel %vm375, %v778, %v782
  %v797 = vsel %vm375, %v788, %v776
  %v798 = vsel %vm375, %v790, %v778
  %v799 = vmul.f32 %v795, %v110
  %v800 = vmul.f32 %v793, %v111
  %v801 = vmul.f32 %v791, %v112
  %v802 = vmul.f32 %v797, %v113
  %v803 = vmul.f32 %v796, %v110
  %v804 = vmul.f32 %v794, %v111
  %v805 = vmul.f32 %v792, %v112
  %v806 = vmul.f32 %v798, %v113
  %v807 = vpack.c.bf16 %v803, %v799
  %v808 = vpack.c.bf16 %v804, %v800
  %v809 = vpack.c.bf16 %v805, %v801
  %v810 = vpack.c.bf16 %v806, %v802
  %811 = vrot.lane.b32.xlu0 %v583, 112
  %v812 = vpop.permute.xlu0 %811
  %813 = vrot.lane.b32.xlu0 %v587, 112
  %v814 = vpop.permute.xlu0 %813
  %815 = vrot.lane.b32.xlu0 %v584, 112
  %v816 = vpop.permute.xlu0 %815
  %817 = vrot.lane.b32.xlu0 %v588, 112
  %v818 = vpop.permute.xlu0 %817
  %819 = vrot.lane.b32.xlu0 %v585, 112
  %v820 = vpop.permute.xlu0 %819
  %821 = vrot.lane.b32.xlu0 %v589, 112
  %v822 = vpop.permute.xlu0 %821
  %823 = vrot.lane.b32.xlu0 %v586, 112
  %v824 = vpop.permute.xlu0 %823
  %825 = vrot.lane.b32.xlu0 %v590, 112
  %v826 = vpop.permute.xlu0 %825
  %v827 = vsel %vm412, %v820, %v824
  %v828 = vsel %vm412, %v822, %v826
  %v829 = vsel %vm412, %v816, %v820
  %v830 = vsel %vm412, %v818, %v822
  %v831 = vsel %vm412, %v812, %v816
  %v832 = vsel %vm412, %v814, %v818
  %v833 = vsel %vm412, %v824, %v812
  %v834 = vsel %vm412, %v826, %v814
  %v835 = vmul.f32 %v831, %v118
  %v836 = vmul.f32 %v829, %v119
  %v837 = vmul.f32 %v827, %v120
  %v838 = vmul.f32 %v833, %v121
  %v839 = vmul.f32 %v832, %v118
  %v840 = vmul.f32 %v830, %v119
  %v841 = vmul.f32 %v828, %v120
  %v842 = vmul.f32 %v834, %v121
  %v843 = vpack.c.bf16 %v839, %v835
  %v844 = vpack.c.bf16 %v840, %v836
  %v845 = vpack.c.bf16 %v841, %v837
  %v846 = vpack.c.bf16 %v842, %v838
  %847 = vrot.lane.b32.xlu0 %v583, 111
  %v848 = vpop.permute.xlu0 %847
  %849 = vrot.lane.b32.xlu0 %v587, 111
  %v850 = vpop.permute.xlu0 %849
  %851 = vrot.lane.b32.xlu0 %v584, 111
  %v852 = vpop.permute.xlu0 %851
  %853 = vrot.lane.b32.xlu0 %v588, 111
  %v854 = vpop.permute.xlu0 %853
  %855 = vrot.lane.b32.xlu0 %v585, 111
  %v856 = vpop.permute.xlu0 %855
  %857 = vrot.lane.b32.xlu0 %v589, 111
  %v858 = vpop.permute.xlu0 %857
  %859 = vrot.lane.b32.xlu0 %v586, 111
  %v860 = vpop.permute.xlu0 %859
  %861 = vrot.lane.b32.xlu0 %v590, 111
  %v862 = vpop.permute.xlu0 %861
  %v863 = vsel %vm449, %v856, %v860
  %v864 = vsel %vm449, %v858, %v862
  %v865 = vsel %vm449, %v852, %v856
  %v866 = vsel %vm449, %v854, %v858
  %v867 = vsel %vm449, %v848, %v852
  %v868 = vsel %vm449, %v850, %v854
  %v869 = vsel %vm449, %v860, %v848
  %v870 = vsel %vm449, %v862, %v850
  %v871 = vmul.f32 %v867, %v130
  %v872 = vmul.f32 %v865, %v131
  %v873 = vmul.f32 %v863, %v132
  %v874 = vmul.f32 %v869, %v133
  %v875 = vmul.f32 %v868, %v130
  %v876 = vmul.f32 %v866, %v131
  %v877 = vmul.f32 %v864, %v132
  %v878 = vmul.f32 %v870, %v133
  %v879 = vpack.c.bf16 %v875, %v871
  %v880 = vpack.c.bf16 %v876, %v872
  %v881 = vpack.c.bf16 %v877, %v873
  %v882 = vpack.c.bf16 %v878, %v874
  %v883 = vld [vmem:[%s1 + $0x18] sm:$0xff]
  %v884 = vld [vmem:[%s1 + $0x24] sm:$0xff]
  %v885 = vld [vmem:[%s2 + $0x10] sm:$0xff]
  %v886 = vld [vmem:[%s2 + $0x18] sm:$0xff]
  %888 = vset.pattern.permute.xlu0 0
  %889 = vperm.xlu0 %888, %v885
  %v890 = vpop.permute.xlu0 %889
  %893 = vset.pattern.permute.xlu0 0
  %894 = vperm.xlu0 %893, %v886
  %v895 = vpop.permute.xlu0 %894
  %v899 = vunpack.c.l.b16 %v883
  %v900 = vunpack.c.h.b16 %v883
  %v901 = vunpack.c.l.b16 %v884
  %v902 = vunpack.c.h.b16 %v884
  %v903 = vpack.c.b16 %v901, %v899
  %v904 = vpack.c.b16 %v902, %v900
  %v907 = vsel %vm493, %v904, 0
  %909 = vmatprep.subr.bf16.mxu0 %v624
  %910 = vmatpush1.bf16.msra.mxu0 %v623
  %911 = vmatprep.subr.bf16.mxu0 %v660
  %912 = vmatpush1.bf16.msra.mxu0 %v659
  %913 = vmatprep.subr.bf16.mxu0 %v696
  %914 = vmatpush1.bf16.msra.mxu0 %v695
  %915 = vmatprep.subr.bf16.mxu0 %v732
  %916 = vmatpush1.bf16.msra.mxu0 %v731
  %917 = vmatprep.subr.bf16.mxu0 %v736
  %918 = vmatpush1.bf16.msra.mxu0 %v735
  %919 = vmatprep.subr.bf16.mxu0 %v772
  %920 = vmatpush1.bf16.msra.mxu0 %v771
  %921 = vmatprep.subr.bf16.mxu0 %v808
  %922 = vmatpush1.bf16.msra.mxu0 %v807
  %923 = vmatprep.subr.bf16.mxu0 %v844
  %924 = vmatpush1.bf16.msra.mxu0 %v843
  %925 = vmatprep.subr.bf16.mxu0 %v880
  %926 = vmatpush1.bf16.msra.mxu0 %v879
  %927 = vmatprep.subr.bf16.mxu0 0
  %928 = vmatpush1.bf16.msra.mxu0 0
  %929 = vmatprep.subr.bf16.mxu0 0
  %930 = vmatpush1.bf16.msra.mxu0 0
  %931 = vmatprep.subr.bf16.mxu0 0
  %932 = vmatpush1.bf16.msra.mxu0 0
  %933 = vmatprep.subr.bf16.mxu0 0
  %934 = vmatpush1.bf16.msra.mxu0 0
  %935 = vmatprep.subr.bf16.mxu0 0
  %936 = vmatpush1.bf16.msra.mxu0 0
  %937 = vmatprep.subr.bf16.mxu0 0
  %938 = vmatpush1.bf16.msra.mxu0 0
  %939 = vmatprep.subr.bf16.mxu0 0
  %940 = vmatpush1.bf16.msra.mxu0 0
  %941 = vmatprep.mubr.bf16.mxu0 %v907
  %942 = vmatmul.mubr.bf16.gmra.mrb[0].mxu0 %v903
  %v943 = vpop.f32.mrb[0].mxu0
  %v944 = vadd.f32 %v890, %v943
  %v945 = vpop.f32.mrb[0].mxu0
  %v946 = vadd.f32 %v890, %v945
  %v947 = vpop.f32.mrb[0].mxu0
  %v948 = vadd.f32 %v895, %v947
  %v949 = vpop.f32.mrb[0].mxu0
  %v950 = vadd.f32 %v895, %v949
  %951 = vdwg.mxu0
  %952 = vmatprep.subr.bf16.mxu0 %v626
  %953 = vmatpush1.bf16.msra.mxu0 %v625
  %954 = vmatprep.subr.bf16.mxu0 %v662
  %955 = vmatpush1.bf16.msra.mxu0 %v661
  %956 = vmatprep.subr.bf16.mxu0 %v698
  %957 = vmatpush1.bf16.msra.mxu0 %v697
  %958 = vmatprep.subr.bf16.mxu0 %v734
  %959 = vmatpush1.bf16.msra.mxu0 %v733
  %960 = vmatprep.subr.bf16.mxu0 %v738
  %961 = vmatpush1.bf16.msra.mxu0 %v737
  %962 = vmatprep.subr.bf16.mxu0 %v774
  %963 = vmatpush1.bf16.msra.mxu0 %v773
  %964 = vmatprep.subr.bf16.mxu0 %v810
  %965 = vmatpush1.bf16.msra.mxu0 %v809
  %966 = vmatprep.subr.bf16.mxu0 %v846
  %967 = vmatpush1.bf16.msra.mxu0 %v845
  %968 = vmatprep.subr.bf16.mxu0 %v882
  %969 = vmatpush1.bf16.msra.mxu0 %v881
  %970 = vmatprep.subr.bf16.mxu0 0
  %971 = vmatpush1.bf16.msra.mxu0 0
  %972 = vmatprep.subr.bf16.mxu0 0
  %973 = vmatpush1.bf16.msra.mxu0 0
  %974 = vmatprep.subr.bf16.mxu0 0
  %975 = vmatpush1.bf16.msra.mxu0 0
  %976 = vmatprep.subr.bf16.mxu0 0
  %977 = vmatpush1.bf16.msra.mxu0 0
  %978 = vmatprep.subr.bf16.mxu0 0
  %979 = vmatpush1.bf16.msra.mxu0 0
  %980 = vmatprep.subr.bf16.mxu0 0
  %981 = vmatpush1.bf16.msra.mxu0 0
  %982 = vmatprep.subr.bf16.mxu0 0
  %983 = vmatpush1.bf16.msra.mxu0 0
  %984 = vmatprep.mubr.bf16.mxu0 %v907
  %985 = vmatmul.mubr.bf16.gmra.mrb[0].mxu0 %v903
  %v986 = vpop.f32.mrb[0].mxu0
  %v987 = vadd.f32 %v890, %v986
  %v988 = vpop.f32.mrb[0].mxu0
  %v989 = vadd.f32 %v890, %v988
  %v990 = vpop.f32.mrb[0].mxu0
  %v991 = vadd.f32 %v895, %v990
  %v992 = vpop.f32.mrb[0].mxu0
  %v993 = vadd.f32 %v895, %v992
  %994 = vdwg.mxu0
  %v995 = vmax.f32 %v944, 0.0
  %v996 = vmax.f32 %v946, 0.0
  %v997 = vmax.f32 %v987, 0.0
  %v998 = vmax.f32 %v989, 0.0
  %v999 = vmax.f32 %v948, 0.0
  %v1000 = vmax.f32 %v950, 0.0
  %v1001 = vmax.f32 %v991, 0.0
  %v1002 = vmax.f32 %v993, 0.0
  %v1003 = vld [vmem:[%s1 + $0x30] sm:$0xf]
  %v1004 = vld [vmem:[%s1 + $0x3c] sm:$0xf]
  %v1005 = vpack.c.bf16 %v999, %v995
  %v1006 = vpack.c.bf16 %v1000, %v996
  %v1007 = vpack.c.bf16 %v1001, %v997
  %v1008 = vpack.c.bf16 %v1002, %v998
  %v1009 = vld [vmem:[%s2 + $0x20] sm:$0xff]
  %v1010 = vld [vmem:[%s2 + $0x28] sm:$0xff]
  %1012 = vset.pattern.permute.xlu0 0
  %1013 = vperm.xlu0 %1012, %v1009
  %v1014 = vpop.permute.xlu0 %1013
  %1017 = vset.pattern.permute.xlu0 0
  %1018 = vperm.xlu0 %1017, %v1010
  %v1019 = vpop.permute.xlu0 %1018
  %v1023 = vunpack.c.l.b16 %v1003
  %v1024 = vunpack.c.l.b16 %v1004
  %v1025 = vpack.c.b16 %v1024, %v1023
  %v1027 = vsel %vm493, %v1025, 0
  %1029 = vmatprep.subr.bf16.mxu0 %v1006
  %1030 = vmatpush1.bf16.msra.mxu0 %v1005
  %1031 = vmatprep.subr.bf16.mxu0 0
  %1032 = vmatpush1.bf16.msra.mxu0 0
  %1033 = vmatprep.subr.bf16.mxu0 0
  %1034 = vmatpush1.bf16.msra.mxu0 0
  %1035 = vmatprep.subr.bf16.mxu0 0
  %1036 = vmatpush1.bf16.msra.mxu0 0
  %1037 = vmatprep.subr.bf16.mxu0 0
  %1038 = vmatpush1.bf16.msra.mxu0 0
  %1039 = vmatprep.subr.bf16.mxu0 0
  %1040 = vmatpush1.bf16.msra.mxu0 0
  %1041 = vmatprep.subr.bf16.mxu0 0
  %1042 = vmatpush1.bf16.msra.mxu0 0
  %1043 = vmatprep.subr.bf16.mxu0 0
  %1044 = vmatpush1.bf16.msra.mxu0 0
  %1045 = vmatprep.subr.bf16.mxu0 0
  %1046 = vmatpush1.bf16.msra.mxu0 0
  %1047 = vmatprep.subr.bf16.mxu0 0
  %1048 = vmatpush1.bf16.msra.mxu0 0
  %1049 = vmatprep.subr.bf16.mxu0 0
  %1050 = vmatpush1.bf16.msra.mxu0 0
  %1051 = vmatprep.subr.bf16.mxu0 0
  %1052 = vmatpush1.bf16.msra.mxu0 0
  %1053 = vmatprep.subr.bf16.mxu0 0
  %1054 = vmatpush1.bf16.msra.mxu0 0
  %1055 = vmatprep.subr.bf16.mxu0 0
  %1056 = vmatpush1.bf16.msra.mxu0 0
  %1057 = vmatprep.subr.bf16.mxu0 0
  %1058 = vmatpush1.bf16.msra.mxu0 0
  %1059 = vmatprep.subr.bf16.mxu0 0
  %1060 = vmatpush1.bf16.msra.mxu0 0
  %1061 = vmatprep.mubr.bf16.mxu0 0
  %1062 = vmatmul.mubr.bf16.gmra.mrb[0].mxu0 %v1027
  %v1063 = vpop.f32.mrb[0].mxu0
  %v1064 = vadd.f32 %v1014, %v1063
  %v1065 = vpop.f32.mrb[0].mxu0
  %v1066 = vadd.f32 %v1014, %v1065
  %v1067 = vpop.f32.mrb[0].mxu0
  %v1068 = vadd.f32 %v1019, %v1067
  %v1069 = vpop.f32.mrb[0].mxu0
  %v1070 = vadd.f32 %v1019, %v1069
  %1071 = vdwg.mxu0
  %1072 = vmatprep.subr.bf16.mxu0 %v1008
  %1073 = vmatpush1.bf16.msra.mxu0 %v1007
  %1074 = vmatprep.subr.bf16.mxu0 0
  %1075 = vmatpush1.bf16.msra.mxu0 0
  %1076 = vmatprep.subr.bf16.mxu0 0
  %1077 = vmatpush1.bf16.msra.mxu0 0
  %1078 = vmatprep.subr.bf16.mxu0 0
  %1079 = vmatpush1.bf16.msra.mxu0 0
  %1080 = vmatprep.subr.bf16.mxu0 0
  %1081 = vmatpush1.bf16.msra.mxu0 0
  %1082 = vmatprep.subr.bf16.mxu0 0
  %1083 = vmatpush1.bf16.msra.mxu0 0
  %1084 = vmatprep.subr.bf16.mxu0 0
  %1085 = vmatpush1.bf16.msra.mxu0 0
  %1086 = vmatprep.subr.bf16.mxu0 0
  %1087 = vmatpush1.bf16.msra.mxu0 0
  %1088 = vmatprep.subr.bf16.mxu0 0
  %1089 = vmatpush1.bf16.msra.mxu0 0
  %1090 = vmatprep.subr.bf16.mxu0 0
  %1091 = vmatpush1.bf16.msra.mxu0 0
  %1092 = vmatprep.subr.bf16.mxu0 0
  %1093 = vmatpush1.bf16.msra.mxu0 0
  %1094 = vmatprep.subr.bf16.mxu0 0
  %1095 = vmatpush1.bf16.msra.mxu0 0
  %1096 = vmatprep.subr.bf16.mxu0 0
  %1097 = vmatpush1.bf16.msra.mxu0 0
  %1098 = vmatprep.subr.bf16.mxu0 0
  %1099 = vmatpush1.bf16.msra.mxu0 0
  %1100 = vmatprep.subr.bf16.mxu0 0
  %1101 = vmatpush1.bf16.msra.mxu0 0
  %1102 = vmatprep.subr.bf16.mxu0 0
  %1103 = vmatpush1.bf16.msra.mxu0 0
  %1104 = vmatprep.mubr.bf16.mxu0 0
  %1105 = vmatmul.mubr.bf16.gmra.mrb[0].mxu0 %v1027
  %v1106 = vpop.f32.mrb[0].mxu0
  %v1107 = vadd.f32 %v1014, %v1106
  %v1108 = vpop.f32.mrb[0].mxu0
  %v1109 = vadd.f32 %v1014, %v1108
  %v1110 = vpop.f32.mrb[0].mxu0
  %v1111 = vadd.f32 %v1019, %v1110
  %v1112 = vpop.f32.mrb[0].mxu0
  %v1113 = vadd.f32 %v1019, %v1112
  %1114 = vdwg.mxu0
  %v1115 = vmax.f32 %v1064, 0.0
  %v1116 = vmax.f32 %v1066, 0.0
  %v1117 = vmax.f32 %v1107, 0.0
  %v1118 = vmax.f32 %v1109, 0.0
  %v1119 = vmax.f32 %v1068, 0.0
  %v1120 = vmax.f32 %v1070, 0.0
  %v1121 = vmax.f32 %v1111, 0.0
  %v1122 = vmax.f32 %v1113, 0.0
  %1123 = vrot.lane.b32.xlu0 %v995, 17
  %v1124 = vpop.permute.xlu0 %1123
  %1125 = vrot.lane.b32.xlu0 %v999, 17
  %v1126 = vpop.permute.xlu0 %1125
  %1127 = vrot.lane.b32.xlu0 %v996, 17
  %v1128 = vpop.permute.xlu0 %1127
  %1129 = vrot.lane.b32.xlu0 %v1000, 17
  %v1130 = vpop.permute.xlu0 %1129
  %1131 = vrot.lane.b32.xlu0 %v997, 17
  %v1132 = vpop.permute.xlu0 %1131
  %1133 = vrot.lane.b32.xlu0 %v1001, 17
  %v1134 = vpop.permute.xlu0 %1133
  %1135 = vrot.lane.b32.xlu0 %v998, 17
  %v1136 = vpop.permute.xlu0 %1135
  %1137 = vrot.lane.b32.xlu0 %v1002, 17
  %v1138 = vpop.permute.xlu0 %1137
  %v1139 = vsel %vm186, %v1132, %v1136
  %v1140 = vsel %vm186, %v1134, %v1138
  %v1141 = vsel %vm186, %v1128, %v1132
  %v1142 = vsel %vm186, %v1130, %v1134
  %v1143 = vsel %vm186, %v1124, %v1128
  %v1144 = vsel %vm186, %v1126, %v1130
  %v1145 = vsel %vm186, %v1136, %v1124
  %v1146 = vsel %vm186, %v1138, %v1126
  %v1147 = vmul.f32 %v1145, %v62
  %v1148 = vmul.f32 %v1143, %v63
  %v1149 = vmul.f32 %v1141, %v64
  %v1150 = vmul.f32 %v1139, %v65
  %v1151 = vmul.f32 %v1146, %v62
  %v1152 = vmul.f32 %v1144, %v63
  %v1153 = vmul.f32 %v1142, %v64
  %v1154 = vmul.f32 %v1140, %v65
  %v1155 = vpack.c.bf16 %v1151, %v1147
  %v1156 = vpack.c.bf16 %v1152, %v1148
  %v1157 = vpack.c.bf16 %v1153, %v1149
  %v1158 = vpack.c.bf16 %v1154, %v1150
  %1159 = vrot.lane.b32.xlu0 %v995, 16
  %v1160 = vpop.permute.xlu0 %1159
  %1161 = vrot.lane.b32.xlu0 %v999, 16
  %v1162 = vpop.permute.xlu0 %1161
  %1163 = vrot.lane.b32.xlu0 %v996, 16
  %v1164 = vpop.permute.xlu0 %1163
  %1165 = vrot.lane.b32.xlu0 %v1000, 16
  %v1166 = vpop.permute.xlu0 %1165
  %1167 = vrot.lane.b32.xlu0 %v997, 16
  %v1168 = vpop.permute.xlu0 %1167
  %1169 = vrot.lane.b32.xlu0 %v1001, 16
  %v1170 = vpop.permute.xlu0 %1169
  %1171 = vrot.lane.b32.xlu0 %v998, 16
  %v1172 = vpop.permute.xlu0 %1171
  %1173 = vrot.lane.b32.xlu0 %v1002, 16
  %v1174 = vpop.permute.xlu0 %1173
  %v1175 = vsel %vm223, %v1168, %v1172
  %v1176 = vsel %vm223, %v1170, %v1174
  %v1177 = vsel %vm223, %v1164, %v1168
  %v1178 = vsel %vm223, %v1166, %v1170
  %v1179 = vsel %vm223, %v1160, %v1164
  %v1180 = vsel %vm223, %v1162, %v1166
  %v1181 = vsel %vm223, %v1172, %v1160
  %v1182 = vsel %vm223, %v1174, %v1162
  %v1183 = vmul.f32 %v1181, %v70
  %v1184 = vmul.f32 %v1179, %v71
  %v1185 = vmul.f32 %v1177, %v72
  %v1186 = vmul.f32 %v1175, %v73
  %v1187 = vmul.f32 %v1182, %v70
  %v1188 = vmul.f32 %v1180, %v71
  %v1189 = vmul.f32 %v1178, %v72
  %v1190 = vmul.f32 %v1176, %v73
  %v1191 = vpack.c.bf16 %v1187, %v1183
  %v1192 = vpack.c.bf16 %v1188, %v1184
  %v1193 = vpack.c.bf16 %v1189, %v1185
  %v1194 = vpack.c.bf16 %v1190, %v1186
  %1195 = vrot.lane.b32.xlu0 %v995, 15
  %v1196 = vpop.permute.xlu0 %1195
  %1197 = vrot.lane.b32.xlu0 %v999, 15
  %v1198 = vpop.permute.xlu0 %1197
  %1199 = vrot.lane.b32.xlu0 %v996, 15
  %v1200 = vpop.permute.xlu0 %1199
  %1201 = vrot.lane.b32.xlu0 %v1000, 15
  %v1202 = vpop.permute.xlu0 %1201
  %1203 = vrot.lane.b32.xlu0 %v997, 15
  %v1204 = vpop.permute.xlu0 %1203
  %1205 = vrot.lane.b32.xlu0 %v1001, 15
  %v1206 = vpop.permute.xlu0 %1205
  %1207 = vrot.lane.b32.xlu0 %v998, 15
  %v1208 = vpop.permute.xlu0 %1207
  %1209 = vrot.lane.b32.xlu0 %v1002, 15
  %v1210 = vpop.permute.xlu0 %1209
  %v1211 = vsel %vm260, %v1204, %v1208
  %v1212 = vsel %vm260, %v1206, %v1210
  %v1213 = vsel %vm260, %v1200, %v1204
  %v1214 = vsel %vm260, %v1202, %v1206
  %v1215 = vsel %vm260, %v1196, %v1200
  %v1216 = vsel %vm260, %v1198, %v1202
  %v1217 = vsel %vm260, %v1208, %v1196
  %v1218 = vsel %vm260, %v1210, %v1198
  %v1219 = vmul.f32 %v1217, %v82
  %v1220 = vmul.f32 %v1215, %v83
  %v1221 = vmul.f32 %v1213, %v84
  %v1222 = vmul.f32 %v1211, %v85
  %v1223 = vmul.f32 %v1218, %v82
  %v1224 = vmul.f32 %v1216, %v83
  %v1225 = vmul.f32 %v1214, %v84
  %v1226 = vmul.f32 %v1212, %v85
  %v1227 = vpack.c.bf16 %v1223, %v1219
  %v1228 = vpack.c.bf16 %v1224, %v1220
  %v1229 = vpack.c.bf16 %v1225, %v1221
  %v1230 = vpack.c.bf16 %v1226, %v1222
  %1231 = vrot.lane.b32.xlu0 %v995, 1
  %v1232 = vpop.permute.xlu0 %1231
  %1233 = vrot.lane.b32.xlu0 %v999, 1
  %v1234 = vpop.permute.xlu0 %1233
  %1235 = vrot.lane.b32.xlu0 %v996, 1
  %v1236 = vpop.permute.xlu0 %1235
  %1237 = vrot.lane.b32.xlu0 %v1000, 1
  %v1238 = vpop.permute.xlu0 %1237
  %1239 = vrot.lane.b32.xlu0 %v997, 1
  %v1240 = vpop.permute.xlu0 %1239
  %1241 = vrot.lane.b32.xlu0 %v1001, 1
  %v1242 = vpop.permute.xlu0 %1241
  %1243 = vrot.lane.b32.xlu0 %v998, 1
  %v1244 = vpop.permute.xlu0 %1243
  %1245 = vrot.lane.b32.xlu0 %v1002, 1
  %v1246 = vpop.permute.xlu0 %1245
  %v1247 = vsel %vm297, %v1240, %v1244
  %v1248 = vsel %vm297, %v1242, %v1246
  %v1249 = vsel %vm297, %v1236, %v1240
  %v1250 = vsel %vm297, %v1238, %v1242
  %v1251 = vsel %vm297, %v1232, %v1236
  %v1252 = vsel %vm297, %v1234, %v1238
  %v1253 = vsel %vm297, %v1244, %v1232
  %v1254 = vsel %vm297, %v1246, %v1234
  %v1255 = vmul.f32 %v1253, %v90
  %v1256 = vmul.f32 %v1251, %v91
  %v1257 = vmul.f32 %v1249, %v92
  %v1258 = vmul.f32 %v1247, %v93
  %v1259 = vmul.f32 %v1254, %v90
  %v1260 = vmul.f32 %v1252, %v91
  %v1261 = vmul.f32 %v1250, %v92
  %v1262 = vmul.f32 %v1248, %v93
  %v1263 = vpack.c.bf16 %v1259, %v1255
  %v1264 = vpack.c.bf16 %v1260, %v1256
  %v1265 = vpack.c.bf16 %v1261, %v1257
  %v1266 = vpack.c.bf16 %v1262, %v1258
  %1267 = vrot.lane.b32.xlu0 %v995, 127
  %v1268 = vpop.permute.xlu0 %1267
  %1269 = vrot.lane.b32.xlu0 %v999, 127
  %v1270 = vpop.permute.xlu0 %1269
  %1271 = vrot.lane.b32.xlu0 %v996, 127
  %v1272 = vpop.permute.xlu0 %1271
  %1273 = vrot.lane.b32.xlu0 %v1000, 127
  %v1274 = vpop.permute.xlu0 %1273
  %1275 = vrot.lane.b32.xlu0 %v997, 127
  %v1276 = vpop.permute.xlu0 %1275
  %1277 = vrot.lane.b32.xlu0 %v1001, 127
  %v1278 = vpop.permute.xlu0 %1277
  %1279 = vrot.lane.b32.xlu0 %v998, 127
  %v1280 = vpop.permute.xlu0 %1279
  %1281 = vrot.lane.b32.xlu0 %v1002, 127
  %v1282 = vpop.permute.xlu0 %1281
  %v1283 = vsel %vm338, %v1276, %v1280
  %v1284 = vsel %vm338, %v1278, %v1282
  %v1285 = vsel %vm338, %v1272, %v1276
  %v1286 = vsel %vm338, %v1274, %v1278
  %v1287 = vsel %vm338, %v1268, %v1272
  %v1288 = vsel %vm338, %v1270, %v1274
  %v1289 = vsel %vm338, %v1280, %v1268
  %v1290 = vsel %vm338, %v1282, %v1270
  %v1291 = vmul.f32 %v1287, %v98
  %v1292 = vmul.f32 %v1285, %v99
  %v1293 = vmul.f32 %v1283, %v100
  %v1294 = vmul.f32 %v1289, %v101
  %v1295 = vmul.f32 %v1288, %v98
  %v1296 = vmul.f32 %v1286, %v99
  %v1297 = vmul.f32 %v1284, %v100
  %v1298 = vmul.f32 %v1290, %v101
  %v1299 = vpack.c.bf16 %v1295, %v1291
  %v1300 = vpack.c.bf16 %v1296, %v1292
  %v1301 = vpack.c.bf16 %v1297, %v1293
  %v1302 = vpack.c.bf16 %v1298, %v1294
  %1303 = vrot.lane.b32.xlu0 %v995, 113
  %v1304 = vpop.permute.xlu0 %1303
  %1305 = vrot.lane.b32.xlu0 %v999, 113
  %v1306 = vpop.permute.xlu0 %1305
  %1307 = vrot.lane.b32.xlu0 %v996, 113
  %v1308 = vpop.permute.xlu0 %1307
  %1309 = vrot.lane.b32.xlu0 %v1000, 113
  %v1310 = vpop.permute.xlu0 %1309
  %1311 = vrot.lane.b32.xlu0 %v997, 113
  %v1312 = vpop.permute.xlu0 %1311
  %1313 = vrot.lane.b32.xlu0 %v1001, 113
  %v1314 = vpop.permute.xlu0 %1313
  %1315 = vrot.lane.b32.xlu0 %v998, 113
  %v1316 = vpop.permute.xlu0 %1315
  %1317 = vrot.lane.b32.xlu0 %v1002, 113
  %v1318 = vpop.permute.xlu0 %1317
  %v1319 = vsel %vm375, %v1312, %v1316
  %v1320 = vsel %vm375, %v1314, %v1318
  %v1321 = vsel %vm375, %v1308, %v1312
  %v1322 = vsel %vm375, %v1310, %v1314
  %v1323 = vsel %vm375, %v1304, %v1308
  %v1324 = vsel %vm375, %v1306, %v1310
  %v1325 = vsel %vm375, %v1316, %v1304
  %v1326 = vsel %vm375, %v1318, %v1306
  %v1327 = vmul.f32 %v1323, %v110
  %v1328 = vmul.f32 %v1321, %v111
  %v1329 = vmul.f32 %v1319, %v112
  %v1330 = vmul.f32 %v1325, %v113
  %v1331 = vmul.f32 %v1324, %v110
  %v1332 = vmul.f32 %v1322, %v111
  %v1333 = vmul.f32 %v1320, %v112
  %v1334 = vmul.f32 %v1326, %v113
  %v1335 = vpack.c.bf16 %v1331, %v1327
  %v1336 = vpack.c.bf16 %v1332, %v1328
  %v1337 = vpack.c.bf16 %v1333, %v1329
  %v1338 = vpack.c.bf16 %v1334, %v1330
  %1339 = vrot.lane.b32.xlu0 %v995, 112
  %v1340 = vpop.permute.xlu0 %1339
  %1341 = vrot.lane.b32.xlu0 %v999, 112
  %v1342 = vpop.permute.xlu0 %1341
  %1343 = vrot.lane.b32.xlu0 %v996, 112
  %v1344 = vpop.permute.xlu0 %1343
  %1345 = vrot.lane.b32.xlu0 %v1000, 112
  %v1346 = vpop.permute.xlu0 %1345
  %1347 = vrot.lane.b32.xlu0 %v997, 112
  %v1348 = vpop.permute.xlu0 %1347
  %1349 = vrot.lane.b32.xlu0 %v1001, 112
  %v1350 = vpop.permute.xlu0 %1349
  %1351 = vrot.lane.b32.xlu0 %v998, 112
  %v1352 = vpop.permute.xlu0 %1351
  %1353 = vrot.lane.b32.xlu0 %v1002, 112
  %v1354 = vpop.permute.xlu0 %1353
  %v1355 = vsel %vm412, %v1348, %v1352
  %v1356 = vsel %vm412, %v1350, %v1354
  %v1357 = vsel %vm412, %v1344, %v1348
  %v1358 = vsel %vm412, %v1346, %v1350
  %v1359 = vsel %vm412, %v1340, %v1344
  %v1360 = vsel %vm412, %v1342, %v1346
  %v1361 = vsel %vm412, %v1352, %v1340
  %v1362 = vsel %vm412, %v1354, %v1342
  %v1363 = vmul.f32 %v1359, %v118
  %v1364 = vmul.f32 %v1357, %v119
  %v1365 = vmul.f32 %v1355, %v120
  %v1366 = vmul.f32 %v1361, %v121
  %v1367 = vmul.f32 %v1360, %v118
  %v1368 = vmul.f32 %v1358, %v119
  %v1369 = vmul.f32 %v1356, %v120
  %v1370 = vmul.f32 %v1362, %v121
  %v1371 = vpack.c.bf16 %v1367, %v1363
  %v1372 = vpack.c.bf16 %v1368, %v1364
  %v1373 = vpack.c.bf16 %v1369, %v1365
  %v1374 = vpack.c.bf16 %v1370, %v1366
  %1375 = vrot.lane.b32.xlu0 %v995, 111
  %v1376 = vpop.permute.xlu0 %1375
  %1377 = vrot.lane.b32.xlu0 %v999, 111
  %v1378 = vpop.permute.xlu0 %1377
  %1379 = vrot.lane.b32.xlu0 %v996, 111
  %v1380 = vpop.permute.xlu0 %1379
  %1381 = vrot.lane.b32.xlu0 %v1000, 111
  %v1382 = vpop.permute.xlu0 %1381
  %1383 = vrot.lane.b32.xlu0 %v997, 111
  %v1384 = vpop.permute.xlu0 %1383
  %1385 = vrot.lane.b32.xlu0 %v1001, 111
  %v1386 = vpop.permute.xlu0 %1385
  %1387 = vrot.lane.b32.xlu0 %v998, 111
  %v1388 = vpop.permute.xlu0 %1387
  %1389 = vrot.lane.b32.xlu0 %v1002, 111
  %v1390 = vpop.permute.xlu0 %1389
  %v1391 = vsel %vm449, %v1384, %v1388
  %v1392 = vsel %vm449, %v1386, %v1390
  %v1393 = vsel %vm449, %v1380, %v1384
  %v1394 = vsel %vm449, %v1382, %v1386
  %v1395 = vsel %vm449, %v1376, %v1380
  %v1396 = vsel %vm449, %v1378, %v1382
  %v1397 = vsel %vm449, %v1388, %v1376
  %v1398 = vsel %vm449, %v1390, %v1378
  %v1399 = vmul.f32 %v1395, %v130
  %v1400 = vmul.f32 %v1393, %v131
  %v1401 = vmul.f32 %v1391, %v132
  %v1402 = vmul.f32 %v1397, %v133
  %v1403 = vmul.f32 %v1396, %v130
  %v1404 = vmul.f32 %v1394, %v131
  %v1405 = vmul.f32 %v1392, %v132
  %v1406 = vmul.f32 %v1398, %v133
  %v1407 = vpack.c.bf16 %v1403, %v1399
  %v1408 = vpack.c.bf16 %v1404, %v1400
  %v1409 = vpack.c.bf16 %v1405, %v1401
  %v1410 = vpack.c.bf16 %v1406, %v1402
  %v1411 = vld [vmem:[%s1 + $0x48] sm:$0xff]
  %v1412 = vld [vmem:[%s1 + $0x54] sm:$0xff]
  %v1415 = vunpack.c.l.b16 %v1411
  %v1416 = vunpack.c.h.b16 %v1411
  %v1417 = vunpack.c.l.b16 %v1412
  %v1418 = vunpack.c.h.b16 %v1412
  %v1419 = vpack.c.b16 %v1417, %v1415
  %v1420 = vpack.c.b16 %v1418, %v1416
  %v1423 = vsel %vm493, %v1420, 0
  %1425 = vmatprep.subr.bf16.mxu0 %v1156
  %1426 = vmatpush1.bf16.msra.mxu0 %v1155
  %1427 = vmatprep.subr.bf16.mxu0 %v1192
  %1428 = vmatpush1.bf16.msra.mxu0 %v1191
  %1429 = vmatprep.subr.bf16.mxu0 %v1228
  %1430 = vmatpush1.bf16.msra.mxu0 %v1227
  %1431 = vmatprep.subr.bf16.mxu0 %v1264
  %1432 = vmatpush1.bf16.msra.mxu0 %v1263
  %1433 = vmatprep.subr.bf16.mxu0 %v1006
  %1434 = vmatpush1.bf16.msra.mxu0 %v1005
  %1435 = vmatprep.subr.bf16.mxu0 %v1300
  %1436 = vmatpush1.bf16.msra.mxu0 %v1299
  %1437 = vmatprep.subr.bf16.mxu0 %v1336
  %1438 = vmatpush1.bf16.msra.mxu0 %v1335
  %1439 = vmatprep.subr.bf16.mxu0 %v1372
  %1440 = vmatpush1.bf16.msra.mxu0 %v1371
  %1441 = vmatprep.subr.bf16.mxu0 %v1408
  %1442 = vmatpush1.bf16.msra.mxu0 %v1407
  %1443 = vmatprep.subr.bf16.mxu0 0
  %1444 = vmatpush1.bf16.msra.mxu0 0
  %1445 = vmatprep.subr.bf16.mxu0 0
  %1446 = vmatpush1.bf16.msra.mxu0 0
  %1447 = vmatprep.subr.bf16.mxu0 0
  %1448 = vmatpush1.bf16.msra.mxu0 0
  %1449 = vmatprep.subr.bf16.mxu0 0
  %1450 = vmatpush1.bf16.msra.mxu0 0
  %1451 = vmatprep.subr.bf16.mxu0 0
  %1452 = vmatpush1.bf16.msra.mxu0 0
  %1453 = vmatprep.subr.bf16.mxu0 0
  %1454 = vmatpush1.bf16.msra.mxu0 0
  %1455 = vmatprep.subr.bf16.mxu0 0
  %1456 = vmatpush1.bf16.msra.mxu0 0
  %1457 = vmatprep.mubr.bf16.mxu0 %v1423
  %1458 = vmatmul.mubr.bf16.gmra.mrb[0].mxu0 %v1419
  %v1459 = vpop.f32.mrb[0].mxu0
  %v1460 = vadd.f32 0.0, %v1459
  %v1461 = vpop.f32.mrb[0].mxu0
  %v1462 = vadd.f32 0.0, %v1461
  %v1463 = vpop.f32.mrb[0].mxu0
  %v1464 = vadd.f32 0.0, %v1463
  %v1465 = vpop.f32.mrb[0].mxu0
  %v1466 = vadd.f32 0.0, %v1465
  %1467 = vdwg.mxu0
  %1468 = vmatprep.subr.bf16.mxu0 %v1158
  %1469 = vmatpush1.bf16.msra.mxu0 %v1157
  %1470 = vmatprep.subr.bf16.mxu0 %v1194
  %1471 = vmatpush1.bf16.msra.mxu0 %v1193
  %1472 = vmatprep.subr.bf16.mxu0 %v1230
  %1473 = vmatpush1.bf16.msra.mxu0 %v1229
  %1474 = vmatprep.subr.bf16.mxu0 %v1266
  %1475 = vmatpush1.bf16.msra.mxu0 %v1265
  %1476 = vmatprep.subr.bf16.mxu0 %v1008
  %1477 = vmatpush1.bf16.msra.mxu0 %v1007
  %1478 = vmatprep.subr.bf16.mxu0 %v1302
  %1479 = vmatpush1.bf16.msra.mxu0 %v1301
  %1480 = vmatprep.subr.bf16.mxu0 %v1338
  %1481 = vmatpush1.bf16.msra.mxu0 %v1337
  %1482 = vmatprep.subr.bf16.mxu0 %v1374
  %1483 = vmatpush1.bf16.msra.mxu0 %v1373
  %1484 = vmatprep.subr.bf16.mxu0 %v1410
  %1485 = vmatpush1.bf16.msra.mxu0 %v1409
  %1486 = vmatprep.subr.bf16.mxu0 0
  %1487 = vmatpush1.bf16.msra.mxu0 0
  %1488 = vmatprep.subr.bf16.mxu0 0
  %1489 = vmatpush1.bf16.msra.mxu0 0
  %1490 = vmatprep.subr.bf16.mxu0 0
  %1491 = vmatpush1.bf16.msra.mxu0 0
  %1492 = vmatprep.subr.bf16.mxu0 0
  %1493 = vmatpush1.bf16.msra.mxu0 0
  %1494 = vmatprep.subr.bf16.mxu0 0
  %1495 = vmatpush1.bf16.msra.mxu0 0
  %1496 = vmatprep.subr.bf16.mxu0 0
  %1497 = vmatpush1.bf16.msra.mxu0 0
  %1498 = vmatprep.subr.bf16.mxu0 0
  %1499 = vmatpush1.bf16.msra.mxu0 0
  %1500 = vmatprep.mubr.bf16.mxu0 %v1423
  %1501 = vmatmul.mubr.bf16.gmra.mrb[0].mxu0 %v1419
  %v1502 = vpop.f32.mrb[0].mxu0
  %v1503 = vadd.f32 0.0, %v1502
  %v1504 = vpop.f32.mrb[0].mxu0
  %v1505 = vadd.f32 0.0, %v1504
  %v1506 = vpop.f32.mrb[0].mxu0
  %v1507 = vadd.f32 0.0, %v1506
  %v1508 = vpop.f32.mrb[0].mxu0
  %v1509 = vadd.f32 0.0, %v1508
  %1510 = vdwg.mxu0
  %v1511 = vpack.c.bf16 %v1464, %v1460
  %v1512 = vpack.c.bf16 %v1466, %v1462
  %v1513 = vpack.c.bf16 %v1507, %v1503
  %v1514 = vpack.c.bf16 %v1509, %v1505
  %v1515 = vld [vmem:[%s3] sm:$0xf]
  %v1516 = vld [vmem:[%s3 + $0x4] sm:$0xf]
  %v1517 = vld [vmem:[%s3 + $0x8] sm:$0xf]
  %v1518 = vld [vmem:[%s3 + $0xc] sm:$0xf]
  %v1519 = vld [vmem:[%s3 + $0x10] sm:$0xf]
  %v1520 = vld [vmem:[%s3 + $0x14] sm:$0xf]
  %v1521 = vld [vmem:[%s3 + $0x18] sm:$0xf]
  %v1522 = vld [vmem:[%s3 + $0x1c] sm:$0xf]
  %v1523 = vld [vmem:[%s3 + $0x20] sm:$0xf]
  %v1524 = vld [vmem:[%s3 + $0x24] sm:$0xf]
  %v1525 = vld [vmem:[%s3 + $0x28] sm:$0xf]
  %v1526 = vld [vmem:[%s3 + $0x2c] sm:$0xf]
  %v1527 = vld [vmem:[%s3 + $0x30] sm:$0xf]
  %v1528 = vld [vmem:[%s3 + $0x34] sm:$0xf]
  %v1529 = vld [vmem:[%s3 + $0x38] sm:$0xf]
  %v1530 = vld [vmem:[%s3 + $0x3c] sm:$0xf]
  %v1531 = vld [vmem:[%s3 + $0x40] sm:$0xf]
  %v1532 = vld [vmem:[%s3 + $0x44] sm:$0xf]
  %v1533 = vld [vmem:[%s3 + $0x48] sm:$0xf]
  %v1534 = vld [vmem:[%s3 + $0x4c] sm:$0xf]
  %v1535 = vld [vmem:[%s3 + $0x50] sm:$0xf]
  %v1536 = vld [vmem:[%s3 + $0x54] sm:$0xf]
  %v1537 = vld [vmem:[%s3 + $0x58] sm:$0xf]
  %v1538 = vld [vmem:[%s3 + $0x5c] sm:$0xf]
  %v1539 = vld [vmem:[%s3 + $0x60] sm:$0xf]
  %v1540 = vld [vmem:[%s3 + $0x64] sm:$0xf]
  %v1541 = vld [vmem:[%s3 + $0x68] sm:$0xf]
  %v1542 = vld [vmem:[%s3 + $0x6c] sm:$0xf]
  %v1543 = vld [vmem:[%s3 + $0x70] sm:$0xf]
  %v1544 = vld [vmem:[%s3 + $0x74] sm:$0xf]
  %v1545 = vld [vmem:[%s3 + $0x78] sm:$0xf]
  %v1546 = vld [vmem:[%s3 + $0x7c] sm:$0xf]
  %v1547 = vld [vmem:[%s3 + $0x80] sm:$0xf]
  %v1548 = vld [vmem:[%s3 + $0x84] sm:$0xf]
  %v1549 = vld [vmem:[%s3 + $0x88] sm:$0xf]
  %v1550 = vld [vmem:[%s3 + $0x8c] sm:$0xf]
  %v1551 = vld [vmem:[%s3 + $0x90] sm:$0xf]
  %v1552 = vld [vmem:[%s3 + $0x94] sm:$0xf]
  %v1553 = vld [vmem:[%s3 + $0x98] sm:$0xf]
  %v1554 = vld [vmem:[%s3 + $0x9c] sm:$0xf]
  %v1555 = vld [vmem:[%s3 + $0xa0] sm:$0xf]
  %v1556 = vld [vmem:[%s3 + $0xa4] sm:$0xf]
  %v1557 = vld [vmem:[%s3 + $0xa8] sm:$0xf]
  %v1558 = vld [vmem:[%s3 + $0xac] sm:$0xf]
  %v1559 = vld [vmem:[%s3 + $0xb0] sm:$0xf]
  %v1560 = vld [vmem:[%s3 + $0xb4] sm:$0xf]
  %v1561 = vld [vmem:[%s3 + $0xb8] sm:$0xf]
  %v1562 = vld [vmem:[%s3 + $0xbc] sm:$0xf]
  %v1563 = vld [vmem:[%s3 + $0xc0] sm:$0xf]
  %v1564 = vld [vmem:[%s3 + $0xc4] sm:$0xf]
  %v1565 = vld [vmem:[%s3 + $0xc8] sm:$0xf]
  %v1566 = vld [vmem:[%s3 + $0xcc] sm:$0xf]
  %v1567 = vld [vmem:[%s3 + $0xd0] sm:$0xf]
  %v1568 = vld [vmem:[%s3 + $0xd4] sm:$0xf]
  %v1569 = vld [vmem:[%s3 + $0xd8] sm:$0xf]
  %v1570 = vld [vmem:[%s3 + $0xdc] sm:$0xf]
  %v1571 = vld [vmem:[%s3 + $0xe0] sm:$0xf]
  %v1572 = vld [vmem:[%s3 + $0xe4] sm:$0xf]
  %v1573 = vld [vmem:[%s3 + $0xe8] sm:$0xf]
  %v1574 = vld [vmem:[%s3 + $0xec] sm:$0xf]
  %v1575 = vld [vmem:[%s3 + $0xf0] sm:$0xf]
  %v1576 = vld [vmem:[%s3 + $0xf4] sm:$0xf]
  %v1577 = vld [vmem:[%s3 + $0xf8] sm:$0xf]
  %v1578 = vld [vmem:[%s3 + $0xfc] sm:$0xf]
  %v1579 = vld [vmem:[%s2 + $0x30] sm:$0xff]
  %v1580 = vld [vmem:[%s2 + $0x38] sm:$0xff]
  %1582 = vset.pattern.permute.xlu0 0
  %1583 = vperm.xlu0 %1582, %v1579
  %v1584 = vpop.permute.xlu0 %1583
  %1587 = vset.pattern.permute.xlu0 0
  %1588 = vperm.xlu0 %1587, %v1580
  %v1589 = vpop.permute.xlu0 %1588
  %v1655 = vunpack.c.l.b16 %v1515
  %v1656 = vunpack.c.l.b16 %v1516
  %v1657 = vunpack.c.l.b16 %v1517
  %v1658 = vunpack.c.l.b16 %v1518
  %v1659 = vunpack.c.l.b16 %v1519
  %v1660 = vunpack.c.l.b16 %v1520
  %v1661 = vunpack.c.l.b16 %v1521
  %v1662 = vunpack.c.l.b16 %v1522
  %v1663 = vunpack.c.l.b16 %v1523
  %v1664 = vunpack.c.l.b16 %v1524
  %v1665 = vunpack.c.l.b16 %v1525
  %v1666 = vunpack.c.l.b16 %v1526
  %v1667 = vunpack.c.l.b16 %v1527
  %v1668 = vunpack.c.l.b16 %v1528
  %v1669 = vunpack.c.l.b16 %v1529
  %v1670 = vunpack.c.l.b16 %v1530
  %v1671 = vunpack.c.l.b16 %v1531
  %v1672 = vunpack.c.l.b16 %v1532
  %v1673 = vunpack.c.l.b16 %v1533
  %v1674 = vunpack.c.l.b16 %v1534
  %v1675 = vunpack.c.l.b16 %v1535
  %v1676 = vunpack.c.l.b16 %v1536
  %v1677 = vunpack.c.l.b16 %v1537
  %v1678 = vunpack.c.l.b16 %v1538
  %v1679 = vunpack.c.l.b16 %v1539
  %v1680 = vunpack.c.l.b16 %v1540
  %v1681 = vunpack.c.l.b16 %v1541
  %v1682 = vunpack.c.l.b16 %v1542
  %v1683 = vunpack.c.l.b16 %v1543
  %v1684 = vunpack.c.l.b16 %v1544
  %v1685 = vunpack.c.l.b16 %v1545
  %v1686 = vunpack.c.l.b16 %v1546
  %v1687 = vunpack.c.l.b16 %v1547
  %v1688 = vunpack.c.l.b16 %v1548
  %v1689 = vunpack.c.l.b16 %v1549
  %v1690 = vunpack.c.l.b16 %v1550
  %v1691 = vunpack.c.l.b16 %v1551
  %v1692 = vunpack.c.l.b16 %v1552
  %v1693 = vunpack.c.l.b16 %v1553
  %v1694 = vunpack.c.l.b16 %v1554
  %v1695 = vunpack.c.l.b16 %v1555
  %v1696 = vunpack.c.l.b16 %v1556
  %v1697 = vunpack.c.l.b16 %v1557
  %v1698 = vunpack.c.l.b16 %v1558
  %v1699 = vunpack.c.l.b16 %v1559
  %v1700 = vunpack.c.l.b16 %v1560
  %v1701 = vunpack.c.l.b16 %v1561
  %v1702 = vunpack.c.l.b16 %v1562
  %v1703 = vunpack.c.l.b16 %v1563
  %v1704 = vunpack.c.l.b16 %v1564
  %v1705 = vunpack.c.l.b16 %v1565
  %v1706 = vunpack.c.l.b16 %v1566
  %v1707 = vunpack.c.l.b16 %v1567
  %v1708 = vunpack.c.l.b16 %v1568
  %v1709 = vunpack.c.l.b16 %v1569
  %v1710 = vunpack.c.l.b16 %v1570
  %v1711 = vunpack.c.l.b16 %v1571
  %v1712 = vunpack.c.l.b16 %v1572
  %v1713 = vunpack.c.l.b16 %v1573
  %v1714 = vunpack.c.l.b16 %v1574
  %v1715 = vunpack.c.l.b16 %v1575
  %v1716 = vunpack.c.l.b16 %v1576
  %v1717 = vunpack.c.l.b16 %v1577
  %v1718 = vunpack.c.l.b16 %v1578
  %v1719 = vpack.c.b16 %v1656, %v1655
  %v1720 = vpack.c.b16 %v1658, %v1657
  %v1721 = vpack.c.b16 %v1660, %v1659
  %v1722 = vpack.c.b16 %v1662, %v1661
  %v1723 = vpack.c.b16 %v1664, %v1663
  %v1724 = vpack.c.b16 %v1666, %v1665
  %v1725 = vpack.c.b16 %v1668, %v1667
  %v1726 = vpack.c.b16 %v1670, %v1669
  %v1727 = vpack.c.b16 %v1672, %v1671
  %v1728 = vpack.c.b16 %v1674, %v1673
  %v1729 = vpack.c.b16 %v1676, %v1675
  %v1730 = vpack.c.b16 %v1678, %v1677
  %v1731 = vpack.c.b16 %v1680, %v1679
  %v1732 = vpack.c.b16 %v1682, %v1681
  %v1733 = vpack.c.b16 %v1684, %v1683
  %v1734 = vpack.c.b16 %v1686, %v1685
  %v1735 = vpack.c.b16 %v1688, %v1687
  %v1736 = vpack.c.b16 %v1690, %v1689
  %v1737 = vpack.c.b16 %v1692, %v1691
  %v1738 = vpack.c.b16 %v1694, %v1693
  %v1739 = vpack.c.b16 %v1696, %v1695
  %v1740 = vpack.c.b16 %v1698, %v1697
  %v1741 = vpack.c.b16 %v1700, %v1699
  %v1742 = vpack.c.b16 %v1702, %v1701
  %v1743 = vpack.c.b16 %v1704, %v1703
  %v1744 = vpack.c.b16 %v1706, %v1705
  %v1745 = vpack.c.b16 %v1708, %v1707
  %v1746 = vpack.c.b16 %v1710, %v1709
  %v1747 = vpack.c.b16 %v1712, %v1711
  %v1748 = vpack.c.b16 %v1714, %v1713
  %v1749 = vpack.c.b16 %v1716, %v1715
  %v1750 = vpack.c.b16 %v1718, %v1717
  %1783 = vmatprep.subr.bf16.mxu0 0
  %1784 = vmatpush1.bf16.msra.mxu0 %v1719
  %1785 = vmatprep.subr.bf16.mxu0 0
  %1786 = vmatpush1.bf16.msra.mxu0 %v1720
  %1787 = vmatprep.subr.bf16.mxu0 0
  %1788 = vmatpush1.bf16.msra.mxu0 %v1721
  %1789 = vmatprep.subr.bf16.mxu0 0
  %1790 = vmatpush1.bf16.msra.mxu0 %v1722
  %1791 = vmatprep.subr.bf16.mxu0 0
  %1792 = vmatpush1.bf16.msra.mxu0 %v1723
  %1793 = vmatprep.subr.bf16.mxu0 0
  %1794 = vmatpush1.bf16.msra.mxu0 %v1724
  %1795 = vmatprep.subr.bf16.mxu0 0
  %1796 = vmatpush1.bf16.msra.mxu0 %v1725
  %1797 = vmatprep.subr.bf16.mxu0 0
  %1798 = vmatpush1.bf16.msra.mxu0 %v1726
  %1799 = vmatprep.subr.bf16.mxu0 0
  %1800 = vmatpush1.bf16.msra.mxu0 %v1727
  %1801 = vmatprep.subr.bf16.mxu0 0
  %1802 = vmatpush1.bf16.msra.mxu0 %v1728
  %1803 = vmatprep.subr.bf16.mxu0 0
  %1804 = vmatpush1.bf16.msra.mxu0 %v1729
  %1805 = vmatprep.subr.bf16.mxu0 0
  %1806 = vmatpush1.bf16.msra.mxu0 %v1730
  %1807 = vmatprep.subr.bf16.mxu0 0
  %1808 = vmatpush1.bf16.msra.mxu0 %v1731
  %1809 = vmatprep.subr.bf16.mxu0 0
  %1810 = vmatpush1.bf16.msra.mxu0 %v1732
  %1811 = vmatprep.subr.bf16.mxu0 0
  %1812 = vmatpush1.bf16.msra.mxu0 %v1733
  %1813 = vmatprep.subr.bf16.mxu0 0
  %1814 = vmatpush1.bf16.msra.mxu0 %v1734
  %1815 = vmatprep.mubr.bf16.mxu0 %v1512
  %1816 = vmatmul.mubr.bf16.gmra.mrb[0].mxu0 %v1511
  %v1817 = vpop.f32.mrb[0].mxu0
  %v1818 = vadd.f32 %v1584, %v1817
  %v1819 = vpop.f32.mrb[0].mxu0
  %v1820 = vpop.f32.mrb[0].mxu0
  %v1821 = vadd.f32 %v1589, %v1820
  %v1822 = vpop.f32.mrb[0].mxu0
  %1823 = vdwg.mxu0
  %1824 = vmatprep.subr.bf16.mxu0 0
  %1825 = vmatpush1.bf16.msra.mxu0 %v1735
  %1826 = vmatprep.subr.bf16.mxu0 0
  %1827 = vmatpush1.bf16.msra.mxu0 %v1736
  %1828 = vmatprep.subr.bf16.mxu0 0
  %1829 = vmatpush1.bf16.msra.mxu0 %v1737
  %1830 = vmatprep.subr.bf16.mxu0 0
  %1831 = vmatpush1.bf16.msra.mxu0 %v1738
  %1832 = vmatprep.subr.bf16.mxu0 0
  %1833 = vmatpush1.bf16.msra.mxu0 %v1739
  %1834 = vmatprep.subr.bf16.mxu0 0
  %1835 = vmatpush1.bf16.msra.mxu0 %v1740
  %1836 = vmatprep.subr.bf16.mxu0 0
  %1837 = vmatpush1.bf16.msra.mxu0 %v1741
  %1838 = vmatprep.subr.bf16.mxu0 0
  %1839 = vmatpush1.bf16.msra.mxu0 %v1742
  %1840 = vmatprep.subr.bf16.mxu0 0
  %1841 = vmatpush1.bf16.msra.mxu0 %v1743
  %1842 = vmatprep.subr.bf16.mxu0 0
  %1843 = vmatpush1.bf16.msra.mxu0 %v1744
  %1844 = vmatprep.subr.bf16.mxu0 0
  %1845 = vmatpush1.bf16.msra.mxu0 %v1745
  %1846 = vmatprep.subr.bf16.mxu0 0
  %1847 = vmatpush1.bf16.msra.mxu0 %v1746
  %1848 = vmatprep.subr.bf16.mxu0 0
  %1849 = vmatpush1.bf16.msra.mxu0 %v1747
  %1850 = vmatprep.subr.bf16.mxu0 0
  %1851 = vmatpush1.bf16.msra.mxu0 %v1748
  %1852 = vmatprep.subr.bf16.mxu0 0
  %1853 = vmatpush1.bf16.msra.mxu0 %v1749
  %1854 = vmatprep.subr.bf16.mxu0 0
  %1855 = vmatpush1.bf16.msra.mxu0 %v1750
  %1856 = vmatprep.mubr.bf16.mxu0 %v1514
  %1857 = vmatmul.mubr.bf16.gmra.mrb[0].mxu0 %v1513
  %v1858 = vpop.f32.mrb[0].mxu0
  %v1859 = vadd.f32 %v1818, %v1858
  %v1860 = vpop.f32.mrb[0].mxu0
  %v1861 = vpop.f32.mrb[0].mxu0
  %v1862 = vadd.f32 %v1821, %v1861
  %v1863 = vpop.f32.mrb[0].mxu0
  %1864 = vdwg.mxu0
  %v1865 = vmax.f32 %v1859, 0.0
  %v1866 = vmax.f32 %v1862, 0.0
  %1867 = vrot.lane.b32.xlu0 %v1865, 9
  %v1868 = vpop.permute.xlu0 %1867
  %1869 = vrot.lane.b32.xlu0 %v1866, 9
  %v1870 = vpop.permute.xlu0 %1869
  %v1871 = vmul.f32 %v1868, %v143
  %v1872 = vmul.f32 %v1870, %v143
  %v1873 = vpack.c.bf16 %v1872, %v1871
  %1874 = vrot.lane.b32.xlu0 %v1865, 8
  %v1875 = vpop.permute.xlu0 %1874
  %1876 = vrot.lane.b32.xlu0 %v1866, 8
  %v1877 = vpop.permute.xlu0 %1876
  %v1878 = vmul.f32 %v1875, %v145
  %v1879 = vmul.f32 %v1877, %v145
  %v1880 = vpack.c.bf16 %v1879, %v1878
  %1881 = vrot.lane.b32.xlu0 %v1865, 7
  %v1882 = vpop.permute.xlu0 %1881
  %1883 = vrot.lane.b32.xlu0 %v1866, 7
  %v1884 = vpop.permute.xlu0 %1883
  %v1885 = vmul.f32 %v1882, %v148
  %v1886 = vmul.f32 %v1884, %v148
  %v1887 = vpack.c.bf16 %v1886, %v1885
  %1888 = vrot.lane.b32.xlu0 %v1865, 1
  %v1889 = vpop.permute.xlu0 %1888
  %1890 = vrot.lane.b32.xlu0 %v1866, 1
  %v1891 = vpop.permute.xlu0 %1890
  %v1892 = vmul.f32 %v1889, %v150
  %v1893 = vmul.f32 %v1891, %v150
  %v1894 = vpack.c.bf16 %v1893, %v1892
  %v1895 = vpack.c.bf16 %v1866, %v1865
  %1896 = vrot.lane.b32.xlu0 %v1865, 127
  %v1897 = vpop.permute.xlu0 %1896
  %1898 = vrot.lane.b32.xlu0 %v1866, 127
  %v1899 = vpop.permute.xlu0 %1898
  %v1900 = vmul.f32 %v1897, %v152
  %v1901 = vmul.f32 %v1899, %v152
  %v1902 = vpack.c.bf16 %v1901, %v1900
  %1903 = vrot.lane.b32.xlu0 %v1865, 121
  %v1904 = vpop.permute.xlu0 %1903
  %1905 = vrot.lane.b32.xlu0 %v1866, 121
  %v1906 = vpop.permute.xlu0 %1905
  %v1907 = vmul.f32 %v1904, %v155
  %v1908 = vmul.f32 %v1906, %v155
  %v1909 = vpack.c.bf16 %v1908, %v1907
  %1910 = vrot.lane.b32.xlu0 %v1865, 120
  %v1911 = vpop.permute.xlu0 %1910
  %1912 = vrot.lane.b32.xlu0 %v1866, 120
  %v1913 = vpop.permute.xlu0 %1912
  %v1914 = vmul.f32 %v1911, %v157
  %v1915 = vmul.f32 %v1913, %v157
  %v1916 = vpack.c.bf16 %v1915, %v1914
  %1917 = vrot.lane.b32.xlu0 %v1865, 119
  %v1918 = vpop.permute.xlu0 %1917
  %1919 = vrot.lane.b32.xlu0 %v1866, 119
  %v1920 = vpop.permute.xlu0 %1919
  %v1921 = vmul.f32 %v1918, %v160
  %v1922 = vmul.f32 %v1920, %v160
  %v1923 = vpack.c.bf16 %v1922, %v1921
  %v1924 = vld [vmem:[%s1 + $0x60] sm:$0xff]
  %v1925 = vld [vmem:[%s1 + $0x6c] sm:$0xff]
  %v1926 = vld [vmem:[%s2 + $0x40] sm:$0xff]
  %v1927 = vld [vmem:[%s2 + $0x48] sm:$0xff]
  %1929 = vset.pattern.permute.xlu0 0
  %1930 = vperm.xlu0 %1929, %v1926
  %v1931 = vpop.permute.xlu0 %1930
  %1934 = vset.pattern.permute.xlu0 0
  %1935 = vperm.xlu0 %1934, %v1927
  %v1936 = vpop.permute.xlu0 %1935
  %v1940 = vunpack.c.l.b16 %v1924
  %v1941 = vunpack.c.h.b16 %v1924
  %v1942 = vunpack.c.l.b16 %v1925
  %v1943 = vunpack.c.h.b16 %v1925
  %v1944 = vpack.c.b16 %v1942, %v1940
  %v1945 = vpack.c.b16 %v1943, %v1941
  %v1948 = vsel %vm493, %v1945, 0
  %1950 = vmatprep.subr.bf16.mxu0 0
  %1951 = vmatpush1.bf16.msra.mxu0 %v1873
  %1952 = vmatprep.subr.bf16.mxu0 0
  %1953 = vmatpush1.bf16.msra.mxu0 %v1880
  %1954 = vmatprep.subr.bf16.mxu0 0
  %1955 = vmatpush1.bf16.msra.mxu0 %v1887
  %1956 = vmatprep.subr.bf16.mxu0 0
  %1957 = vmatpush1.bf16.msra.mxu0 %v1894
  %1958 = vmatprep.subr.bf16.mxu0 0
  %1959 = vmatpush1.bf16.msra.mxu0 %v1895
  %1960 = vmatprep.subr.bf16.mxu0 0
  %1961 = vmatpush1.bf16.msra.mxu0 %v1902
  %1962 = vmatprep.subr.bf16.mxu0 0
  %1963 = vmatpush1.bf16.msra.mxu0 %v1909
  %1964 = vmatprep.subr.bf16.mxu0 0
  %1965 = vmatpush1.bf16.msra.mxu0 %v1916
  %1966 = vmatprep.subr.bf16.mxu0 0
  %1967 = vmatpush1.bf16.msra.mxu0 %v1923
  %1968 = vmatprep.subr.bf16.mxu0 0
  %1969 = vmatpush1.bf16.msra.mxu0 0
  %1970 = vmatprep.subr.bf16.mxu0 0
  %1971 = vmatpush1.bf16.msra.mxu0 0
  %1972 = vmatprep.subr.bf16.mxu0 0
  %1973 = vmatpush1.bf16.msra.mxu0 0
  %1974 = vmatprep.subr.bf16.mxu0 0
  %1975 = vmatpush1.bf16.msra.mxu0 0
  %1976 = vmatprep.subr.bf16.mxu0 0
  %1977 = vmatpush1.bf16.msra.mxu0 0
  %1978 = vmatprep.subr.bf16.mxu0 0
  %1979 = vmatpush1.bf16.msra.mxu0 0
  %1980 = vmatprep.subr.bf16.mxu0 0
  %1981 = vmatpush1.bf16.msra.mxu0 0
  %1982 = vmatprep.mubr.bf16.mxu0 %v1948
  %1983 = vmatmul.mubr.bf16.gmra.mrb[0].mxu0 %v1944
  %v1984 = vpop.f32.mrb[0].mxu0
  %v1985 = vadd.f32 %v1931, %v1984
  %v1986 = vpop.f32.mrb[0].mxu0
  %v1987 = vpop.f32.mrb[0].mxu0
  %v1988 = vadd.f32 %v1936, %v1987
  %v1989 = vpop.f32.mrb[0].mxu0
  %1990 = vdwg.mxu0
  %v1991 = vmax.f32 %v1985, 0.0
  %v1992 = vmax.f32 %v1988, 0.0
  %v1993 = vpack.c.bf16 %v1992, %v1991
  %v1994 = vld [vmem:[%s4] sm:$0xff]
  %v1995 = vld [vmem:[%s4 + $0x8] sm:$0xff]
  %v1996 = vld [vmem:[%s4 + $0x10] sm:$0xff]
  %v1997 = vld [vmem:[%s4 + $0x18] sm:$0xff]
  %v1998 = vld [vmem:[%s4 + $0x20] sm:$0xff]
  %v1999 = vld [vmem:[%s4 + $0x28] sm:$0xff]
  %v2000 = vld [vmem:[%s4 + $0x30] sm:$0xff]
  %v2001 = vld [vmem:[%s4 + $0x38] sm:$0xff]
  %v2002 = vld [vmem:[%s4 + $0x40] sm:$0xff]
  %v2003 = vld [vmem:[%s4 + $0x48] sm:$0xff]
  %v2004 = vld [vmem:[%s4 + $0x50] sm:$0xff]
  %v2005 = vld [vmem:[%s4 + $0x58] sm:$0xff]
  %v2006 = vld [vmem:[%s4 + $0x60] sm:$0xff]
  %v2007 = vld [vmem:[%s4 + $0x68] sm:$0xff]
  %v2008 = vld [vmem:[%s4 + $0x70] sm:$0xff]
  %v2009 = vld [vmem:[%s4 + $0x78] sm:$0xff]
  %v2010 = vld [vmem:[%s4 + $0x80] sm:$0xff]
  %v2011 = vld [vmem:[%s4 + $0x88] sm:$0xff]
  %v2012 = vld [vmem:[%s4 + $0x90] sm:$0xff]
  %v2013 = vld [vmem:[%s4 + $0x98] sm:$0xff]
  %v2014 = vld [vmem:[%s4 + $0xa0] sm:$0xff]
  %v2015 = vld [vmem:[%s4 + $0xa8] sm:$0xff]
  %v2016 = vld [vmem:[%s4 + $0xb0] sm:$0xff]
  %v2017 = vld [vmem:[%s4 + $0xb8] sm:$0xff]
  %v2018 = vld [vmem:[%s4 + $0xc0] sm:$0xff]
  %v2019 = vld [vmem:[%s4 + $0xc8] sm:$0xff]
  %v2020 = vld [vmem:[%s4 + $0xd0] sm:$0xff]
  %v2021 = vld [vmem:[%s4 + $0xd8] sm:$0xff]
  %v2022 = vld [vmem:[%s4 + $0xe0] sm:$0xff]
  %v2023 = vld [vmem:[%s4 + $0xe8] sm:$0xff]
  %v2024 = vld [vmem:[%s4 + $0xf0] sm:$0xff]
  %v2025 = vld [vmem:[%s4 + $0xf8] sm:$0xff]
  %v2058 = vunpack.c.l.b16 %v1994
  %v2059 = vunpack.c.h.b16 %v1994
  %v2060 = vunpack.c.l.b16 %v1995
  %v2061 = vunpack.c.h.b16 %v1995
  %v2062 = vunpack.c.l.b16 %v1996
  %v2063 = vunpack.c.h.b16 %v1996
  %v2064 = vunpack.c.l.b16 %v1997
  %v2065 = vunpack.c.h.b16 %v1997
  %v2066 = vunpack.c.l.b16 %v1998
  %v2067 = vunpack.c.h.b16 %v1998
  %v2068 = vunpack.c.l.b16 %v1999
  %v2069 = vunpack.c.h.b16 %v1999
  %v2070 = vunpack.c.l.b16 %v2000
  %v2071 = vunpack.c.h.b16 %v2000
  %v2072 = vunpack.c.l.b16 %v2001
  %v2073 = vunpack.c.h.b16 %v2001
  %v2074 = vunpack.c.l.b16 %v2002
  %v2075 = vunpack.c.h.b16 %v2002
  %v2076 = vunpack.c.l.b16 %v2003
  %v2077 = vunpack.c.h.b16 %v2003
  %v2078 = vunpack.c.l.b16 %v2004
  %v2079 = vunpack.c.h.b16 %v2004
  %v2080 = vunpack.c.l.b16 %v2005
  %v2081 = vunpack.c.h.b16 %v2005
  %v2082 = vunpack.c.l.b16 %v2006
  %v2083 = vunpack.c.h.b16 %v2006
  %v2084 = vunpack.c.l.b16 %v2007
  %v2085 = vunpack.c.h.b16 %v2007
  %v2086 = vunpack.c.l.b16 %v2008
  %v2087 = vunpack.c.h.b16 %v2008
  %v2088 = vunpack.c.l.b16 %v2009
  %v2089 = vunpack.c.h.b16 %v2009
  %v2090 = vunpack.c.l.b16 %v2010
  %v2091 = vunpack.c.h.b16 %v2010
  %v2092 = vunpack.c.l.b16 %v2011
  %v2093 = vunpack.c.h.b16 %v2011
  %v2094 = vunpack.c.l.b16 %v2012
  %v2095 = vunpack.c.h.b16 %v2012
  %v2096 = vunpack.c.l.b16 %v2013
  %v2097 = vunpack.c.h.b16 %v2013
  %v2098 = vunpack.c.l.b16 %v2014
  %v2099 = vunpack.c.h.b16 %v2014
  %v2100 = vunpack.c.l.b16 %v2015
  %v2101 = vunpack.c.h.b16 %v2015
  %v2102 = vunpack.c.l.b16 %v2016
  %v2103 = vunpack.c.h.b16 %v2016
  %v2104 = vunpack.c.l.b16 %v2017
  %v2105 = vunpack.c.h.b16 %v2017
  %v2106 = vunpack.c.l.b16 %v2018
  %v2107 = vunpack.c.h.b16 %v2018
  %v2108 = vunpack.c.l.b16 %v2019
  %v2109 = vunpack.c.h.b16 %v2019
  %v2110 = vunpack.c.l.b16 %v2020
  %v2111 = vunpack.c.h.b16 %v2020
  %v2112 = vunpack.c.l.b16 %v2021
  %v2113 = vunpack.c.h.b16 %v2021
  %v2114 = vunpack.c.l.b16 %v2022
  %v2115 = vunpack.c.h.b16 %v2022
  %v2116 = vunpack.c.l.b16 %v2023
  %v2117 = vunpack.c.h.b16 %v2023
  %v2118 = vunpack.c.l.b16 %v2024
  %v2119 = vunpack.c.h.b16 %v2024
  %v2120 = vunpack.c.l.b16 %v2025
  %v2121 = vunpack.c.h.b16 %v2025
  %v2122 = vpack.c.b16 %v2062, %v2058
  %v2123 = vpack.c.b16 %v2063, %v2059
  %v2124 = vpack.c.b16 %v2064, %v2060
  %v2125 = vpack.c.b16 %v2065, %v2061
  %v2126 = vpack.c.b16 %v2070, %v2066
  %v2127 = vpack.c.b16 %v2071, %v2067
  %v2128 = vpack.c.b16 %v2072, %v2068
  %v2129 = vpack.c.b16 %v2073, %v2069
  %v2130 = vpack.c.b16 %v2078, %v2074
  %v2131 = vpack.c.b16 %v2079, %v2075
  %v2132 = vpack.c.b16 %v2080, %v2076
  %v2133 = vpack.c.b16 %v2081, %v2077
  %v2134 = vpack.c.b16 %v2086, %v2082
  %v2135 = vpack.c.b16 %v2087, %v2083
  %v2136 = vpack.c.b16 %v2088, %v2084
  %v2137 = vpack.c.b16 %v2089, %v2085
  %v2138 = vpack.c.b16 %v2094, %v2090
  %v2139 = vpack.c.b16 %v2095, %v2091
  %v2140 = vpack.c.b16 %v2096, %v2092
  %v2141 = vpack.c.b16 %v2097, %v2093
  %v2142 = vpack.c.b16 %v2102, %v2098
  %v2143 = vpack.c.b16 %v2103, %v2099
  %v2144 = vpack.c.b16 %v2104, %v2100
  %v2145 = vpack.c.b16 %v2105, %v2101
  %v2146 = vpack.c.b16 %v2110, %v2106
  %v2147 = vpack.c.b16 %v2111, %v2107
  %v2148 = vpack.c.b16 %v2112, %v2108
  %v2149 = vpack.c.b16 %v2113, %v2109
  %v2150 = vpack.c.b16 %v2118, %v2114
  %v2151 = vpack.c.b16 %v2119, %v2115
  %v2152 = vpack.c.b16 %v2120, %v2116
  %v2153 = vpack.c.b16 %v2121, %v2117
  %2186 = vmatprep.subr.bf16.mxu0 %v2123
  %2187 = vmatpush1.bf16.msra.mxu0 %v2122
  %2188 = vmatprep.subr.bf16.mxu0 %v2127
  %2189 = vmatpush1.bf16.msra.mxu0 %v2126
  %2190 = vmatprep.subr.bf16.mxu0 %v2131
  %2191 = vmatpush1.bf16.msra.mxu0 %v2130
  %2192 = vmatprep.subr.bf16.mxu0 %v2135
  %2193 = vmatpush1.bf16.msra.mxu0 %v2134
  %2194 = vmatprep.subr.bf16.mxu0 %v2139
  %2195 = vmatpush1.bf16.msra.mxu0 %v2138
  %2196 = vmatprep.subr.bf16.mxu0 %v2143
  %2197 = vmatpush1.bf16.msra.mxu0 %v2142
  %2198 = vmatprep.subr.bf16.mxu0 %v2147
  %2199 = vmatpush1.bf16.msra.mxu0 %v2146
  %2200 = vmatprep.subr.bf16.mxu0 %v2151
  %2201 = vmatpush1.bf16.msra.mxu0 %v2150
  %2202 = vmatprep.subr.bf16.mxu0 0
  %2203 = vmatpush1.bf16.msra.mxu0 0
  %2204 = vmatprep.subr.bf16.mxu0 0
  %2205 = vmatpush1.bf16.msra.mxu0 0
  %2206 = vmatprep.subr.bf16.mxu0 0
  %2207 = vmatpush1.bf16.msra.mxu0 0
  %2208 = vmatprep.subr.bf16.mxu0 0
  %2209 = vmatpush1.bf16.msra.mxu0 0
  %2210 = vmatprep.subr.bf16.mxu0 0
  %2211 = vmatpush1.bf16.msra.mxu0 0
  %2212 = vmatprep.subr.bf16.mxu0 0
  %2213 = vmatpush1.bf16.msra.mxu0 0
  %2214 = vmatprep.subr.bf16.mxu0 0
  %2215 = vmatpush1.bf16.msra.mxu0 0
  %2216 = vmatprep.subr.bf16.mxu0 0
  %2217 = vmatpush1.bf16.msra.mxu0 0
  %2218 = vmatprep.mubr.bf16.mxu0 0
  %2219 = vmatmul.mubr.bf16.gmra.mrb[0].mxu0 %v1993
  %v2220 = vpop.f32.mrb[0].mxu0
  %v2221 = vadd.f32 0.0, %v2220
  %v2222 = vpop.f32.mrb[0].mxu0
  %v2223 = vadd.f32 0.0, %v2222
  %v2224 = vpop.f32.mrb[0].mxu0
  %v2225 = vadd.f32 0.0, %v2224
  %v2226 = vpop.f32.mrb[0].mxu0
  %v2227 = vadd.f32 0.0, %v2226
  %2228 = vdwg.mxu0
  %2229 = vmatprep.subr.bf16.mxu0 %v2125
  %2230 = vmatpush1.bf16.msra.mxu0 %v2124
  %2231 = vmatprep.subr.bf16.mxu0 %v2129
  %2232 = vmatpush1.bf16.msra.mxu0 %v2128
  %2233 = vmatprep.subr.bf16.mxu0 %v2133
  %2234 = vmatpush1.bf16.msra.mxu0 %v2132
  %2235 = vmatprep.subr.bf16.mxu0 %v2137
  %2236 = vmatpush1.bf16.msra.mxu0 %v2136
  %2237 = vmatprep.subr.bf16.mxu0 %v2141
  %2238 = vmatpush1.bf16.msra.mxu0 %v2140
  %2239 = vmatprep.subr.bf16.mxu0 %v2145
  %2240 = vmatpush1.bf16.msra.mxu0 %v2144
  %2241 = vmatprep.subr.bf16.mxu0 %v2149
  %2242 = vmatpush1.bf16.msra.mxu0 %v2148
  %2243 = vmatprep.subr.bf16.mxu0 %v2153
  %2244 = vmatpush1.bf16.msra.mxu0 %v2152
  %2245 = vmatprep.subr.bf16.mxu0 0
  %2246 = vmatpush1.bf16.msra.mxu0 0
  %2247 = vmatprep.subr.bf16.mxu0 0
  %2248 = vmatpush1.bf16.msra.mxu0 0
  %2249 = vmatprep.subr.bf16.mxu0 0
  %2250 = vmatpush1.bf16.msra.mxu0 0
  %2251 = vmatprep.subr.bf16.mxu0 0
  %2252 = vmatpush1.bf16.msra.mxu0 0
  %2253 = vmatprep.subr.bf16.mxu0 0
  %2254 = vmatpush1.bf16.msra.mxu0 0
  %2255 = vmatprep.subr.bf16.mxu0 0
  %2256 = vmatpush1.bf16.msra.mxu0 0
  %2257 = vmatprep.subr.bf16.mxu0 0
  %2258 = vmatpush1.bf16.msra.mxu0 0
  %2259 = vmatprep.subr.bf16.mxu0 0
  %2260 = vmatpush1.bf16.msra.mxu0 0
  %2261 = vmatprep.mubr.bf16.mxu0 0
  %2262 = vmatmul.mubr.bf16.gmra.mrb[0].mxu0 %v1993
  %v2263 = vpop.f32.mrb[0].mxu0
  %v2264 = vadd.f32 0.0, %v2263
  %v2265 = vpop.f32.mrb[0].mxu0
  %v2266 = vadd.f32 0.0, %v2265
  %v2267 = vpop.f32.mrb[0].mxu0
  %v2268 = vadd.f32 0.0, %v2267
  %v2269 = vpop.f32.mrb[0].mxu0
  %v2270 = vadd.f32 0.0, %v2269
  %2271 = vdwg.mxu0
  %v2272 = vld [vmem:[%s1 + $0x78] sm:$0xf]
  %v2273 = vld [vmem:[%s1 + $0x84] sm:$0xf]
  %v2274 = vld [vmem:[%s1 + $0x90] sm:$0xf]
  %v2275 = vld [vmem:[%s1 + $0x9c] sm:$0xf]
  %v2276 = vld [vmem:[%s1 + $0xa8] sm:$0xf]
  %v2277 = vld [vmem:[%s1 + $0xb4] sm:$0xf]
  %v2278 = vld [vmem:[%s1 + $0xc0] sm:$0xf]
  %v2279 = vld [vmem:[%s1 + $0xcc] sm:$0xf]
  %v2280 = vpack.c.bf16 %v2225, %v2221
  %v2281 = vpack.c.bf16 %v2227, %v2223
  %v2282 = vpack.c.bf16 %v2268, %v2264
  %v2283 = vpack.c.bf16 %v2270, %v2266
  %v2292 = vunpack.c.l.b16 %v2272
  %v2293 = vunpack.c.l.b16 %v2273
  %v2294 = vunpack.c.l.b16 %v2274
  %v2295 = vunpack.c.l.b16 %v2275
  %v2296 = vunpack.c.l.b16 %v2276
  %v2297 = vunpack.c.l.b16 %v2277
  %v2298 = vunpack.c.l.b16 %v2278
  %v2299 = vunpack.c.l.b16 %v2279
  %v2300 = vpack.c.b16 %v2293, %v2292
  %v2301 = vpack.c.b16 %v2295, %v2294
  %v2302 = vpack.c.b16 %v2297, %v2296
  %v2303 = vpack.c.b16 %v2299, %v2298
  %v2305 = vsel %vm493, %v2300, 0
  %v2308 = vsel %vm493, %v2301, 0
  %v2311 = vsel %vm493, %v2302, 0
  %v2314 = vsel %vm493, %v2303, 0
  %2316 = vmatprep.subr.bf16.mxu0 %v2281
  %2317 = vmatpush1.bf16.msra.mxu0 %v2280
  %2318 = vmatprep.subr.bf16.mxu0 0
  %2319 = vmatpush1.bf16.msra.mxu0 0
  %2320 = vmatprep.subr.bf16.mxu0 0
  %2321 = vmatpush1.bf16.msra.mxu0 0
  %2322 = vmatprep.subr.bf16.mxu0 0
  %2323 = vmatpush1.bf16.msra.mxu0 0
  %2324 = vmatprep.subr.bf16.mxu0 0
  %2325 = vmatpush1.bf16.msra.mxu0 0
  %2326 = vmatprep.subr.bf16.mxu0 0
  %2327 = vmatpush1.bf16.msra.mxu0 0
  %2328 = vmatprep.subr.bf16.mxu0 0
  %2329 = vmatpush1.bf16.msra.mxu0 0
  %2330 = vmatprep.subr.bf16.mxu0 0
  %2331 = vmatpush1.bf16.msra.mxu0 0
  %2332 = vmatprep.subr.bf16.mxu0 0
  %2333 = vmatpush1.bf16.msra.mxu0 0
  %2334 = vmatprep.subr.bf16.mxu0 0
  %2335 = vmatpush1.bf16.msra.mxu0 0
  %2336 = vmatprep.subr.bf16.mxu0 0
  %2337 = vmatpush1.bf16.msra.mxu0 0
  %2338 = vmatprep.subr.bf16.mxu0 0
  %2339 = vmatpush1.bf16.msra.mxu0 0
  %2340 = vmatprep.subr.bf16.mxu0 0
  %2341 = vmatpush1.bf16.msra.mxu0 0
  %2342 = vmatprep.subr.bf16.mxu0 0
  %2343 = vmatpush1.bf16.msra.mxu0 0
  %2344 = vmatprep.subr.bf16.mxu0 0
  %2345 = vmatpush1.bf16.msra.mxu0 0
  %2346 = vmatprep.subr.bf16.mxu0 0
  %2347 = vmatpush1.bf16.msra.mxu0 0
  %2348 = vmatprep.mubr.bf16.mxu0 0
  %2349 = vmatmul.mubr.bf16.gmra.mrb[0].mxu0 %v2305
  %v2350 = vpop.f32.mrb[0].mxu0
  %v2351 = vadd.f32 0.0, %v2350
  %v2352 = vpop.f32.mrb[0].mxu0
  %v2353 = vadd.f32 0.0, %v2352
  %v2354 = vpop.f32.mrb[0].mxu0
  %v2355 = vadd.f32 0.0, %v2354
  %v2356 = vpop.f32.mrb[0].mxu0
  %v2357 = vadd.f32 0.0, %v2356
  %2358 = vmatprep.mubr.bf16.mxu0 0
  %2359 = vmatmul.mubr.bf16.gmra.mrb[0].mxu0 %v2308
  %v2360 = vpop.f32.mrb[0].mxu0
  %v2361 = vadd.f32 0.0, %v2360
  %v2362 = vpop.f32.mrb[0].mxu0
  %v2363 = vadd.f32 0.0, %v2362
  %v2364 = vpop.f32.mrb[0].mxu0
  %v2365 = vadd.f32 0.0, %v2364
  %v2366 = vpop.f32.mrb[0].mxu0
  %v2367 = vadd.f32 0.0, %v2366
  %2368 = vmatprep.mubr.bf16.mxu0 0
  %2369 = vmatmul.mubr.bf16.gmra.mrb[0].mxu0 %v2311
  %v2370 = vpop.f32.mrb[0].mxu0
  %v2371 = vadd.f32 0.0, %v2370
  %v2372 = vpop.f32.mrb[0].mxu0
  %v2373 = vadd.f32 0.0, %v2372
  %v2374 = vpop.f32.mrb[0].mxu0
  %v2375 = vadd.f32 0.0, %v2374
  %v2376 = vpop.f32.mrb[0].mxu0
  %v2377 = vadd.f32 0.0, %v2376
  %2378 = vmatprep.mubr.bf16.mxu0 0
  %2379 = vmatmul.mubr.bf16.gmra.mrb[0].mxu0 %v2314
  %v2380 = vpop.f32.mrb[0].mxu0
  %v2381 = vadd.f32 0.0, %v2380
  %v2382 = vpop.f32.mrb[0].mxu0
  %v2383 = vadd.f32 0.0, %v2382
  %v2384 = vpop.f32.mrb[0].mxu0
  %v2385 = vadd.f32 0.0, %v2384
  %v2386 = vpop.f32.mrb[0].mxu0
  %v2387 = vadd.f32 0.0, %v2386
  %2388 = vdwg.mxu0
  %2389 = vmatprep.subr.bf16.mxu0 %v2283
  %2390 = vmatpush1.bf16.msra.mxu0 %v2282
  %2391 = vmatprep.subr.bf16.mxu0 0
  %2392 = vmatpush1.bf16.msra.mxu0 0
  %2393 = vmatprep.subr.bf16.mxu0 0
  %2394 = vmatpush1.bf16.msra.mxu0 0
  %2395 = vmatprep.subr.bf16.mxu0 0
  %2396 = vmatpush1.bf16.msra.mxu0 0
  %2397 = vmatprep.subr.bf16.mxu0 0
  %2398 = vmatpush1.bf16.msra.mxu0 0
  %2399 = vmatprep.subr.bf16.mxu0 0
  %2400 = vmatpush1.bf16.msra.mxu0 0
  %2401 = vmatprep.subr.bf16.mxu0 0
  %2402 = vmatpush1.bf16.msra.mxu0 0
  %2403 = vmatprep.subr.bf16.mxu0 0
  %2404 = vmatpush1.bf16.msra.mxu0 0
  %2405 = vmatprep.subr.bf16.mxu0 0
  %2406 = vmatpush1.bf16.msra.mxu0 0
  %2407 = vmatprep.subr.bf16.mxu0 0
  %2408 = vmatpush1.bf16.msra.mxu0 0
  %2409 = vmatprep.subr.bf16.mxu0 0
  %2410 = vmatpush1.bf16.msra.mxu0 0
  %2411 = vmatprep.subr.bf16.mxu0 0
  %2412 = vmatpush1.bf16.msra.mxu0 0
  %2413 = vmatprep.subr.bf16.mxu0 0
  %2414 = vmatpush1.bf16.msra.mxu0 0
  %2415 = vmatprep.subr.bf16.mxu0 0
  %2416 = vmatpush1.bf16.msra.mxu0 0
  %2417 = vmatprep.subr.bf16.mxu0 0
  %2418 = vmatpush1.bf16.msra.mxu0 0
  %2419 = vmatprep.subr.bf16.mxu0 0
  %2420 = vmatpush1.bf16.msra.mxu0 0
  %2421 = vmatprep.mubr.bf16.mxu0 0
  %2422 = vmatmul.mubr.bf16.gmra.mrb[0].mxu0 %v2305
  %v2423 = vpop.f32.mrb[0].mxu0
  %v2424 = vadd.f32 0.0, %v2423
  %v2425 = vpop.f32.mrb[0].mxu0
  %v2426 = vadd.f32 0.0, %v2425
  %v2427 = vpop.f32.mrb[0].mxu0
  %v2428 = vadd.f32 0.0, %v2427
  %v2429 = vpop.f32.mrb[0].mxu0
  %v2430 = vadd.f32 0.0, %v2429
  %2431 = vmatprep.mubr.bf16.mxu0 0
  %2432 = vmatmul.mubr.bf16.gmra.mrb[0].mxu0 %v2308
  %v2433 = vpop.f32.mrb[0].mxu0
  %v2434 = vadd.f32 0.0, %v2433
  %v2435 = vpop.f32.mrb[0].mxu0
  %v2436 = vadd.f32 0.0, %v2435
  %v2437 = vpop.f32.mrb[0].mxu0
  %v2438 = vadd.f32 0.0, %v2437
  %v2439 = vpop.f32.mrb[0].mxu0
  %v2440 = vadd.f32 0.0, %v2439
  %2441 = vmatprep.mubr.bf16.mxu0 0
  %2442 = vmatmul.mubr.bf16.gmra.mrb[0].mxu0 %v2311
  %v2443 = vpop.f32.mrb[0].mxu0
  %v2444 = vadd.f32 0.0, %v2443
  %v2445 = vpop.f32.mrb[0].mxu0
  %v2446 = vadd.f32 0.0, %v2445
  %v2447 = vpop.f32.mrb[0].mxu0
  %v2448 = vadd.f32 0.0, %v2447
  %v2449 = vpop.f32.mrb[0].mxu0
  %v2450 = vadd.f32 0.0, %v2449
  %2451 = vmatprep.mubr.bf16.mxu0 0
  %2452 = vmatmul.mubr.bf16.gmra.mrb[0].mxu0 %v2314
  %v2453 = vpop.f32.mrb[0].mxu0
  %v2454 = vadd.f32 0.0, %v2453
  %v2455 = vpop.f32.mrb[0].mxu0
  %v2456 = vadd.f32 0.0, %v2455
  %v2457 = vpop.f32.mrb[0].mxu0
  %v2458 = vadd.f32 0.0, %v2457
  %v2459 = vpop.f32.mrb[0].mxu0
  %v2460 = vadd.f32 0.0, %v2459
  %2461 = vdwg.mxu0
  %2462 = vrot.lane.b32.xlu0 %v2361, 1
  %v2463 = vpop.permute.xlu0 %2462
  %2464 = vrot.lane.b32.xlu0 %v2365, 1
  %v2465 = vpop.permute.xlu0 %2464
  %2466 = vrot.lane.b32.xlu0 %v2363, 1
  %v2467 = vpop.permute.xlu0 %2466
  %2468 = vrot.lane.b32.xlu0 %v2367, 1
  %v2469 = vpop.permute.xlu0 %2468
  %2470 = vrot.lane.b32.xlu0 %v2434, 1
  %v2471 = vpop.permute.xlu0 %2470
  %2472 = vrot.lane.b32.xlu0 %v2438, 1
  %v2473 = vpop.permute.xlu0 %2472
  %2474 = vrot.lane.b32.xlu0 %v2436, 1
  %v2475 = vpop.permute.xlu0 %2474
  %2476 = vrot.lane.b32.xlu0 %v2440, 1
  %v2477 = vpop.permute.xlu0 %2476
  %v2478 = vsel %vm297, %v2471, %v2475
  %v2479 = vsel %vm297, %v2473, %v2477
  %v2480 = vsel %vm297, %v2467, %v2471
  %v2481 = vsel %vm297, %v2469, %v2473
  %v2482 = vsel %vm297, %v2463, %v2467
  %v2483 = vsel %vm297, %v2465, %v2469
  %v2484 = vsel %vm297, %v2475, %v2463
  %v2485 = vsel %vm297, %v2477, %v2465
  %v2486 = vadd.f32 %v2351, %v2484
  %v2487 = vadd.f32 %v2353, %v2482
  %v2488 = vadd.f32 %v2424, %v2480
  %v2489 = vadd.f32 %v2426, %v2478
  %v2490 = vadd.f32 %v2355, %v2485
  %v2491 = vadd.f32 %v2357, %v2483
  %v2492 = vadd.f32 %v2428, %v2481
  %v2493 = vadd.f32 %v2430, %v2479
  %2494 = vrot.lane.b32.xlu0 %v2371, 16
  %v2495 = vpop.permute.xlu0 %2494
  %2496 = vrot.lane.b32.xlu0 %v2375, 16
  %v2497 = vpop.permute.xlu0 %2496
  %2498 = vrot.lane.b32.xlu0 %v2373, 16
  %v2499 = vpop.permute.xlu0 %2498
  %2500 = vrot.lane.b32.xlu0 %v2377, 16
  %v2501 = vpop.permute.xlu0 %2500
  %2502 = vrot.lane.b32.xlu0 %v2444, 16
  %v2503 = vpop.permute.xlu0 %2502
  %2504 = vrot.lane.b32.xlu0 %v2448, 16
  %v2505 = vpop.permute.xlu0 %2504
  %2506 = vrot.lane.b32.xlu0 %v2446, 16
  %v2507 = vpop.permute.xlu0 %2506
  %2508 = vrot.lane.b32.xlu0 %v2450, 16
  %v2509 = vpop.permute.xlu0 %2508
  %v2510 = vsel %vm223, %v2503, %v2507
  %v2511 = vsel %vm223, %v2505, %v2509
  %v2512 = vsel %vm223, %v2499, %v2503
  %v2513 = vsel %vm223, %v2501, %v2505
  %v2514 = vsel %vm223, %v2495, %v2499
  %v2515 = vsel %vm223, %v2497, %v2501
  %v2516 = vsel %vm223, %v2507, %v2495
  %v2517 = vsel %vm223, %v2509, %v2497
  %v2518 = vadd.f32 %v2486, %v2516
  %v2519 = vadd.f32 %v2487, %v2514
  %v2520 = vadd.f32 %v2488, %v2512
  %v2521 = vadd.f32 %v2489, %v2510
  %v2522 = vadd.f32 %v2490, %v2517
  %v2523 = vadd.f32 %v2491, %v2515
  %v2524 = vadd.f32 %v2492, %v2513
  %v2525 = vadd.f32 %v2493, %v2511
  %2526 = vrot.lane.b32.xlu0 %v2381, 17
  %v2527 = vpop.permute.xlu0 %2526
  %2528 = vrot.lane.b32.xlu0 %v2385, 17
  %v2529 = vpop.permute.xlu0 %2528
  %2530 = vrot.lane.b32.xlu0 %v2383, 17
  %v2531 = vpop.permute.xlu0 %2530
  %2532 = vrot.lane.b32.xlu0 %v2387, 17
  %v2533 = vpop.permute.xlu0 %2532
  %2534 = vrot.lane.b32.xlu0 %v2454, 17
  %v2535 = vpop.permute.xlu0 %2534
  %2536 = vrot.lane.b32.xlu0 %v2458, 17
  %v2537 = vpop.permute.xlu0 %2536
  %2538 = vrot.lane.b32.xlu0 %v2456, 17
  %v2539 = vpop.permute.xlu0 %2538
  %2540 = vrot.lane.b32.xlu0 %v2460, 17
  %v2541 = vpop.permute.xlu0 %2540
  %v2542 = vsel %vm186, %v2535, %v2539
  %v2543 = vsel %vm186, %v2537, %v2541
  %v2544 = vsel %vm186, %v2531, %v2535
  %v2545 = vsel %vm186, %v2533, %v2537
  %v2546 = vsel %vm186, %v2527, %v2531
  %v2547 = vsel %vm186, %v2529, %v2533
  %v2548 = vsel %vm186, %v2539, %v2527
  %v2549 = vsel %vm186, %v2541, %v2529
  %v2550 = vadd.f32 %v2518, %v2548
  %v2551 = vadd.f32 %v2519, %v2546
  %v2552 = vadd.f32 %v2520, %v2544
  %v2553 = vadd.f32 %v2521, %v2542
  %v2554 = vadd.f32 %v2522, %v2549
  %v2555 = vadd.f32 %v2523, %v2547
  %v2556 = vadd.f32 %v2524, %v2545
  %v2557 = vadd.f32 %v2525, %v2543
  %v2558 = vld [vmem:[%s2 + $0x50] sm:$0xff]
  %v2559 = vld [vmem:[%s2 + $0x58] sm:$0xff]
  %2561 = vset.pattern.permute.xlu0 0
  %2562 = vperm.xlu0 %2561, %v2558
  %v2563 = vpop.permute.xlu0 %2562
  %2566 = vset.pattern.permute.xlu0 0
  %2567 = vperm.xlu0 %2566, %v2559
  %v2568 = vpop.permute.xlu0 %2567
  %v2570 = vadd.f32 %v2550, %v2563
  %v2571 = vadd.f32 %v2551, %v2563
  %v2572 = vadd.f32 %v2552, %v2563
  %v2573 = vadd.f32 %v2553, %v2563
  %v2574 = vadd.f32 %v2554, %v2568
  %v2575 = vadd.f32 %v2555, %v2568
  %v2576 = vadd.f32 %v2556, %v2568
  %v2577 = vadd.f32 %v2557, %v2568
  %v2578 = vmax.f32 %v2570, 0.0
  %v2579 = vmax.f32 %v2571, 0.0
  %v2580 = vmax.f32 %v2572, 0.0
  %v2581 = vmax.f32 %v2573, 0.0
  %v2582 = vmax.f32 %v2574, 0.0
  %v2583 = vmax.f32 %v2575, 0.0
  %v2584 = vmax.f32 %v2576, 0.0
  %v2585 = vmax.f32 %v2577, 0.0
  %2586 = vrot.lane.b32.xlu0 %v1115, 17
  %v2587 = vpop.permute.xlu0 %2586
  %2588 = vrot.lane.b32.xlu0 %v1119, 17
  %v2589 = vpop.permute.xlu0 %2588
  %2590 = vrot.lane.b32.xlu0 %v2578, 17
  %v2591 = vpop.permute.xlu0 %2590
  %2592 = vrot.lane.b32.xlu0 %v2582, 17
  %v2593 = vpop.permute.xlu0 %2592
  %2594 = vrot.lane.b32.xlu0 %v1116, 17
  %v2595 = vpop.permute.xlu0 %2594
  %2596 = vrot.lane.b32.xlu0 %v1120, 17
  %v2597 = vpop.permute.xlu0 %2596
  %2598 = vrot.lane.b32.xlu0 %v2579, 17
  %v2599 = vpop.permute.xlu0 %2598
  %2600 = vrot.lane.b32.xlu0 %v2583, 17
  %v2601 = vpop.permute.xlu0 %2600
  %2602 = vrot.lane.b32.xlu0 %v1117, 17
  %v2603 = vpop.permute.xlu0 %2602
  %2604 = vrot.lane.b32.xlu0 %v1121, 17
  %v2605 = vpop.permute.xlu0 %2604
  %2606 = vrot.lane.b32.xlu0 %v2580, 17
  %v2607 = vpop.permute.xlu0 %2606
  %2608 = vrot.lane.b32.xlu0 %v2584, 17
  %v2609 = vpop.permute.xlu0 %2608
  %2610 = vrot.lane.b32.xlu0 %v1118, 17
  %v2611 = vpop.permute.xlu0 %2610
  %2612 = vrot.lane.b32.xlu0 %v1122, 17
  %v2613 = vpop.permute.xlu0 %2612
  %2614 = vrot.lane.b32.xlu0 %v2581, 17
  %v2615 = vpop.permute.xlu0 %2614
  %2616 = vrot.lane.b32.xlu0 %v2585, 17
  %v2617 = vpop.permute.xlu0 %2616
  %v2618 = vsel %vm186, %v2603, %v2611
  %v2619 = vsel %vm186, %v2605, %v2613
  %v2620 = vsel %vm186, %v2607, %v2615
  %v2621 = vsel %vm186, %v2609, %v2617
  %v2622 = vsel %vm186, %v2595, %v2603
  %v2623 = vsel %vm186, %v2597, %v2605
  %v2624 = vsel %vm186, %v2599, %v2607
  %v2625 = vsel %vm186, %v2601, %v2609
  %v2626 = vsel %vm186, %v2587, %v2595
  %v2627 = vsel %vm186, %v2589, %v2597
  %v2628 = vsel %vm186, %v2591, %v2599
  %v2629 = vsel %vm186, %v2593, %v2601
  %v2630 = vsel %vm186, %v2611, %v2587
  %v2631 = vsel %vm186, %v2613, %v2589
  %v2632 = vsel %vm186, %v2615, %v2591
  %v2633 = vsel %vm186, %v2617, %v2593
  %v2634 = vmul.f32 %v2630, %v62
  %v2635 = vmul.f32 %v2626, %v63
  %v2636 = vmul.f32 %v2622, %v64
  %v2637 = vmul.f32 %v2618, %v65
  %v2638 = vmul.f32 %v2631, %v62
  %v2639 = vmul.f32 %v2627, %v63
  %v2640 = vmul.f32 %v2623, %v64
  %v2641 = vmul.f32 %v2619, %v65
  %v2642 = vmul.f32 %v2632, %v62
  %v2643 = vmul.f32 %v2628, %v63
  %v2644 = vmul.f32 %v2624, %v64
  %v2645 = vmul.f32 %v2620, %v65
  %v2646 = vmul.f32 %v2633, %v62
  %v2647 = vmul.f32 %v2629, %v63
  %v2648 = vmul.f32 %v2625, %v64
  %v2649 = vmul.f32 %v2621, %v65
  %v2650 = vpack.c.bf16 %v2638, %v2634
  %v2651 = vpack.c.bf16 %v2639, %v2635
  %v2652 = vpack.c.bf16 %v2640, %v2636
  %v2653 = vpack.c.bf16 %v2641, %v2637
  %v2654 = vpack.c.bf16 %v2646, %v2642
  %v2655 = vpack.c.bf16 %v2647, %v2643
  %v2656 = vpack.c.bf16 %v2648, %v2644
  %v2657 = vpack.c.bf16 %v2649, %v2645
  %2658 = vrot.lane.b32.xlu0 %v1115, 16
  %v2659 = vpop.permute.xlu0 %2658
  %2660 = vrot.lane.b32.xlu0 %v1119, 16
  %v2661 = vpop.permute.xlu0 %2660
  %2662 = vrot.lane.b32.xlu0 %v2578, 16
  %v2663 = vpop.permute.xlu0 %2662
  %2664 = vrot.lane.b32.xlu0 %v2582, 16
  %v2665 = vpop.permute.xlu0 %2664
  %2666 = vrot.lane.b32.xlu0 %v1116, 16
  %v2667 = vpop.permute.xlu0 %2666
  %2668 = vrot.lane.b32.xlu0 %v1120, 16
  %v2669 = vpop.permute.xlu0 %2668
  %2670 = vrot.lane.b32.xlu0 %v2579, 16
  %v2671 = vpop.permute.xlu0 %2670
  %2672 = vrot.lane.b32.xlu0 %v2583, 16
  %v2673 = vpop.permute.xlu0 %2672
  %2674 = vrot.lane.b32.xlu0 %v1117, 16
  %v2675 = vpop.permute.xlu0 %2674
  %2676 = vrot.lane.b32.xlu0 %v1121, 16
  %v2677 = vpop.permute.xlu0 %2676
  %2678 = vrot.lane.b32.xlu0 %v2580, 16
  %v2679 = vpop.permute.xlu0 %2678
  %2680 = vrot.lane.b32.xlu0 %v2584, 16
  %v2681 = vpop.permute.xlu0 %2680
  %2682 = vrot.lane.b32.xlu0 %v1118, 16
  %v2683 = vpop.permute.xlu0 %2682
  %2684 = vrot.lane.b32.xlu0 %v1122, 16
  %v2685 = vpop.permute.xlu0 %2684
  %2686 = vrot.lane.b32.xlu0 %v2581, 16
  %v2687 = vpop.permute.xlu0 %2686
  %2688 = vrot.lane.b32.xlu0 %v2585, 16
  %v2689 = vpop.permute.xlu0 %2688
  %v2690 = vsel %vm223, %v2675, %v2683
  %v2691 = vsel %vm223, %v2677, %v2685
  %v2692 = vsel %vm223, %v2679, %v2687
  %v2693 = vsel %vm223, %v2681, %v2689
  %v2694 = vsel %vm223, %v2667, %v2675
  %v2695 = vsel %vm223, %v2669, %v2677
  %v2696 = vsel %vm223, %v2671, %v2679
  %v2697 = vsel %vm223, %v2673, %v2681
  %v2698 = vsel %vm223, %v2659, %v2667
  %v2699 = vsel %vm223, %v2661, %v2669
  %v2700 = vsel %vm223, %v2663, %v2671
  %v2701 = vsel %vm223, %v2665, %v2673
  %v2702 = vsel %vm223, %v2683, %v2659
  %v2703 = vsel %vm223, %v2685, %v2661
  %v2704 = vsel %vm223, %v2687, %v2663
  %v2705 = vsel %vm223, %v2689, %v2665
  %v2706 = vmul.f32 %v2702, %v70
  %v2707 = vmul.f32 %v2698, %v71
  %v2708 = vmul.f32 %v2694, %v72
  %v2709 = vmul.f32 %v2690, %v73
  %v2710 = vmul.f32 %v2703, %v70
  %v2711 = vmul.f32 %v2699, %v71
  %v2712 = vmul.f32 %v2695, %v72
  %v2713 = vmul.f32 %v2691, %v73
  %v2714 = vmul.f32 %v2704, %v70
  %v2715 = vmul.f32 %v2700, %v71
  %v2716 = vmul.f32 %v2696, %v72
  %v2717 = vmul.f32 %v2692, %v73
  %v2718 = vmul.f32 %v2705, %v70
  %v2719 = vmul.f32 %v2701, %v71
  %v2720 = vmul.f32 %v2697, %v72
  %v2721 = vmul.f32 %v2693, %v73
  %v2722 = vpack.c.bf16 %v2710, %v2706
  %v2723 = vpack.c.bf16 %v2711, %v2707
  %v2724 = vpack.c.bf16 %v2712, %v2708
  %v2725 = vpack.c.bf16 %v2713, %v2709
  %v2726 = vpack.c.bf16 %v2718, %v2714
  %v2727 = vpack.c.bf16 %v2719, %v2715
  %v2728 = vpack.c.bf16 %v2720, %v2716
  %v2729 = vpack.c.bf16 %v2721, %v2717
  %2730 = vrot.lane.b32.xlu0 %v1115, 15
  %v2731 = vpop.permute.xlu0 %2730
  %2732 = vrot.lane.b32.xlu0 %v1119, 15
  %v2733 = vpop.permute.xlu0 %2732
  %2734 = vrot.lane.b32.xlu0 %v2578, 15
  %v2735 = vpop.permute.xlu0 %2734
  %2736 = vrot.lane.b32.xlu0 %v2582, 15
  %v2737 = vpop.permute.xlu0 %2736
  %2738 = vrot.lane.b32.xlu0 %v1116, 15
  %v2739 = vpop.permute.xlu0 %2738
  %2740 = vrot.lane.b32.xlu0 %v1120, 15
  %v2741 = vpop.permute.xlu0 %2740
  %2742 = vrot.lane.b32.xlu0 %v2579, 15
  %v2743 = vpop.permute.xlu0 %2742
  %2744 = vrot.lane.b32.xlu0 %v2583, 15
  %v2745 = vpop.permute.xlu0 %2744
  %2746 = vrot.lane.b32.xlu0 %v1117, 15
  %v2747 = vpop.permute.xlu0 %2746
  %2748 = vrot.lane.b32.xlu0 %v1121, 15
  %v2749 = vpop.permute.xlu0 %2748
  %2750 = vrot.lane.b32.xlu0 %v2580, 15
  %v2751 = vpop.permute.xlu0 %2750
  %2752 = vrot.lane.b32.xlu0 %v2584, 15
  %v2753 = vpop.permute.xlu0 %2752
  %2754 = vrot.lane.b32.xlu0 %v1118, 15
  %v2755 = vpop.permute.xlu0 %2754
  %2756 = vrot.lane.b32.xlu0 %v1122, 15
  %v2757 = vpop.permute.xlu0 %2756
  %2758 = vrot.lane.b32.xlu0 %v2581, 15
  %v2759 = vpop.permute.xlu0 %2758
  %2760 = vrot.lane.b32.xlu0 %v2585, 15
  %v2761 = vpop.permute.xlu0 %2760
  %v2762 = vsel %vm260, %v2747, %v2755
  %v2763 = vsel %vm260, %v2749, %v2757
  %v2764 = vsel %vm260, %v2751, %v2759
  %v2765 = vsel %vm260, %v2753, %v2761
  %v2766 = vsel %vm260, %v2739, %v2747
  %v2767 = vsel %vm260, %v2741, %v2749
  %v2768 = vsel %vm260, %v2743, %v2751
  %v2769 = vsel %vm260, %v2745, %v2753
  %v2770 = vsel %vm260, %v2731, %v2739
  %v2771 = vsel %vm260, %v2733, %v2741
  %v2772 = vsel %vm260, %v2735, %v2743
  %v2773 = vsel %vm260, %v2737, %v2745
  %v2774 = vsel %vm260, %v2755, %v2731
  %v2775 = vsel %vm260, %v2757, %v2733
  %v2776 = vsel %vm260, %v2759, %v2735
  %v2777 = vsel %vm260, %v2761, %v2737
  %v2778 = vmul.f32 %v2774, %v82
  %v2779 = vmul.f32 %v2770, %v83
  %v2780 = vmul.f32 %v2766, %v84
  %v2781 = vmul.f32 %v2762, %v85
  %v2782 = vmul.f32 %v2775, %v82
  %v2783 = vmul.f32 %v2771, %v83
  %v2784 = vmul.f32 %v2767, %v84
  %v2785 = vmul.f32 %v2763, %v85
  %v2786 = vmul.f32 %v2776, %v82
  %v2787 = vmul.f32 %v2772, %v83
  %v2788 = vmul.f32 %v2768, %v84
  %v2789 = vmul.f32 %v2764, %v85
  %v2790 = vmul.f32 %v2777, %v82
  %v2791 = vmul.f32 %v2773, %v83
  %v2792 = vmul.f32 %v2769, %v84
  %v2793 = vmul.f32 %v2765, %v85
  %v2794 = vpack.c.bf16 %v2782, %v2778
  %v2795 = vpack.c.bf16 %v2783, %v2779
  %v2796 = vpack.c.bf16 %v2784, %v2780
  %v2797 = vpack.c.bf16 %v2785, %v2781
  %v2798 = vpack.c.bf16 %v2790, %v2786
  %v2799 = vpack.c.bf16 %v2791, %v2787
  %v2800 = vpack.c.bf16 %v2792, %v2788
  %v2801 = vpack.c.bf16 %v2793, %v2789
  %2802 = vrot.lane.b32.xlu0 %v1115, 1
  %v2803 = vpop.permute.xlu0 %2802
  %2804 = vrot.lane.b32.xlu0 %v1119, 1
  %v2805 = vpop.permute.xlu0 %2804
  %2806 = vrot.lane.b32.xlu0 %v2578, 1
  %v2807 = vpop.permute.xlu0 %2806
  %2808 = vrot.lane.b32.xlu0 %v2582, 1
  %v2809 = vpop.permute.xlu0 %2808
  %2810 = vrot.lane.b32.xlu0 %v1116, 1
  %v2811 = vpop.permute.xlu0 %2810
  %2812 = vrot.lane.b32.xlu0 %v1120, 1
  %v2813 = vpop.permute.xlu0 %2812
  %2814 = vrot.lane.b32.xlu0 %v2579, 1
  %v2815 = vpop.permute.xlu0 %2814
  %2816 = vrot.lane.b32.xlu0 %v2583, 1
  %v2817 = vpop.permute.xlu0 %2816
  %2818 = vrot.lane.b32.xlu0 %v1117, 1
  %v2819 = vpop.permute.xlu0 %2818
  %2820 = vrot.lane.b32.xlu0 %v1121, 1
  %v2821 = vpop.permute.xlu0 %2820
  %2822 = vrot.lane.b32.xlu0 %v2580, 1
  %v2823 = vpop.permute.xlu0 %2822
  %2824 = vrot.lane.b32.xlu0 %v2584, 1
  %v2825 = vpop.permute.xlu0 %2824
  %2826 = vrot.lane.b32.xlu0 %v1118, 1
  %v2827 = vpop.permute.xlu0 %2826
  %2828 = vrot.lane.b32.xlu0 %v1122, 1
  %v2829 = vpop.permute.xlu0 %2828
  %2830 = vrot.lane.b32.xlu0 %v2581, 1
  %v2831 = vpop.permute.xlu0 %2830
  %2832 = vrot.lane.b32.xlu0 %v2585, 1
  %v2833 = vpop.permute.xlu0 %2832
  %v2834 = vsel %vm297, %v2819, %v2827
  %v2835 = vsel %vm297, %v2821, %v2829
  %v2836 = vsel %vm297, %v2823, %v2831
  %v2837 = vsel %vm297, %v2825, %v2833
  %v2838 = vsel %vm297, %v2811, %v2819
  %v2839 = vsel %vm297, %v2813, %v2821
  %v2840 = vsel %vm297, %v2815, %v2823
  %v2841 = vsel %vm297, %v2817, %v2825
  %v2842 = vsel %vm297, %v2803, %v2811
  %v2843 = vsel %vm297, %v2805, %v2813
  %v2844 = vsel %vm297, %v2807, %v2815
  %v2845 = vsel %vm297, %v2809, %v2817
  %v2846 = vsel %vm297, %v2827, %v2803
  %v2847 = vsel %vm297, %v2829, %v2805
  %v2848 = vsel %vm297, %v2831, %v2807
  %v2849 = vsel %vm297, %v2833, %v2809
  %v2850 = vmul.f32 %v2846, %v90
  %v2851 = vmul.f32 %v2842, %v91
  %v2852 = vmul.f32 %v2838, %v92
  %v2853 = vmul.f32 %v2834, %v93
  %v2854 = vmul.f32 %v2847, %v90
  %v2855 = vmul.f32 %v2843, %v91
  %v2856 = vmul.f32 %v2839, %v92
  %v2857 = vmul.f32 %v2835, %v93
  %v2858 = vmul.f32 %v2848, %v90
  %v2859 = vmul.f32 %v2844, %v91
  %v2860 = vmul.f32 %v2840, %v92
  %v2861 = vmul.f32 %v2836, %v93
  %v2862 = vmul.f32 %v2849, %v90
  %v2863 = vmul.f32 %v2845, %v91
  %v2864 = vmul.f32 %v2841, %v92
  %v2865 = vmul.f32 %v2837, %v93
  %v2866 = vpack.c.bf16 %v2854, %v2850
  %v2867 = vpack.c.bf16 %v2855, %v2851
  %v2868 = vpack.c.bf16 %v2856, %v2852
  %v2869 = vpack.c.bf16 %v2857, %v2853
  %v2870 = vpack.c.bf16 %v2862, %v2858
  %v2871 = vpack.c.bf16 %v2863, %v2859
  %v2872 = vpack.c.bf16 %v2864, %v2860
  %v2873 = vpack.c.bf16 %v2865, %v2861
  %v2874 = vpack.c.bf16 %v1119, %v1115
  %v2875 = vpack.c.bf16 %v1120, %v1116
  %v2876 = vpack.c.bf16 %v1121, %v1117
  %v2877 = vpack.c.bf16 %v1122, %v1118
  %v2878 = vpack.c.bf16 %v2582, %v2578
  %v2879 = vpack.c.bf16 %v2583, %v2579
  %v2880 = vpack.c.bf16 %v2584, %v2580
  %v2881 = vpack.c.bf16 %v2585, %v2581
  %2882 = vrot.lane.b32.xlu0 %v1115, 127
  %v2883 = vpop.permute.xlu0 %2882
  %2884 = vrot.lane.b32.xlu0 %v1119, 127
  %v2885 = vpop.permute.xlu0 %2884
  %2886 = vrot.lane.b32.xlu0 %v2578, 127
  %v2887 = vpop.permute.xlu0 %2886
  %2888 = vrot.lane.b32.xlu0 %v2582, 127
  %v2889 = vpop.permute.xlu0 %2888
  %2890 = vrot.lane.b32.xlu0 %v1116, 127
  %v2891 = vpop.permute.xlu0 %2890
  %2892 = vrot.lane.b32.xlu0 %v1120, 127
  %v2893 = vpop.permute.xlu0 %2892
  %2894 = vrot.lane.b32.xlu0 %v2579, 127
  %v2895 = vpop.permute.xlu0 %2894
  %2896 = vrot.lane.b32.xlu0 %v2583, 127
  %v2897 = vpop.permute.xlu0 %2896
  %2898 = vrot.lane.b32.xlu0 %v1117, 127
  %v2899 = vpop.permute.xlu0 %2898
  %2900 = vrot.lane.b32.xlu0 %v1121, 127
  %v2901 = vpop.permute.xlu0 %2900
  %2902 = vrot.lane.b32.xlu0 %v2580, 127
  %v2903 = vpop.permute.xlu0 %2902
  %2904 = vrot.lane.b32.xlu0 %v2584, 127
  %v2905 = vpop.permute.xlu0 %2904
  %2906 = vrot.lane.b32.xlu0 %v1118, 127
  %v2907 = vpop.permute.xlu0 %2906
  %2908 = vrot.lane.b32.xlu0 %v1122, 127
  %v2909 = vpop.permute.xlu0 %2908
  %2910 = vrot.lane.b32.xlu0 %v2581, 127
  %v2911 = vpop.permute.xlu0 %2910
  %2912 = vrot.lane.b32.xlu0 %v2585, 127
  %v2913 = vpop.permute.xlu0 %2912
  %v2914 = vsel %vm338, %v2899, %v2907
  %v2915 = vsel %vm338, %v2901, %v2909
  %v2916 = vsel %vm338, %v2903, %v2911
  %v2917 = vsel %vm338, %v2905, %v2913
  %v2918 = vsel %vm338, %v2891, %v2899
  %v2919 = vsel %vm338, %v2893, %v2901
  %v2920 = vsel %vm338, %v2895, %v2903
  %v2921 = vsel %vm338, %v2897, %v2905
  %v2922 = vsel %vm338, %v2883, %v2891
  %v2923 = vsel %vm338, %v2885, %v2893
  %v2924 = vsel %vm338, %v2887, %v2895
  %v2925 = vsel %vm338, %v2889, %v2897
  %v2926 = vsel %vm338, %v2907, %v2883
  %v2927 = vsel %vm338, %v2909, %v2885
  %v2928 = vsel %vm338, %v2911, %v2887
  %v2929 = vsel %vm338, %v2913, %v2889
  %v2930 = vmul.f32 %v2922, %v98
  %v2931 = vmul.f32 %v2918, %v99
  %v2932 = vmul.f32 %v2914, %v100
  %v2933 = vmul.f32 %v2926, %v101
  %v2934 = vmul.f32 %v2923, %v98
  %v2935 = vmul.f32 %v2919, %v99
  %v2936 = vmul.f32 %v2915, %v100
  %v2937 = vmul.f32 %v2927, %v101
  %v2938 = vmul.f32 %v2924, %v98
  %v2939 = vmul.f32 %v2920, %v99
  %v2940 = vmul.f32 %v2916, %v100
  %v2941 = vmul.f32 %v2928, %v101
  %v2942 = vmul.f32 %v2925, %v98
  %v2943 = vmul.f32 %v2921, %v99
  %v2944 = vmul.f32 %v2917, %v100
  %v2945 = vmul.f32 %v2929, %v101
  %v2946 = vpack.c.bf16 %v2934, %v2930
  %v2947 = vpack.c.bf16 %v2935, %v2931
  %v2948 = vpack.c.bf16 %v2936, %v2932
  %v2949 = vpack.c.bf16 %v2937, %v2933
  %v2950 = vpack.c.bf16 %v2942, %v2938
  %v2951 = vpack.c.bf16 %v2943, %v2939
  %v2952 = vpack.c.bf16 %v2944, %v2940
  %v2953 = vpack.c.bf16 %v2945, %v2941
  %2954 = vrot.lane.b32.xlu0 %v1115, 113
  %v2955 = vpop.permute.xlu0 %2954
  %2956 = vrot.lane.b32.xlu0 %v1119, 113
  %v2957 = vpop.permute.xlu0 %2956
  %2958 = vrot.lane.b32.xlu0 %v2578, 113
  %v2959 = vpop.permute.xlu0 %2958
  %2960 = vrot.lane.b32.xlu0 %v2582, 113
  %v2961 = vpop.permute.xlu0 %2960
  %2962 = vrot.lane.b32.xlu0 %v1116, 113
  %v2963 = vpop.permute.xlu0 %2962
  %2964 = vrot.lane.b32.xlu0 %v1120, 113
  %v2965 = vpop.permute.xlu0 %2964
  %2966 = vrot.lane.b32.xlu0 %v2579, 113
  %v2967 = vpop.permute.xlu0 %2966
  %2968 = vrot.lane.b32.xlu0 %v2583, 113
  %v2969 = vpop.permute.xlu0 %2968
  %2970 = vrot.lane.b32.xlu0 %v1117, 113
  %v2971 = vpop.permute.xlu0 %2970
  %2972 = vrot.lane.b32.xlu0 %v1121, 113
  %v2973 = vpop.permute.xlu0 %2972
  %2974 = vrot.lane.b32.xlu0 %v2580, 113
  %v2975 = vpop.permute.xlu0 %2974
  %2976 = vrot.lane.b32.xlu0 %v2584, 113
  %v2977 = vpop.permute.xlu0 %2976
  %2978 = vrot.lane.b32.xlu0 %v1118, 113
  %v2979 = vpop.permute.xlu0 %2978
  %2980 = vrot.lane.b32.xlu0 %v1122, 113
  %v2981 = vpop.permute.xlu0 %2980
  %2982 = vrot.lane.b32.xlu0 %v2581, 113
  %v2983 = vpop.permute.xlu0 %2982
  %2984 = vrot.lane.b32.xlu0 %v2585, 113
  %v2985 = vpop.permute.xlu0 %2984
  %v2986 = vsel %vm375, %v2971, %v2979
  %v2987 = vsel %vm375, %v2973, %v2981
  %v2988 = vsel %vm375, %v2975, %v2983
  %v2989 = vsel %vm375, %v2977, %v2985
  %v2990 = vsel %vm375, %v2963, %v2971
  %v2991 = vsel %vm375, %v2965, %v2973
  %v2992 = vsel %vm375, %v2967, %v2975
  %v2993 = vsel %vm375, %v2969, %v2977
  %v2994 = vsel %vm375, %v2955, %v2963
  %v2995 = vsel %vm375, %v2957, %v2965
  %v2996 = vsel %vm375, %v2959, %v2967
  %v2997 = vsel %vm375, %v2961, %v2969
  %v2998 = vsel %vm375, %v2979, %v2955
  %v2999 = vsel %vm375, %v2981, %v2957
  %v3000 = vsel %vm375, %v2983, %v2959
  %v3001 = vsel %vm375, %v2985, %v2961
  %v3002 = vmul.f32 %v2994, %v110
  %v3003 = vmul.f32 %v2990, %v111
  %v3004 = vmul.f32 %v2986, %v112
  %v3005 = vmul.f32 %v2998, %v113
  %v3006 = vmul.f32 %v2995, %v110
  %v3007 = vmul.f32 %v2991, %v111
  %v3008 = vmul.f32 %v2987, %v112
  %v3009 = vmul.f32 %v2999, %v113
  %v3010 = vmul.f32 %v2996, %v110
  %v3011 = vmul.f32 %v2992, %v111
  %v3012 = vmul.f32 %v2988, %v112
  %v3013 = vmul.f32 %v3000, %v113
  %v3014 = vmul.f32 %v2997, %v110
  %v3015 = vmul.f32 %v2993, %v111
  %v3016 = vmul.f32 %v2989, %v112
  %v3017 = vmul.f32 %v3001, %v113
  %v3018 = vpack.c.bf16 %v3006, %v3002
  %v3019 = vpack.c.bf16 %v3007, %v3003
  %v3020 = vpack.c.bf16 %v3008, %v3004
  %v3021 = vpack.c.bf16 %v3009, %v3005
  %v3022 = vpack.c.bf16 %v3014, %v3010
  %v3023 = vpack.c.bf16 %v3015, %v3011
  %v3024 = vpack.c.bf16 %v3016, %v3012
  %v3025 = vpack.c.bf16 %v3017, %v3013
  %3026 = vrot.lane.b32.xlu0 %v1115, 112
  %v3027 = vpop.permute.xlu0 %3026
  %3028 = vrot.lane.b32.xlu0 %v1119, 112
  %v3029 = vpop.permute.xlu0 %3028
  %3030 = vrot.lane.b32.xlu0 %v2578, 112
  %v3031 = vpop.permute.xlu0 %3030
  %3032 = vrot.lane.b32.xlu0 %v2582, 112
  %v3033 = vpop.permute.xlu0 %3032
  %3034 = vrot.lane.b32.xlu0 %v1116, 112
  %v3035 = vpop.permute.xlu0 %3034
  %3036 = vrot.lane.b32.xlu0 %v1120, 112
  %v3037 = vpop.permute.xlu0 %3036
  %3038 = vrot.lane.b32.xlu0 %v2579, 112
  %v3039 = vpop.permute.xlu0 %3038
  %3040 = vrot.lane.b32.xlu0 %v2583, 112
  %v3041 = vpop.permute.xlu0 %3040
  %3042 = vrot.lane.b32.xlu0 %v1117, 112
  %v3043 = vpop.permute.xlu0 %3042
  %3044 = vrot.lane.b32.xlu0 %v1121, 112
  %v3045 = vpop.permute.xlu0 %3044
  %3046 = vrot.lane.b32.xlu0 %v2580, 112
  %v3047 = vpop.permute.xlu0 %3046
  %3048 = vrot.lane.b32.xlu0 %v2584, 112
  %v3049 = vpop.permute.xlu0 %3048
  %3050 = vrot.lane.b32.xlu0 %v1118, 112
  %v3051 = vpop.permute.xlu0 %3050
  %3052 = vrot.lane.b32.xlu0 %v1122, 112
  %v3053 = vpop.permute.xlu0 %3052
  %3054 = vrot.lane.b32.xlu0 %v2581, 112
  %v3055 = vpop.permute.xlu0 %3054
  %3056 = vrot.lane.b32.xlu0 %v2585, 112
  %v3057 = vpop.permute.xlu0 %3056
  %v3058 = vsel %vm412, %v3043, %v3051
  %v3059 = vsel %vm412, %v3045, %v3053
  %v3060 = vsel %vm412, %v3047, %v3055
  %v3061 = vsel %vm412, %v3049, %v3057
  %v3062 = vsel %vm412, %v3035, %v3043
  %v3063 = vsel %vm412, %v3037, %v3045
  %v3064 = vsel %vm412, %v3039, %v3047
  %v3065 = vsel %vm412, %v3041, %v3049
  %v3066 = vsel %vm412, %v3027, %v3035
  %v3067 = vsel %vm412, %v3029, %v3037
  %v3068 = vsel %vm412, %v3031, %v3039
  %v3069 = vsel %vm412, %v3033, %v3041
  %v3070 = vsel %vm412, %v3051, %v3027
  %v3071 = vsel %vm412, %v3053, %v3029
  %v3072 = vsel %vm412, %v3055, %v3031
  %v3073 = vsel %vm412, %v3057, %v3033
  %v3074 = vmul.f32 %v3066, %v118
  %v3075 = vmul.f32 %v3062, %v119
  %v3076 = vmul.f32 %v3058, %v120
  %v3077 = vmul.f32 %v3070, %v121
  %v3078 = vmul.f32 %v3067, %v118
  %v3079 = vmul.f32 %v3063, %v119
  %v3080 = vmul.f32 %v3059, %v120
  %v3081 = vmul.f32 %v3071, %v121
  %v3082 = vmul.f32 %v3068, %v118
  %v3083 = vmul.f32 %v3064, %v119
  %v3084 = vmul.f32 %v3060, %v120
  %v3085 = vmul.f32 %v3072, %v121
  %v3086 = vmul.f32 %v3069, %v118
  %v3087 = vmul.f32 %v3065, %v119
  %v3088 = vmul.f32 %v3061, %v120
  %v3089 = vmul.f32 %v3073, %v121
  %v3090 = vpack.c.bf16 %v3078, %v3074
  %v3091 = vpack.c.bf16 %v3079, %v3075
  %v3092 = vpack.c.bf16 %v3080, %v3076
  %v3093 = vpack.c.bf16 %v3081, %v3077
  %v3094 = vpack.c.bf16 %v3086, %v3082
  %v3095 = vpack.c.bf16 %v3087, %v3083
  %v3096 = vpack.c.bf16 %v3088, %v3084
  %v3097 = vpack.c.bf16 %v3089, %v3085
  %3098 = vrot.lane.b32.xlu0 %v1115, 111
  %v3099 = vpop.permute.xlu0 %3098
  %3100 = vrot.lane.b32.xlu0 %v1119, 111
  %v3101 = vpop.permute.xlu0 %3100
  %3102 = vrot.lane.b32.xlu0 %v2578, 111
  %v3103 = vpop.permute.xlu0 %3102
  %3104 = vrot.lane.b32.xlu0 %v2582, 111
  %v3105 = vpop.permute.xlu0 %3104
  %3106 = vrot.lane.b32.xlu0 %v1116, 111
  %v3107 = vpop.permute.xlu0 %3106
  %3108 = vrot.lane.b32.xlu0 %v1120, 111
  %v3109 = vpop.permute.xlu0 %3108
  %3110 = vrot.lane.b32.xlu0 %v2579, 111
  %v3111 = vpop.permute.xlu0 %3110
  %3112 = vrot.lane.b32.xlu0 %v2583, 111
  %v3113 = vpop.permute.xlu0 %3112
  %3114 = vrot.lane.b32.xlu0 %v1117, 111
  %v3115 = vpop.permute.xlu0 %3114
  %3116 = vrot.lane.b32.xlu0 %v1121, 111
  %v3117 = vpop.permute.xlu0 %3116
  %3118 = vrot.lane.b32.xlu0 %v2580, 111
  %v3119 = vpop.permute.xlu0 %3118
  %3120 = vrot.lane.b32.xlu0 %v2584, 111
  %v3121 = vpop.permute.xlu0 %3120
  %3122 = vrot.lane.b32.xlu0 %v1118, 111
  %v3123 = vpop.permute.xlu0 %3122
  %3124 = vrot.lane.b32.xlu0 %v1122, 111
  %v3125 = vpop.permute.xlu0 %3124
  %3126 = vrot.lane.b32.xlu0 %v2581, 111
  %v3127 = vpop.permute.xlu0 %3126
  %3128 = vrot.lane.b32.xlu0 %v2585, 111
  %v3129 = vpop.permute.xlu0 %3128
  %v3130 = vsel %vm449, %v3115, %v3123
  %v3131 = vsel %vm449, %v3117, %v3125
  %v3132 = vsel %vm449, %v3119, %v3127
  %v3133 = vsel %vm449, %v3121, %v3129
  %v3134 = vsel %vm449, %v3107, %v3115
  %v3135 = vsel %vm449, %v3109, %v3117
  %v3136 = vsel %vm449, %v3111, %v3119
  %v3137 = vsel %vm449, %v3113, %v3121
  %v3138 = vsel %vm449, %v3099, %v3107
  %v3139 = vsel %vm449, %v3101, %v3109
  %v3140 = vsel %vm449, %v3103, %v3111
  %v3141 = vsel %vm449, %v3105, %v3113
  %v3142 = vsel %vm449, %v3123, %v3099
  %v3143 = vsel %vm449, %v3125, %v3101
  %v3144 = vsel %vm449, %v3127, %v3103
  %v3145 = vsel %vm449, %v3129, %v3105
  %v3146 = vmul.f32 %v3138, %v130
  %v3147 = vmul.f32 %v3134, %v131
  %v3148 = vmul.f32 %v3130, %v132
  %v3149 = vmul.f32 %v3142, %v133
  %v3150 = vmul.f32 %v3139, %v130
  %v3151 = vmul.f32 %v3135, %v131
  %v3152 = vmul.f32 %v3131, %v132
  %v3153 = vmul.f32 %v3143, %v133
  %v3154 = vmul.f32 %v3140, %v130
  %v3155 = vmul.f32 %v3136, %v131
  %v3156 = vmul.f32 %v3132, %v132
  %v3157 = vmul.f32 %v3144, %v133
  %v3158 = vmul.f32 %v3141, %v130
  %v3159 = vmul.f32 %v3137, %v131
  %v3160 = vmul.f32 %v3133, %v132
  %v3161 = vmul.f32 %v3145, %v133
  %v3162 = vpack.c.bf16 %v3150, %v3146
  %v3163 = vpack.c.bf16 %v3151, %v3147
  %v3164 = vpack.c.bf16 %v3152, %v3148
  %v3165 = vpack.c.bf16 %v3153, %v3149
  %v3166 = vpack.c.bf16 %v3158, %v3154
  %v3167 = vpack.c.bf16 %v3159, %v3155
  %v3168 = vpack.c.bf16 %v3160, %v3156
  %v3169 = vpack.c.bf16 %v3161, %v3157
  %v3170 = vld [vmem:[%s1 + $0xd8] sm:$0xff]
  %v3171 = vld [vmem:[%s1 + $0xe0] sm:$0xf]
  %v3172 = vld [vmem:[%s1 + $0xe4] sm:$0xff]
  %v3173 = vld [vmem:[%s1 + $0xec] sm:$0xf]
  %v3174 = vld [vmem:[%s2 + $0x90] sm:$0xff]
  %v3175 = vld [vmem:[%s2 + $0x98] sm:$0xff]
  %3177 = vset.pattern.permute.xlu0 0
  %3178 = vperm.xlu0 %3177, %v3174
  %v3179 = vpop.permute.xlu0 %3178
  %3182 = vset.pattern.permute.xlu0 0
  %3183 = vperm.xlu0 %3182, %v3175
  %v3184 = vpop.permute.xlu0 %3183
  %v3190 = vunpack.c.l.b16 %v3170
  %v3191 = vunpack.c.h.b16 %v3170
  %v3192 = vunpack.c.l.b16 %v3171
  %v3193 = vunpack.c.l.b16 %v3172
  %v3194 = vunpack.c.h.b16 %v3172
  %v3195 = vunpack.c.l.b16 %v3173
  %v3196 = vpack.c.b16 %v3193, %v3190
  %v3197 = vpack.c.b16 %v3194, %v3191
  %v3198 = vpack.c.b16 %v3195, %v3192
  %vm3201 = vcmask 261120
  %v3203 = vsel %vm3201, %v3198, 0
  %3205 = vmatprep.subr.bf16.mxu0 %v2651
  %3206 = vmatpush1.bf16.msra.mxu0 %v2650
  %3207 = vmatprep.subr.bf16.mxu0 %v2655
  %3208 = vmatpush1.bf16.msra.mxu0 %v2654
  %3209 = vmatprep.subr.bf16.mxu0 %v2723
  %3210 = vmatpush1.bf16.msra.mxu0 %v2722
  %3211 = vmatprep.subr.bf16.mxu0 %v2727
  %3212 = vmatpush1.bf16.msra.mxu0 %v2726
  %3213 = vmatprep.subr.bf16.mxu0 %v2795
  %3214 = vmatpush1.bf16.msra.mxu0 %v2794
  %3215 = vmatprep.subr.bf16.mxu0 %v2799
  %3216 = vmatpush1.bf16.msra.mxu0 %v2798
  %3217 = vmatprep.subr.bf16.mxu0 %v2867
  %3218 = vmatpush1.bf16.msra.mxu0 %v2866
  %3219 = vmatprep.subr.bf16.mxu0 %v2871
  %3220 = vmatpush1.bf16.msra.mxu0 %v2870
  %3221 = vmatprep.subr.bf16.mxu0 %v2875
  %3222 = vmatpush1.bf16.msra.mxu0 %v2874
  %3223 = vmatprep.subr.bf16.mxu0 %v2879
  %3224 = vmatpush1.bf16.msra.mxu0 %v2878
  %3225 = vmatprep.subr.bf16.mxu0 %v2947
  %3226 = vmatpush1.bf16.msra.mxu0 %v2946
  %3227 = vmatprep.subr.bf16.mxu0 %v2951
  %3228 = vmatpush1.bf16.msra.mxu0 %v2950
  %3229 = vmatprep.subr.bf16.mxu0 %v3019
  %3230 = vmatpush1.bf16.msra.mxu0 %v3018
  %3231 = vmatprep.subr.bf16.mxu0 %v3023
  %3232 = vmatpush1.bf16.msra.mxu0 %v3022
  %3233 = vmatprep.subr.bf16.mxu0 %v3091
  %3234 = vmatpush1.bf16.msra.mxu0 %v3090
  %3235 = vmatprep.subr.bf16.mxu0 %v3095
  %3236 = vmatpush1.bf16.msra.mxu0 %v3094
  %3237 = vmatprep.mubr.bf16.mxu0 %v3197
  %3238 = vmatmul.mubr.bf16.gmra.mrb[0].mxu0 %v3196
  %v3239 = vpop.f32.mrb[0].mxu0
  %v3240 = vadd.f32 %v3179, %v3239
  %v3241 = vpop.f32.mrb[0].mxu0
  %v3242 = vadd.f32 %v3179, %v3241
  %v3243 = vpop.f32.mrb[0].mxu0
  %v3244 = vadd.f32 %v3184, %v3243
  %v3245 = vpop.f32.mrb[0].mxu0
  %v3246 = vadd.f32 %v3184, %v3245
  %3247 = vdwg.mxu0
  %3248 = vmatprep.subr.bf16.mxu0 %v3163
  %3249 = vmatpush1.bf16.msra.mxu0 %v3162
  %3250 = vmatprep.subr.bf16.mxu0 %v3167
  %3251 = vmatpush1.bf16.msra.mxu0 %v3166
  %3252 = vmatprep.subr.bf16.mxu0 0
  %3253 = vmatpush1.bf16.msra.mxu0 0
  %3254 = vmatprep.subr.bf16.mxu0 0
  %3255 = vmatpush1.bf16.msra.mxu0 0
  %3256 = vmatprep.subr.bf16.mxu0 0
  %3257 = vmatpush1.bf16.msra.mxu0 0
  %3258 = vmatprep.subr.bf16.mxu0 0
  %3259 = vmatpush1.bf16.msra.mxu0 0
  %3260 = vmatprep.subr.bf16.mxu0 0
  %3261 = vmatpush1.bf16.msra.mxu0 0
  %3262 = vmatprep.subr.bf16.mxu0 0
  %3263 = vmatpush1.bf16.msra.mxu0 0
  %3264 = vmatprep.subr.bf16.mxu0 0
  %3265 = vmatpush1.bf16.msra.mxu0 0
  %3266 = vmatprep.subr.bf16.mxu0 0
  %3267 = vmatpush1.bf16.msra.mxu0 0
  %3268 = vmatprep.subr.bf16.mxu0 0
  %3269 = vmatpush1.bf16.msra.mxu0 0
  %3270 = vmatprep.subr.bf16.mxu0 0
  %3271 = vmatpush1.bf16.msra.mxu0 0
  %3272 = vmatprep.subr.bf16.mxu0 0
  %3273 = vmatpush1.bf16.msra.mxu0 0
  %3274 = vmatprep.subr.bf16.mxu0 0
  %3275 = vmatpush1.bf16.msra.mxu0 0
  %3276 = vmatprep.subr.bf16.mxu0 0
  %3277 = vmatpush1.bf16.msra.mxu0 0
  %3278 = vmatprep.subr.bf16.mxu0 0
  %3279 = vmatpush1.bf16.msra.mxu0 0
  %3280 = vmatprep.mubr.bf16.mxu0 0
  %3281 = vmatmul.mubr.bf16.gmra.mrb[0].mxu0 %v3203
  %v3282 = vpop.f32.mrb[0].mxu0
  %v3283 = vadd.f32 %v3240, %v3282
  %v3284 = vpop.f32.mrb[0].mxu0
  %v3285 = vadd.f32 %v3242, %v3284
  %v3286 = vpop.f32.mrb[0].mxu0
  %v3287 = vadd.f32 %v3244, %v3286
  %v3288 = vpop.f32.mrb[0].mxu0
  %v3289 = vadd.f32 %v3246, %v3288
  %3290 = vdwg.mxu0
  %3291 = vmatprep.subr.bf16.mxu0 %v2653
  %3292 = vmatpush1.bf16.msra.mxu0 %v2652
  %3293 = vmatprep.subr.bf16.mxu0 %v2657
  %3294 = vmatpush1.bf16.msra.mxu0 %v2656
  %3295 = vmatprep.subr.bf16.mxu0 %v2725
  %3296 = vmatpush1.bf16.msra.mxu0 %v2724
  %3297 = vmatprep.subr.bf16.mxu0 %v2729
  %3298 = vmatpush1.bf16.msra.mxu0 %v2728
  %3299 = vmatprep.subr.bf16.mxu0 %v2797
  %3300 = vmatpush1.bf16.msra.mxu0 %v2796
  %3301 = vmatprep.subr.bf16.mxu0 %v2801
  %3302 = vmatpush1.bf16.msra.mxu0 %v2800
  %3303 = vmatprep.subr.bf16.mxu0 %v2869
  %3304 = vmatpush1.bf16.msra.mxu0 %v2868
  %3305 = vmatprep.subr.bf16.mxu0 %v2873
  %3306 = vmatpush1.bf16.msra.mxu0 %v2872
  %3307 = vmatprep.subr.bf16.mxu0 %v2877
  %3308 = vmatpush1.bf16.msra.mxu0 %v2876
  %3309 = vmatprep.subr.bf16.mxu0 %v2881
  %3310 = vmatpush1.bf16.msra.mxu0 %v2880
  %3311 = vmatprep.subr.bf16.mxu0 %v2949
  %3312 = vmatpush1.bf16.msra.mxu0 %v2948
  %3313 = vmatprep.subr.bf16.mxu0 %v2953
  %3314 = vmatpush1.bf16.msra.mxu0 %v2952
  %3315 = vmatprep.subr.bf16.mxu0 %v3021
  %3316 = vmatpush1.bf16.msra.mxu0 %v3020
  %3317 = vmatprep.subr.bf16.mxu0 %v3025
  %3318 = vmatpush1.bf16.msra.mxu0 %v3024
  %3319 = vmatprep.subr.bf16.mxu0 %v3093
  %3320 = vmatpush1.bf16.msra.mxu0 %v3092
  %3321 = vmatprep.subr.bf16.mxu0 %v3097
  %3322 = vmatpush1.bf16.msra.mxu0 %v3096
  %3323 = vmatprep.mubr.bf16.mxu0 %v3197
  %3324 = vmatmul.mubr.bf16.gmra.mrb[0].mxu0 %v3196
  %v3325 = vpop.f32.mrb[0].mxu0
  %v3326 = vadd.f32 %v3179, %v3325
  %v3327 = vpop.f32.mrb[0].mxu0
  %v3328 = vadd.f32 %v3179, %v3327
  %v3329 = vpop.f32.mrb[0].mxu0
  %v3330 = vadd.f32 %v3184, %v3329
  %v3331 = vpop.f32.mrb[0].mxu0
  %v3332 = vadd.f32 %v3184, %v3331
  %3333 = vdwg.mxu0
  %3334 = vmatprep.subr.bf16.mxu0 %v3165
  %3335 = vmatpush1.bf16.msra.mxu0 %v3164
  %3336 = vmatprep.subr.bf16.mxu0 %v3169
  %3337 = vmatpush1.bf16.msra.mxu0 %v3168
  %3338 = vmatprep.subr.bf16.mxu0 0
  %3339 = vmatpush1.bf16.msra.mxu0 0
  %3340 = vmatprep.subr.bf16.mxu0 0
  %3341 = vmatpush1.bf16.msra.mxu0 0
  %3342 = vmatprep.subr.bf16.mxu0 0
  %3343 = vmatpush1.bf16.msra.mxu0 0
  %3344 = vmatprep.subr.bf16.mxu0 0
  %3345 = vmatpush1.bf16.msra.mxu0 0
  %3346 = vmatprep.subr.bf16.mxu0 0
  %3347 = vmatpush1.bf16.msra.mxu0 0
  %3348 = vmatprep.subr.bf16.mxu0 0
  %3349 = vmatpush1.bf16.msra.mxu0 0
  %3350 = vmatprep.subr.bf16.mxu0 0
  %3351 = vmatpush1.bf16.msra.mxu0 0
  %3352 = vmatprep.subr.bf16.mxu0 0
  %3353 = vmatpush1.bf16.msra.mxu0 0
  %3354 = vmatprep.subr.bf16.mxu0 0
  %3355 = vmatpush1.bf16.msra.mxu0 0
  %3356 = vmatprep.subr.bf16.mxu0 0
  %3357 = vmatpush1.bf16.msra.mxu0 0
  %3358 = vmatprep.subr.bf16.mxu0 0
  %3359 = vmatpush1.bf16.msra.mxu0 0
  %3360 = vmatprep.subr.bf16.mxu0 0
  %3361 = vmatpush1.bf16.msra.mxu0 0
  %3362 = vmatprep.subr.bf16.mxu0 0
  %3363 = vmatpush1.bf16.msra.mxu0 0
  %3364 = vmatprep.subr.bf16.mxu0 0
  %3365 = vmatpush1.bf16.msra.mxu0 0
  %3366 = vmatprep.mubr.bf16.mxu0 0
  %3367 = vmatmul.mubr.bf16.gmra.mrb[0].mxu0 %v3203
  %v3368 = vpop.f32.mrb[0].mxu0
  %v3369 = vadd.f32 %v3326, %v3368
  %v3370 = vpop.f32.mrb[0].mxu0
  %v3371 = vadd.f32 %v3328, %v3370
  %v3372 = vpop.f32.mrb[0].mxu0
  %v3373 = vadd.f32 %v3330, %v3372
  %v3374 = vpop.f32.mrb[0].mxu0
  %v3375 = vadd.f32 %v3332, %v3374
  %3376 = vdwg.mxu0
  %v3377 = vmax.f32 %v3283, 0.0
  %v3378 = vmax.f32 %v3285, 0.0
  %v3379 = vmax.f32 %v3369, 0.0
  %v3380 = vmax.f32 %v3371, 0.0
  %v3381 = vmax.f32 %v3287, 0.0
  %v3382 = vmax.f32 %v3289, 0.0
  %v3383 = vmax.f32 %v3373, 0.0
  %v3384 = vmax.f32 %v3375, 0.0
  %3385 = vrot.lane.b32.xlu0 %v3377, 17
  %v3386 = vpop.permute.xlu0 %3385
  %3387 = vrot.lane.b32.xlu0 %v3381, 17
  %v3388 = vpop.permute.xlu0 %3387
  %3389 = vrot.lane.b32.xlu0 %v3378, 17
  %v3390 = vpop.permute.xlu0 %3389
  %3391 = vrot.lane.b32.xlu0 %v3382, 17
  %v3392 = vpop.permute.xlu0 %3391
  %3393 = vrot.lane.b32.xlu0 %v3379, 17
  %v3394 = vpop.permute.xlu0 %3393
  %3395 = vrot.lane.b32.xlu0 %v3383, 17
  %v3396 = vpop.permute.xlu0 %3395
  %3397 = vrot.lane.b32.xlu0 %v3380, 17
  %v3398 = vpop.permute.xlu0 %3397
  %3399 = vrot.lane.b32.xlu0 %v3384, 17
  %v3400 = vpop.permute.xlu0 %3399
  %v3401 = vsel %vm186, %v3394, %v3398
  %v3402 = vsel %vm186, %v3396, %v3400
  %v3403 = vsel %vm186, %v3390, %v3394
  %v3404 = vsel %vm186, %v3392, %v3396
  %v3405 = vsel %vm186, %v3386, %v3390
  %v3406 = vsel %vm186, %v3388, %v3392
  %v3407 = vsel %vm186, %v3398, %v3386
  %v3408 = vsel %vm186, %v3400, %v3388
  %v3409 = vmul.f32 %v3407, %v62
  %v3410 = vmul.f32 %v3405, %v63
  %v3411 = vmul.f32 %v3403, %v64
  %v3412 = vmul.f32 %v3401, %v65
  %v3413 = vmul.f32 %v3408, %v62
  %v3414 = vmul.f32 %v3406, %v63
  %v3415 = vmul.f32 %v3404, %v64
  %v3416 = vmul.f32 %v3402, %v65
  %v3417 = vpack.c.bf16 %v3413, %v3409
  %v3418 = vpack.c.bf16 %v3414, %v3410
  %v3419 = vpack.c.bf16 %v3415, %v3411
  %v3420 = vpack.c.bf16 %v3416, %v3412
  %3421 = vrot.lane.b32.xlu0 %v3377, 16
  %v3422 = vpop.permute.xlu0 %3421
  %3423 = vrot.lane.b32.xlu0 %v3381, 16
  %v3424 = vpop.permute.xlu0 %3423
  %3425 = vrot.lane.b32.xlu0 %v3378, 16
  %v3426 = vpop.permute.xlu0 %3425
  %3427 = vrot.lane.b32.xlu0 %v3382, 16
  %v3428 = vpop.permute.xlu0 %3427
  %3429 = vrot.lane.b32.xlu0 %v3379, 16
  %v3430 = vpop.permute.xlu0 %3429
  %3431 = vrot.lane.b32.xlu0 %v3383, 16
  %v3432 = vpop.permute.xlu0 %3431
  %3433 = vrot.lane.b32.xlu0 %v3380, 16
  %v3434 = vpop.permute.xlu0 %3433
  %3435 = vrot.lane.b32.xlu0 %v3384, 16
  %v3436 = vpop.permute.xlu0 %3435
  %v3437 = vsel %vm223, %v3430, %v3434
  %v3438 = vsel %vm223, %v3432, %v3436
  %v3439 = vsel %vm223, %v3426, %v3430
  %v3440 = vsel %vm223, %v3428, %v3432
  %v3441 = vsel %vm223, %v3422, %v3426
  %v3442 = vsel %vm223, %v3424, %v3428
  %v3443 = vsel %vm223, %v3434, %v3422
  %v3444 = vsel %vm223, %v3436, %v3424
  %v3445 = vmul.f32 %v3443, %v70
  %v3446 = vmul.f32 %v3441, %v71
  %v3447 = vmul.f32 %v3439, %v72
  %v3448 = vmul.f32 %v3437, %v73
  %v3449 = vmul.f32 %v3444, %v70
  %v3450 = vmul.f32 %v3442, %v71
  %v3451 = vmul.f32 %v3440, %v72
  %v3452 = vmul.f32 %v3438, %v73
  %v3453 = vpack.c.bf16 %v3449, %v3445
  %v3454 = vpack.c.bf16 %v3450, %v3446
  %v3455 = vpack.c.bf16 %v3451, %v3447
  %v3456 = vpack.c.bf16 %v3452, %v3448
  %3457 = vrot.lane.b32.xlu0 %v3377, 15
  %v3458 = vpop.permute.xlu0 %3457
  %3459 = vrot.lane.b32.xlu0 %v3381, 15
  %v3460 = vpop.permute.xlu0 %3459
  %3461 = vrot.lane.b32.xlu0 %v3378, 15
  %v3462 = vpop.permute.xlu0 %3461
  %3463 = vrot.lane.b32.xlu0 %v3382, 15
  %v3464 = vpop.permute.xlu0 %3463
  %3465 = vrot.lane.b32.xlu0 %v3379, 15
  %v3466 = vpop.permute.xlu0 %3465
  %3467 = vrot.lane.b32.xlu0 %v3383, 15
  %v3468 = vpop.permute.xlu0 %3467
  %3469 = vrot.lane.b32.xlu0 %v3380, 15
  %v3470 = vpop.permute.xlu0 %3469
  %3471 = vrot.lane.b32.xlu0 %v3384, 15
  %v3472 = vpop.permute.xlu0 %3471
  %v3473 = vsel %vm260, %v3466, %v3470
  %v3474 = vsel %vm260, %v3468, %v3472
  %v3475 = vsel %vm260, %v3462, %v3466
  %v3476 = vsel %vm260, %v3464, %v3468
  %v3477 = vsel %vm260, %v3458, %v3462
  %v3478 = vsel %vm260, %v3460, %v3464
  %v3479 = vsel %vm260, %v3470, %v3458
  %v3480 = vsel %vm260, %v3472, %v3460
  %v3481 = vmul.f32 %v3479, %v82
  %v3482 = vmul.f32 %v3477, %v83
  %v3483 = vmul.f32 %v3475, %v84
  %v3484 = vmul.f32 %v3473, %v85
  %v3485 = vmul.f32 %v3480, %v82
  %v3486 = vmul.f32 %v3478, %v83
  %v3487 = vmul.f32 %v3476, %v84
  %v3488 = vmul.f32 %v3474, %v85
  %v3489 = vpack.c.bf16 %v3485, %v3481
  %v3490 = vpack.c.bf16 %v3486, %v3482
  %v3491 = vpack.c.bf16 %v3487, %v3483
  %v3492 = vpack.c.bf16 %v3488, %v3484
  %3493 = vrot.lane.b32.xlu0 %v3377, 1
  %v3494 = vpop.permute.xlu0 %3493
  %3495 = vrot.lane.b32.xlu0 %v3381, 1
  %v3496 = vpop.permute.xlu0 %3495
  %3497 = vrot.lane.b32.xlu0 %v3378, 1
  %v3498 = vpop.permute.xlu0 %3497
  %3499 = vrot.lane.b32.xlu0 %v3382, 1
  %v3500 = vpop.permute.xlu0 %3499
  %3501 = vrot.lane.b32.xlu0 %v3379, 1
  %v3502 = vpop.permute.xlu0 %3501
  %3503 = vrot.lane.b32.xlu0 %v3383, 1
  %v3504 = vpop.permute.xlu0 %3503
  %3505 = vrot.lane.b32.xlu0 %v3380, 1
  %v3506 = vpop.permute.xlu0 %3505
  %3507 = vrot.lane.b32.xlu0 %v3384, 1
  %v3508 = vpop.permute.xlu0 %3507
  %v3509 = vsel %vm297, %v3502, %v3506
  %v3510 = vsel %vm297, %v3504, %v3508
  %v3511 = vsel %vm297, %v3498, %v3502
  %v3512 = vsel %vm297, %v3500, %v3504
  %v3513 = vsel %vm297, %v3494, %v3498
  %v3514 = vsel %vm297, %v3496, %v3500
  %v3515 = vsel %vm297, %v3506, %v3494
  %v3516 = vsel %vm297, %v3508, %v3496
  %v3517 = vmul.f32 %v3515, %v90
  %v3518 = vmul.f32 %v3513, %v91
  %v3519 = vmul.f32 %v3511, %v92
  %v3520 = vmul.f32 %v3509, %v93
  %v3521 = vmul.f32 %v3516, %v90
  %v3522 = vmul.f32 %v3514, %v91
  %v3523 = vmul.f32 %v3512, %v92
  %v3524 = vmul.f32 %v3510, %v93
  %v3525 = vpack.c.bf16 %v3521, %v3517
  %v3526 = vpack.c.bf16 %v3522, %v3518
  %v3527 = vpack.c.bf16 %v3523, %v3519
  %v3528 = vpack.c.bf16 %v3524, %v3520
  %v3529 = vpack.c.bf16 %v3381, %v3377
  %v3530 = vpack.c.bf16 %v3382, %v3378
  %v3531 = vpack.c.bf16 %v3383, %v3379
  %v3532 = vpack.c.bf16 %v3384, %v3380
  %3533 = vrot.lane.b32.xlu0 %v3377, 127
  %v3534 = vpop.permute.xlu0 %3533
  %3535 = vrot.lane.b32.xlu0 %v3381, 127
  %v3536 = vpop.permute.xlu0 %3535
  %3537 = vrot.lane.b32.xlu0 %v3378, 127
  %v3538 = vpop.permute.xlu0 %3537
  %3539 = vrot.lane.b32.xlu0 %v3382, 127
  %v3540 = vpop.permute.xlu0 %3539
  %3541 = vrot.lane.b32.xlu0 %v3379, 127
  %v3542 = vpop.permute.xlu0 %3541
  %3543 = vrot.lane.b32.xlu0 %v3383, 127
  %v3544 = vpop.permute.xlu0 %3543
  %3545 = vrot.lane.b32.xlu0 %v3380, 127
  %v3546 = vpop.permute.xlu0 %3545
  %3547 = vrot.lane.b32.xlu0 %v3384, 127
  %v3548 = vpop.permute.xlu0 %3547
  %v3549 = vsel %vm338, %v3542, %v3546
  %v3550 = vsel %vm338, %v3544, %v3548
  %v3551 = vsel %vm338, %v3538, %v3542
  %v3552 = vsel %vm338, %v3540, %v3544
  %v3553 = vsel %vm338, %v3534, %v3538
  %v3554 = vsel %vm338, %v3536, %v3540
  %v3555 = vsel %vm338, %v3546, %v3534
  %v3556 = vsel %vm338, %v3548, %v3536
  %v3557 = vmul.f32 %v3553, %v98
  %v3558 = vmul.f32 %v3551, %v99
  %v3559 = vmul.f32 %v3549, %v100
  %v3560 = vmul.f32 %v3555, %v101
  %v3561 = vmul.f32 %v3554, %v98
  %v3562 = vmul.f32 %v3552, %v99
  %v3563 = vmul.f32 %v3550, %v100
  %v3564 = vmul.f32 %v3556, %v101
  %v3565 = vpack.c.bf16 %v3561, %v3557
  %v3566 = vpack.c.bf16 %v3562, %v3558
  %v3567 = vpack.c.bf16 %v3563, %v3559
  %v3568 = vpack.c.bf16 %v3564, %v3560
  %3569 = vrot.lane.b32.xlu0 %v3377, 113
  %v3570 = vpop.permute.xlu0 %3569
  %3571 = vrot.lane.b32.xlu0 %v3381, 113
  %v3572 = vpop.permute.xlu0 %3571
  %3573 = vrot.lane.b32.xlu0 %v3378, 113
  %v3574 = vpop.permute.xlu0 %3573
  %3575 = vrot.lane.b32.xlu0 %v3382, 113
  %v3576 = vpop.permute.xlu0 %3575
  %3577 = vrot.lane.b32.xlu0 %v3379, 113
  %v3578 = vpop.permute.xlu0 %3577
  %3579 = vrot.lane.b32.xlu0 %v3383, 113
  %v3580 = vpop.permute.xlu0 %3579
  %3581 = vrot.lane.b32.xlu0 %v3380, 113
  %v3582 = vpop.permute.xlu0 %3581
  %3583 = vrot.lane.b32.xlu0 %v3384, 113
  %v3584 = vpop.permute.xlu0 %3583
  %v3585 = vsel %vm375, %v3578, %v3582
  %v3586 = vsel %vm375, %v3580, %v3584
  %v3587 = vsel %vm375, %v3574, %v3578
  %v3588 = vsel %vm375, %v3576, %v3580
  %v3589 = vsel %vm375, %v3570, %v3574
  %v3590 = vsel %vm375, %v3572, %v3576
  %v3591 = vsel %vm375, %v3582, %v3570
  %v3592 = vsel %vm375, %v3584, %v3572
  %v3593 = vmul.f32 %v3589, %v110
  %v3594 = vmul.f32 %v3587, %v111
  %v3595 = vmul.f32 %v3585, %v112
  %v3596 = vmul.f32 %v3591, %v113
  %v3597 = vmul.f32 %v3590, %v110
  %v3598 = vmul.f32 %v3588, %v111
  %v3599 = vmul.f32 %v3586, %v112
  %v3600 = vmul.f32 %v3592, %v113
  %v3601 = vpack.c.bf16 %v3597, %v3593
  %v3602 = vpack.c.bf16 %v3598, %v3594
  %v3603 = vpack.c.bf16 %v3599, %v3595
  %v3604 = vpack.c.bf16 %v3600, %v3596
  %3605 = vrot.lane.b32.xlu0 %v3377, 112
  %v3606 = vpop.permute.xlu0 %3605
  %3607 = vrot.lane.b32.xlu0 %v3381, 112
  %v3608 = vpop.permute.xlu0 %3607
  %3609 = vrot.lane.b32.xlu0 %v3378, 112
  %v3610 = vpop.permute.xlu0 %3609
  %3611 = vrot.lane.b32.xlu0 %v3382, 112
  %v3612 = vpop.permute.xlu0 %3611
  %3613 = vrot.lane.b32.xlu0 %v3379, 112
  %v3614 = vpop.permute.xlu0 %3613
  %3615 = vrot.lane.b32.xlu0 %v3383, 112
  %v3616 = vpop.permute.xlu0 %3615
  %3617 = vrot.lane.b32.xlu0 %v3380, 112
  %v3618 = vpop.permute.xlu0 %3617
  %3619 = vrot.lane.b32.xlu0 %v3384, 112
  %v3620 = vpop.permute.xlu0 %3619
  %v3621 = vsel %vm412, %v3614, %v3618
  %v3622 = vsel %vm412, %v3616, %v3620
  %v3623 = vsel %vm412, %v3610, %v3614
  %v3624 = vsel %vm412, %v3612, %v3616
  %v3625 = vsel %vm412, %v3606, %v3610
  %v3626 = vsel %vm412, %v3608, %v3612
  %v3627 = vsel %vm412, %v3618, %v3606
  %v3628 = vsel %vm412, %v3620, %v3608
  %v3629 = vmul.f32 %v3625, %v118
  %v3630 = vmul.f32 %v3623, %v119
  %v3631 = vmul.f32 %v3621, %v120
  %v3632 = vmul.f32 %v3627, %v121
  %v3633 = vmul.f32 %v3626, %v118
  %v3634 = vmul.f32 %v3624, %v119
  %v3635 = vmul.f32 %v3622, %v120
  %v3636 = vmul.f32 %v3628, %v121
  %v3637 = vpack.c.bf16 %v3633, %v3629
  %v3638 = vpack.c.bf16 %v3634, %v3630
  %v3639 = vpack.c.bf16 %v3635, %v3631
  %v3640 = vpack.c.bf16 %v3636, %v3632
  %3641 = vrot.lane.b32.xlu0 %v3377, 111
  %v3642 = vpop.permute.xlu0 %3641
  %3643 = vrot.lane.b32.xlu0 %v3381, 111
  %v3644 = vpop.permute.xlu0 %3643
  %3645 = vrot.lane.b32.xlu0 %v3378, 111
  %v3646 = vpop.permute.xlu0 %3645
  %3647 = vrot.lane.b32.xlu0 %v3382, 111
  %v3648 = vpop.permute.xlu0 %3647
  %3649 = vrot.lane.b32.xlu0 %v3379, 111
  %v3650 = vpop.permute.xlu0 %3649
  %3651 = vrot.lane.b32.xlu0 %v3383, 111
  %v3652 = vpop.permute.xlu0 %3651
  %3653 = vrot.lane.b32.xlu0 %v3380, 111
  %v3654 = vpop.permute.xlu0 %3653
  %3655 = vrot.lane.b32.xlu0 %v3384, 111
  %v3656 = vpop.permute.xlu0 %3655
  %v3657 = vsel %vm449, %v3650, %v3654
  %v3658 = vsel %vm449, %v3652, %v3656
  %v3659 = vsel %vm449, %v3646, %v3650
  %v3660 = vsel %vm449, %v3648, %v3652
  %v3661 = vsel %vm449, %v3642, %v3646
  %v3662 = vsel %vm449, %v3644, %v3648
  %v3663 = vsel %vm449, %v3654, %v3642
  %v3664 = vsel %vm449, %v3656, %v3644
  %v3665 = vmul.f32 %v3661, %v130
  %v3666 = vmul.f32 %v3659, %v131
  %v3667 = vmul.f32 %v3657, %v132
  %v3668 = vmul.f32 %v3663, %v133
  %v3669 = vmul.f32 %v3662, %v130
  %v3670 = vmul.f32 %v3660, %v131
  %v3671 = vmul.f32 %v3658, %v132
  %v3672 = vmul.f32 %v3664, %v133
  %v3673 = vpack.c.bf16 %v3669, %v3665
  %v3674 = vpack.c.bf16 %v3670, %v3666
  %v3675 = vpack.c.bf16 %v3671, %v3667
  %v3676 = vpack.c.bf16 %v3672, %v3668
  %v3677 = vld [vmem:[%s1 + $0xf0] sm:$0xff]
  %v3678 = vld [vmem:[%s1 + $0xfc] sm:$0xff]
  %v3679 = vld [vmem:[%s1 + $0x108] sm:$0xff]
  %v3680 = vld [vmem:[%s1 + $0x114] sm:$0xff]
  %v3681 = vld [vmem:[%s1 + $0x120] sm:$0xff]
  %v3682 = vld [vmem:[%s1 + $0x12c] sm:$0xff]
  %v3683 = vld [vmem:[%s1 + $0x138] sm:$0xff]
  %v3684 = vld [vmem:[%s1 + $0x144] sm:$0xff]
  %v3685 = vld [vmem:[%s1 + $0x150] sm:$0xff]
  %v3686 = vld [vmem:[%s1 + $0x15c] sm:$0xff]
  %v3687 = vld [vmem:[%s2 + $0xa0] sm:$0xff]
  %v3688 = vld [vmem:[%s2 + $0xa8] sm:$0xff]
  %v3689 = vld [vmem:[%s2 + $0xb0] sm:$0xff]
  %v3690 = vld [vmem:[%s2 + $0xb8] sm:$0xff]
  %v3691 = vld [vmem:[%s2 + $0xc0] sm:$0xff]
  %v3692 = vld [vmem:[%s2 + $0xc8] sm:$0xff]
  %v3693 = vld [vmem:[%s2 + $0xd0] sm:$0xff]
  %v3694 = vld [vmem:[%s2 + $0xd8] sm:$0xff]
  %v3695 = vld [vmem:[%s2 + $0xe0] sm:$0xff]
  %v3696 = vld [vmem:[%s2 + $0xe8] sm:$0xff]
  %3698 = vset.pattern.permute.xlu0 0
  %3699 = vperm.xlu0 %3698, %v3687
  %v3700 = vpop.permute.xlu0 %3699
  %3703 = vset.pattern.permute.xlu0 0
  %3704 = vperm.xlu0 %3703, %v3688
  %v3705 = vpop.permute.xlu0 %3704
  %3708 = vset.pattern.permute.xlu0 0
  %3709 = vperm.xlu0 %3708, %v3689
  %v3710 = vpop.permute.xlu0 %3709
  %3713 = vset.pattern.permute.xlu0 0
  %3714 = vperm.xlu0 %3713, %v3690
  %v3715 = vpop.permute.xlu0 %3714
  %3718 = vset.pattern.permute.xlu0 0
  %3719 = vperm.xlu0 %3718, %v3691
  %v3720 = vpop.permute.xlu0 %3719
  %3723 = vset.pattern.permute.xlu0 0
  %3724 = vperm.xlu0 %3723, %v3692
  %v3725 = vpop.permute.xlu0 %3724
  %3728 = vset.pattern.permute.xlu0 0
  %3729 = vperm.xlu0 %3728, %v3693
  %v3730 = vpop.permute.xlu0 %3729
  %3733 = vset.pattern.permute.xlu0 0
  %3734 = vperm.xlu0 %3733, %v3694
  %v3735 = vpop.permute.xlu0 %3734
  %3738 = vset.pattern.permute.xlu0 0
  %3739 = vperm.xlu0 %3738, %v3695
  %v3740 = vpop.permute.xlu0 %3739
  %3743 = vset.pattern.permute.xlu0 0
  %3744 = vperm.xlu0 %3743, %v3696
  %v3745 = vpop.permute.xlu0 %3744
  %v3757 = vunpack.c.l.b16 %v3677
  %v3758 = vunpack.c.h.b16 %v3677
  %v3759 = vunpack.c.l.b16 %v3678
  %v3760 = vunpack.c.h.b16 %v3678
  %v3761 = vunpack.c.l.b16 %v3679
  %v3762 = vunpack.c.h.b16 %v3679
  %v3763 = vunpack.c.l.b16 %v3680
  %v3764 = vunpack.c.h.b16 %v3680
  %v3765 = vunpack.c.l.b16 %v3681
  %v3766 = vunpack.c.h.b16 %v3681
  %v3767 = vunpack.c.l.b16 %v3682
  %v3768 = vunpack.c.h.b16 %v3682
  %v3769 = vunpack.c.l.b16 %v3683
  %v3770 = vunpack.c.h.b16 %v3683
  %v3771 = vunpack.c.l.b16 %v3684
  %v3772 = vunpack.c.h.b16 %v3684
  %v3773 = vunpack.c.l.b16 %v3685
  %v3774 = vunpack.c.h.b16 %v3685
  %v3775 = vunpack.c.l.b16 %v3686
  %v3776 = vunpack.c.h.b16 %v3686
  %v3777 = vpack.c.b16 %v3759, %v3757
  %v3778 = vpack.c.b16 %v3760, %v3758
  %v3779 = vpack.c.b16 %v3763, %v3761
  %v3780 = vpack.c.b16 %v3764, %v3762
  %v3781 = vpack.c.b16 %v3767, %v3765
  %v3782 = vpack.c.b16 %v3768, %v3766
  %v3783 = vpack.c.b16 %v3771, %v3769
  %v3784 = vpack.c.b16 %v3772, %v3770
  %v3785 = vpack.c.b16 %v3775, %v3773
  %v3786 = vpack.c.b16 %v3776, %v3774
  %v3793 = vsel %vm493, %v3778, 0
  %v3796 = vsel %vm493, %v3780, 0
  %v3799 = vsel %vm493, %v3782, 0
  %v3802 = vsel %vm493, %v3784, 0
  %v3805 = vsel %vm493, %v3786, 0
  %3807 = vmatprep.subr.bf16.mxu0 %v3418
  %3808 = vmatpush1.bf16.msra.mxu0 %v3417
  %3809 = vmatprep.subr.bf16.mxu0 %v3454
  %3810 = vmatpush1.bf16.msra.mxu0 %v3453
  %3811 = vmatprep.subr.bf16.mxu0 %v3490
  %3812 = vmatpush1.bf16.msra.mxu0 %v3489
  %3813 = vmatprep.subr.bf16.mxu0 %v3526
  %3814 = vmatpush1.bf16.msra.mxu0 %v3525
  %3815 = vmatprep.subr.bf16.mxu0 %v3530
  %3816 = vmatpush1.bf16.msra.mxu0 %v3529
  %3817 = vmatprep.subr.bf16.mxu0 %v3566
  %3818 = vmatpush1.bf16.msra.mxu0 %v3565
  %3819 = vmatprep.subr.bf16.mxu0 %v3602
  %3820 = vmatpush1.bf16.msra.mxu0 %v3601
  %3821 = vmatprep.subr.bf16.mxu0 %v3638
  %3822 = vmatpush1.bf16.msra.mxu0 %v3637
  %3823 = vmatprep.subr.bf16.mxu0 %v3674
  %3824 = vmatpush1.bf16.msra.mxu0 %v3673
  %3825 = vmatprep.subr.bf16.mxu0 0
  %3826 = vmatpush1.bf16.msra.mxu0 0
  %3827 = vmatprep.subr.bf16.mxu0 0
  %3828 = vmatpush1.bf16.msra.mxu0 0
  %3829 = vmatprep.subr.bf16.mxu0 0
  %3830 = vmatpush1.bf16.msra.mxu0 0
  %3831 = vmatprep.subr.bf16.mxu0 0
  %3832 = vmatpush1.bf16.msra.mxu0 0
  %3833 = vmatprep.subr.bf16.mxu0 0
  %3834 = vmatpush1.bf16.msra.mxu0 0
  %3835 = vmatprep.subr.bf16.mxu0 0
  %3836 = vmatpush1.bf16.msra.mxu0 0
  %3837 = vmatprep.subr.bf16.mxu0 0
  %3838 = vmatpush1.bf16.msra.mxu0 0
  %3839 = vmatprep.mubr.bf16.mxu0 %v3793
  %3840 = vmatmul.mubr.bf16.gmra.mrb[0].mxu0 %v3777
  %v3841 = vpop.f32.mrb[0].mxu0
  %v3842 = vadd.f32 %v3700, %v3841
  %v3843 = vpop.f32.mrb[0].mxu0
  %v3844 = vadd.f32 %v3700, %v3843
  %v3845 = vpop.f32.mrb[0].mxu0
  %v3846 = vadd.f32 %v3705, %v3845
  %v3847 = vpop.f32.mrb[0].mxu0
  %v3848 = vadd.f32 %v3705, %v3847
  %3849 = vmatprep.mubr.bf16.mxu0 %v3796
  %3850 = vmatmul.mubr.bf16.gmra.mrb[0].mxu0 %v3779
  %v3851 = vpop.f32.mrb[0].mxu0
  %v3852 = vadd.f32 %v3710, %v3851
  %v3853 = vpop.f32.mrb[0].mxu0
  %v3854 = vadd.f32 %v3710, %v3853
  %v3855 = vpop.f32.mrb[0].mxu0
  %v3856 = vadd.f32 %v3715, %v3855
  %v3857 = vpop.f32.mrb[0].mxu0
  %v3858 = vadd.f32 %v3715, %v3857
  %3859 = vmatprep.mubr.bf16.mxu0 %v3799
  %3860 = vmatmul.mubr.bf16.gmra.mrb[0].mxu0 %v3781
  %v3861 = vpop.f32.mrb[0].mxu0
  %v3862 = vadd.f32 %v3720, %v3861
  %v3863 = vpop.f32.mrb[0].mxu0
  %v3864 = vadd.f32 %v3720, %v3863
  %v3865 = vpop.f32.mrb[0].mxu0
  %v3866 = vadd.f32 %v3725, %v3865
  %v3867 = vpop.f32.mrb[0].mxu0
  %v3868 = vadd.f32 %v3725, %v3867
  %3869 = vmatprep.mubr.bf16.mxu0 %v3802
  %3870 = vmatmul.mubr.bf16.gmra.mrb[0].mxu0 %v3783
  %v3871 = vpop.f32.mrb[0].mxu0
  %v3872 = vadd.f32 %v3730, %v3871
  %v3873 = vpop.f32.mrb[0].mxu0
  %v3874 = vadd.f32 %v3730, %v3873
  %v3875 = vpop.f32.mrb[0].mxu0
  %v3876 = vadd.f32 %v3735, %v3875
  %v3877 = vpop.f32.mrb[0].mxu0
  %v3878 = vadd.f32 %v3735, %v3877
  %3879 = vmatprep.mubr.bf16.mxu0 %v3805
  %3880 = vmatmul.mubr.bf16.gmra.mrb[0].mxu0 %v3785
  %v3881 = vpop.f32.mrb[0].mxu0
  %v3882 = vadd.f32 %v3740, %v3881
  %v3883 = vpop.f32.mrb[0].mxu0
  %v3884 = vadd.f32 %v3740, %v3883
  %v3885 = vpop.f32.mrb[0].mxu0
  %v3886 = vadd.f32 %v3745, %v3885
  %v3887 = vpop.f32.mrb[0].mxu0
  %v3888 = vadd.f32 %v3745, %v3887
  %3889 = vdwg.mxu0
  %3890 = vmatprep.subr.bf16.mxu0 %v3420
  %3891 = vmatpush1.bf16.msra.mxu0 %v3419
  %3892 = vmatprep.subr.bf16.mxu0 %v3456
  %3893 = vmatpush1.bf16.msra.mxu0 %v3455
  %3894 = vmatprep.subr.bf16.mxu0 %v3492
  %3895 = vmatpush1.bf16.msra.mxu0 %v3491
  %3896 = vmatprep.subr.bf16.mxu0 %v3528
  %3897 = vmatpush1.bf16.msra.mxu0 %v3527
  %3898 = vmatprep.subr.bf16.mxu0 %v3532
  %3899 = vmatpush1.bf16.msra.mxu0 %v3531
  %3900 = vmatprep.subr.bf16.mxu0 %v3568
  %3901 = vmatpush1.bf16.msra.mxu0 %v3567
  %3902 = vmatprep.subr.bf16.mxu0 %v3604
  %3903 = vmatpush1.bf16.msra.mxu0 %v3603
  %3904 = vmatprep.subr.bf16.mxu0 %v3640
  %3905 = vmatpush1.bf16.msra.mxu0 %v3639
  %3906 = vmatprep.subr.bf16.mxu0 %v3676
  %3907 = vmatpush1.bf16.msra.mxu0 %v3675
  %3908 = vmatprep.subr.bf16.mxu0 0
  %3909 = vmatpush1.bf16.msra.mxu0 0
  %3910 = vmatprep.subr.bf16.mxu0 0
  %3911 = vmatpush1.bf16.msra.mxu0 0
  %3912 = vmatprep.subr.bf16.mxu0 0
  %3913 = vmatpush1.bf16.msra.mxu0 0
  %3914 = vmatprep.subr.bf16.mxu0 0
  %3915 = vmatpush1.bf16.msra.mxu0 0
  %3916 = vmatprep.subr.bf16.mxu0 0
  %3917 = vmatpush1.bf16.msra.mxu0 0
  %3918 = vmatprep.subr.bf16.mxu0 0
  %3919 = vmatpush1.bf16.msra.mxu0 0
  %3920 = vmatprep.subr.bf16.mxu0 0
  %3921 = vmatpush1.bf16.msra.mxu0 0
  %3922 = vmatprep.mubr.bf16.mxu0 %v3793
  %3923 = vmatmul.mubr.bf16.gmra.mrb[0].mxu0 %v3777
  %v3924 = vpop.f32.mrb[0].mxu0
  %v3925 = vadd.f32 %v3700, %v3924
  %v3926 = vpop.f32.mrb[0].mxu0
  %v3927 = vadd.f32 %v3700, %v3926
  %v3928 = vpop.f32.mrb[0].mxu0
  %v3929 = vadd.f32 %v3705, %v3928
  %v3930 = vpop.f32.mrb[0].mxu0
  %v3931 = vadd.f32 %v3705, %v3930
  %3932 = vmatprep.mubr.bf16.mxu0 %v3796
  %3933 = vmatmul.mubr.bf16.gmra.mrb[0].mxu0 %v3779
  %v3934 = vpop.f32.mrb[0].mxu0
  %v3935 = vadd.f32 %v3710, %v3934
  %v3936 = vpop.f32.mrb[0].mxu0
  %v3937 = vadd.f32 %v3710, %v3936
  %v3938 = vpop.f32.mrb[0].mxu0
  %v3939 = vadd.f32 %v3715, %v3938
  %v3940 = vpop.f32.mrb[0].mxu0
  %v3941 = vadd.f32 %v3715, %v3940
  %3942 = vmatprep.mubr.bf16.mxu0 %v3799
  %3943 = vmatmul.mubr.bf16.gmra.mrb[0].mxu0 %v3781
  %v3944 = vpop.f32.mrb[0].mxu0
  %v3945 = vadd.f32 %v3720, %v3944
  %v3946 = vpop.f32.mrb[0].mxu0
  %v3947 = vadd.f32 %v3720, %v3946
  %v3948 = vpop.f32.mrb[0].mxu0
  %v3949 = vadd.f32 %v3725, %v3948
  %v3950 = vpop.f32.mrb[0].mxu0
  %v3951 = vadd.f32 %v3725, %v3950
  %3952 = vmatprep.mubr.bf16.mxu0 %v3802
  %3953 = vmatmul.mubr.bf16.gmra.mrb[0].mxu0 %v3783
  %v3954 = vpop.f32.mrb[0].mxu0
  %v3955 = vadd.f32 %v3730, %v3954
  %v3956 = vpop.f32.mrb[0].mxu0
  %v3957 = vadd.f32 %v3730, %v3956
  %v3958 = vpop.f32.mrb[0].mxu0
  %v3959 = vadd.f32 %v3735, %v3958
  %v3960 = vpop.f32.mrb[0].mxu0
  %v3961 = vadd.f32 %v3735, %v3960
  %3962 = vmatprep.mubr.bf16.mxu0 %v3805
  %3963 = vmatmul.mubr.bf16.gmra.mrb[0].mxu0 %v3785
  %v3964 = vpop.f32.mrb[0].mxu0
  %v3965 = vadd.f32 %v3740, %v3964
  %v3966 = vpop.f32.mrb[0].mxu0
  %v3967 = vadd.f32 %v3740, %v3966
  %v3968 = vpop.f32.mrb[0].mxu0
  %v3969 = vadd.f32 %v3745, %v3968
  %v3970 = vpop.f32.mrb[0].mxu0
  %v3971 = vadd.f32 %v3745, %v3970
  %3972 = vdwg.mxu0
  %v3973 = vmax.f32 %v3842, 0.0
  %v3974 = vmax.f32 %v3844, 0.0
  %v3975 = vmax.f32 %v3925, 0.0
  %v3976 = vmax.f32 %v3927, 0.0
  %v3977 = vmax.f32 %v3846, 0.0
  %v3978 = vmax.f32 %v3848, 0.0
  %v3979 = vmax.f32 %v3929, 0.0
  %v3980 = vmax.f32 %v3931, 0.0
  %v3981 = vmax.f32 %v3852, 0.0
  %v3982 = vmax.f32 %v3854, 0.0
  %v3983 = vmax.f32 %v3935, 0.0
  %v3984 = vmax.f32 %v3937, 0.0
  %v3985 = vmax.f32 %v3856, 0.0
  %v3986 = vmax.f32 %v3858, 0.0
  %v3987 = vmax.f32 %v3939, 0.0
  %v3988 = vmax.f32 %v3941, 0.0
  %v3989 = vmax.f32 %v3862, 0.0
  %v3990 = vmax.f32 %v3864, 0.0
  %v3991 = vmax.f32 %v3945, 0.0
  %v3992 = vmax.f32 %v3947, 0.0
  %v3993 = vmax.f32 %v3866, 0.0
  %v3994 = vmax.f32 %v3868, 0.0
  %v3995 = vmax.f32 %v3949, 0.0
  %v3996 = vmax.f32 %v3951, 0.0
  %v3997 = vmax.f32 %v3872, 0.0
  %v3998 = vmax.f32 %v3874, 0.0
  %v3999 = vmax.f32 %v3955, 0.0
  %v4000 = vmax.f32 %v3957, 0.0
  %v4001 = vmax.f32 %v3876, 0.0
  %v4002 = vmax.f32 %v3878, 0.0
  %v4003 = vmax.f32 %v3959, 0.0
  %v4004 = vmax.f32 %v3961, 0.0
  %v4005 = vmax.f32 %v3882, 0.0
  %v4006 = vmax.f32 %v3884, 0.0
  %v4007 = vmax.f32 %v3965, 0.0
  %v4008 = vmax.f32 %v3967, 0.0
  %v4009 = vmax.f32 %v3886, 0.0
  %v4010 = vmax.f32 %v3888, 0.0
  %v4011 = vmax.f32 %v3969, 0.0
  %v4012 = vmax.f32 %v3971, 0.0
  %v4013 = vld [vmem:[%s1 + $0x168] sm:$0xf]
  %v4014 = vld [vmem:[%s1 + $0x174] sm:$0xf]
  %v4015 = vpack.c.bf16 %v3977, %v3973
  %v4016 = vpack.c.bf16 %v3978, %v3974
  %v4017 = vpack.c.bf16 %v3979, %v3975
  %v4018 = vpack.c.bf16 %v3980, %v3976
  %v4019 = vpack.c.bf16 %v3985, %v3981
  %v4020 = vpack.c.bf16 %v3986, %v3982
  %v4021 = vpack.c.bf16 %v3987, %v3983
  %v4022 = vpack.c.bf16 %v3988, %v3984
  %v4023 = vpack.c.bf16 %v3993, %v3989
  %v4024 = vpack.c.bf16 %v3994, %v3990
  %v4025 = vpack.c.bf16 %v3995, %v3991
  %v4026 = vpack.c.bf16 %v3996, %v3992
  %v4027 = vpack.c.bf16 %v4001, %v3997
  %v4028 = vpack.c.bf16 %v4002, %v3998
  %v4029 = vpack.c.bf16 %v4003, %v3999
  %v4030 = vpack.c.bf16 %v4004, %v4000
  %v4031 = vpack.c.bf16 %v4009, %v4005
  %v4032 = vpack.c.bf16 %v4010, %v4006
  %v4033 = vpack.c.bf16 %v4011, %v4007
  %v4034 = vpack.c.bf16 %v4012, %v4008
  %v4035 = vld [vmem:[%s2 + $0xf0] sm:$0xff]
  %v4036 = vld [vmem:[%s2 + $0xf8] sm:$0xff]
  %4038 = vset.pattern.permute.xlu0 0
  %4039 = vperm.xlu0 %4038, %v4035
  %v4040 = vpop.permute.xlu0 %4039
  %4043 = vset.pattern.permute.xlu0 0
  %4044 = vperm.xlu0 %4043, %v4036
  %v4045 = vpop.permute.xlu0 %4044
  %v4049 = vunpack.c.l.b16 %v4013
  %v4050 = vunpack.c.l.b16 %v4014
  %v4051 = vpack.c.b16 %v4050, %v4049
  %vm4052 = vcmask 654336
  %v4054 = vsel %vm4052, %v4051, 0
  %4056 = vmatprep.subr.bf16.mxu0 %v4016
  %4057 = vmatpush1.bf16.msra.mxu0 %v4015
  %4058 = vmatprep.subr.bf16.mxu0 %v4020
  %4059 = vmatpush1.bf16.msra.mxu0 %v4019
  %4060 = vmatprep.subr.bf16.mxu0 %v4024
  %4061 = vmatpush1.bf16.msra.mxu0 %v4023
  %4062 = vmatprep.subr.bf16.mxu0 %v4028
  %4063 = vmatpush1.bf16.msra.mxu0 %v4027
  %4064 = vmatprep.subr.bf16.mxu0 %v4032
  %4065 = vmatpush1.bf16.msra.mxu0 %v4031
  %4066 = vmatprep.subr.bf16.mxu0 0
  %4067 = vmatpush1.bf16.msra.mxu0 0
  %4068 = vmatprep.subr.bf16.mxu0 0
  %4069 = vmatpush1.bf16.msra.mxu0 0
  %4070 = vmatprep.subr.bf16.mxu0 0
  %4071 = vmatpush1.bf16.msra.mxu0 0
  %4072 = vmatprep.subr.bf16.mxu0 0
  %4073 = vmatpush1.bf16.msra.mxu0 0
  %4074 = vmatprep.subr.bf16.mxu0 0
  %4075 = vmatpush1.bf16.msra.mxu0 0
  %4076 = vmatprep.subr.bf16.mxu0 0
  %4077 = vmatpush1.bf16.msra.mxu0 0
  %4078 = vmatprep.subr.bf16.mxu0 0
  %4079 = vmatpush1.bf16.msra.mxu0 0
  %4080 = vmatprep.subr.bf16.mxu0 0
  %4081 = vmatpush1.bf16.msra.mxu0 0
  %4082 = vmatprep.subr.bf16.mxu0 0
  %4083 = vmatpush1.bf16.msra.mxu0 0
  %4084 = vmatprep.subr.bf16.mxu0 0
  %4085 = vmatpush1.bf16.msra.mxu0 0
  %4086 = vmatprep.subr.bf16.mxu0 0
  %4087 = vmatpush1.bf16.msra.mxu0 0
  %4088 = vmatprep.mubr.bf16.mxu0 0
  %4089 = vmatmul.mubr.bf16.gmra.mrb[0].mxu0 %v4054
  %v4090 = vpop.f32.mrb[0].mxu0
  %v4091 = vadd.f32 %v4040, %v4090
  %v4092 = vpop.f32.mrb[0].mxu0
  %v4093 = vadd.f32 %v4040, %v4092
  %v4094 = vpop.f32.mrb[0].mxu0
  %v4095 = vadd.f32 %v4045, %v4094
  %v4096 = vpop.f32.mrb[0].mxu0
  %v4097 = vadd.f32 %v4045, %v4096
  %4098 = vdwg.mxu0
  %4099 = vmatprep.subr.bf16.mxu0 %v4018
  %4100 = vmatpush1.bf16.msra.mxu0 %v4017
  %4101 = vmatprep.subr.bf16.mxu0 %v4022
  %4102 = vmatpush1.bf16.msra.mxu0 %v4021
  %4103 = vmatprep.subr.bf16.mxu0 %v4026
  %4104 = vmatpush1.bf16.msra.mxu0 %v4025
  %4105 = vmatprep.subr.bf16.mxu0 %v4030
  %4106 = vmatpush1.bf16.msra.mxu0 %v4029
  %4107 = vmatprep.subr.bf16.mxu0 %v4034
  %4108 = vmatpush1.bf16.msra.mxu0 %v4033
  %4109 = vmatprep.subr.bf16.mxu0 0
  %4110 = vmatpush1.bf16.msra.mxu0 0
  %4111 = vmatprep.subr.bf16.mxu0 0
  %4112 = vmatpush1.bf16.msra.mxu0 0
  %4113 = vmatprep.subr.bf16.mxu0 0
  %4114 = vmatpush1.bf16.msra.mxu0 0
  %4115 = vmatprep.subr.bf16.mxu0 0
  %4116 = vmatpush1.bf16.msra.mxu0 0
  %4117 = vmatprep.subr.bf16.mxu0 0
  %4118 = vmatpush1.bf16.msra.mxu0 0
  %4119 = vmatprep.subr.bf16.mxu0 0
  %4120 = vmatpush1.bf16.msra.mxu0 0
  %4121 = vmatprep.subr.bf16.mxu0 0
  %4122 = vmatpush1.bf16.msra.mxu0 0
  %4123 = vmatprep.subr.bf16.mxu0 0
  %4124 = vmatpush1.bf16.msra.mxu0 0
  %4125 = vmatprep.subr.bf16.mxu0 0
  %4126 = vmatpush1.bf16.msra.mxu0 0
  %4127 = vmatprep.subr.bf16.mxu0 0
  %4128 = vmatpush1.bf16.msra.mxu0 0
  %4129 = vmatprep.subr.bf16.mxu0 0
  %4130 = vmatpush1.bf16.msra.mxu0 0
  %4131 = vmatprep.mubr.bf16.mxu0 0
  %4132 = vmatmul.mubr.bf16.gmra.mrb[0].mxu0 %v4054
  %v4133 = vpop.f32.mrb[0].mxu0
  %v4134 = vadd.f32 %v4040, %v4133
  %v4135 = vpop.f32.mrb[0].mxu0
  %v4136 = vadd.f32 %v4040, %v4135
  %v4137 = vpop.f32.mrb[0].mxu0
  %v4138 = vadd.f32 %v4045, %v4137
  %v4139 = vpop.f32.mrb[0].mxu0
  %v4140 = vadd.f32 %v4045, %v4139
  %4141 = vdwg.mxu0
  %v4142 = vlaneseq
  %v4143 = vshrl.u32 %v4142, 7
  %v4144 = vadd.s32 %v4143, 8
  %vm4145 = vcmp.lt.s32.totalorder %v4143, 3
  %vm4146 = vcmp.lt.s32.totalorder %v4144, 3
  %v4147 = vxor.u32 %v4091, 2147483648
  %v4148 = vxor.u32 %v4093, 2147483648
  %v4149 = vxor.u32 %v4134, 2147483648
  %v4150 = vxor.u32 %v4136, 2147483648
  %v4151 = vxor.u32 %v4095, 2147483648
  %v4152 = vxor.u32 %v4097, 2147483648
  %v4153 = vxor.u32 %v4138, 2147483648
  %v4154 = vxor.u32 %v4140, 2147483648
  %v4155 = vmul.f32 %v4147, 1.442695
  %v4156 = vpow.pop %v4155
  %v4157 = vmul.f32 %v4148, 1.442695
  %v4158 = vpow.pop %v4157
  %v4159 = vmul.f32 %v4149, 1.442695
  %v4160 = vpow.pop %v4159
  %v4161 = vmul.f32 %v4150, 1.442695
  %v4162 = vpow.pop %v4161
  %v4163 = vmul.f32 %v4151, 1.442695
  %v4164 = vpow.pop %v4163
  %v4165 = vmul.f32 %v4152, 1.442695
  %v4166 = vpow.pop %v4165
  %v4167 = vmul.f32 %v4153, 1.442695
  %v4168 = vpow.pop %v4167
  %v4169 = vmul.f32 %v4154, 1.442695
  %v4170 = vpow.pop %v4169
  %v4171 = vadd.f32 %v4156, 1.0
  %v4172 = vadd.f32 %v4158, 1.0
  %v4173 = vadd.f32 %v4160, 1.0
  %v4174 = vadd.f32 %v4162, 1.0
  %v4175 = vadd.f32 %v4164, 1.0
  %v4176 = vadd.f32 %v4166, 1.0
  %v4177 = vadd.f32 %v4168, 1.0
  %v4178 = vadd.f32 %v4170, 1.0
  %v4179 = vrcp.pop %v4171
  %v4180 = vmul.f32 1.0, %v4179
  %v4181 = vrcp.pop %v4172
  %v4182 = vmul.f32 1.0, %v4181
  %v4183 = vrcp.pop %v4173
  %v4184 = vmul.f32 1.0, %v4183
  %v4185 = vrcp.pop %v4174
  %v4186 = vmul.f32 1.0, %v4185
  %v4187 = vrcp.pop %v4175
  %v4188 = vmul.f32 1.0, %v4187
  %v4189 = vrcp.pop %v4176
  %v4190 = vmul.f32 1.0, %v4189
  %v4191 = vrcp.pop %v4177
  %v4192 = vmul.f32 1.0, %v4191
  %v4193 = vrcp.pop %v4178
  %v4194 = vmul.f32 1.0, %v4193
  %v4195 = vsel %vm4145, %v4180, %v4091
  %v4196 = vsel %vm4145, %v4182, %v4093
  %v4197 = vsel %vm4145, %v4184, %v4134
  %v4198 = vsel %vm4145, %v4186, %v4136
  %v4199 = vsel %vm4146, %v4188, %v4095
  %v4200 = vsel %vm4146, %v4190, %v4097
  %v4201 = vsel %vm4146, %v4192, %v4138
  %v4202 = vsel %vm4146, %v4194, %v4140
  %4203 = vst [vmem:[%s5] sm:$0xff] %v4195
  %4204 = vst [vmem:[%s5 + $0x8] sm:$0xff] %v4196
  %4205 = vst [vmem:[%s5 + $0x10] sm:$0xff] %v4199
  %4206 = vst [vmem:[%s5 + $0x18] sm:$0xff] %v4200
  %s4207 = scalar_lea.vmem %s5, 32
  %4208 = vst [vmem:[%s4207] sm:$0xff] %v4197
  %4209 = vst [vmem:[%s4207 + $0x8] sm:$0xff] %v4198
  %4210 = vst [vmem:[%s4207 + $0x10] sm:$0xff] %v4201
  %4211 = vst [vmem:[%s4207 + $0x18] sm:$0xff] %v4202
  // Predicated region
  $region22: #{dense_convs_pipeline.1} parent=0 // pred_check
    _
  $region23: #{dense_convs_pipeline.1} parent=0 // pred_check_branch
    %4213 = sbr.rel (0) target = $region25
  $region24: #{dense_convs_pipeline.1} parent=0 // pred_region
    _
  $region25: #{dense_convs_pipeline.1} parent=0 // pred_fallthru
    _
  // Predicated region
  $region26: #{dense_convs_pipeline.1} parent=0 // pred_check
    _
  $region27: #{dense_convs_pipeline.1} parent=0 // pred_check_branch
    %4215 = sbr.rel (0) target = $region29
  $region28: #{dense_convs_pipeline.1} parent=0 // pred_region
    _
  $region29: #{dense_convs_pipeline.1} parent=0 // pred_fallthru
    _

</llo_original>
